<compile_context>
chip_gen: v7x
topology: tpu7x:2x2x1
jax: 0.10.0
libtpu: 0.0.40
codegen_flags: <defaults>
</compile_context>

<pallas_src>
import jax
import jax.numpy as jnp
from jax.experimental import pallas as pl
from jax.experimental.pallas import tpu as pltpu

_BN_EPS = 1e-5
_IN_PAD = 640          # 600 input features zero-padded to 5*128 lanes
_TILE_B_MAX = 256      # batch tile upper bound (review: 256-512)


# -----------------------------------------------------------------------------
# Kernel: entire forward pass for one batch tile, all weights VMEM-resident.
# -----------------------------------------------------------------------------
def _forward_kernel(x_ref, w640_ref, w1024_ref, w512_ref, w256_ref, w128_ref,
                    b_ref, out_ref):
    f32 = jnp.float32
    bf16 = jnp.bfloat16
    relu = lambda v: jnp.maximum(v, 0.0)
    tobf = lambda v: v.astype(bf16)

    def mm(h_bf16, w_bf16, bias_row, width):
        acc = jnp.dot(h_bf16, w_bf16, preferred_element_type=f32)
        return acc + b_ref[bias_row:bias_row + 1, 0:width]      # fp32 bias add

    x = x_ref[...]                                              # (TB, 640) bf16

    # ---- feature_extractor: 4 x (Linear + folded BN + ReLU) ----
    h = tobf(relu(mm(x, w640_ref[...], 0, 1024)))               # 640  -> 1024
    h = tobf(relu(mm(h, w1024_ref[...], 1, 512)))               # 1024 -> 512
    h = tobf(relu(mm(h, w512_ref[...], 2, 256)))                # 512  -> 256
    feats = tobf(relu(mm(h, w256_ref[:, 0:128], 3, 128)))       # 256  -> 128

    # ---- fused le1 + ge1 (both consume feats, both ReLU): 128 -> 384 ----
    lg = relu(mm(feats, w128_ref[:, 0:384], 4, 384))
    l = tobf(lg[:, 0:128])                                      # lanes 0:32 valid
    g = tobf(lg[:, 128:384])                                    # ge1 output (256)

    # ---- gap_feature_enhancer continued: ge2, ge3 ----
    g = tobf(relu(mm(g, w256_ref[:, 128:384], 7, 256)))         # 256 -> 256
    gap_f32 = relu(mm(g, w256_ref[:, 384:512], 8, 128))         # 256 -> 128
    gap_feats = tobf(gap_f32)

    # ---- fused attention branches ----
    # first layers of both branches in one 128 -> 128 matmul:
    #   lanes 0:64   = gap_attention_1[0]  (tanh)
    #   lanes 64:128 = gap_attention_2[0]  (relu)
    a = mm(gap_feats, w128_ref[:, 384:512], 5, 128)
    lane = jax.lax.broadcasted_iota(jnp.int32, a.shape, 1)
    a_act = jnp.where(lane < 64, jnp.tanh(a), relu(a))
    # second layers as one block-diagonal 128 -> 256 matmul, sigmoid:
    att = jax.nn.sigmoid(mm(tobf(a_act), w128_ref[:, 512:768], 6, 256))
    combined = (att[:, 0:128] + att[:, 128:256]) * 0.5
    attended = tobf(gap_f32 * combined)

    # ---- gap_predictor first two layers ----
    p = tobf(relu(mm(attended, w128_ref[:, 768:896], 9, 128)))  # 128 -> 64 (pad)
    p = tobf(relu(mm(p, w128_ref[:, 896:1024], 10, 128)))       # 64  -> 32 (pad)

    # ---- fused heads (le2 + gp3): concat([l, p]) @ (256,128) ----
    #   lane 0 = L_ecran, lane 1 = gap; lane-dense single store.
    lp = jnp.concatenate([l, p], axis=1)                        # (TB, 256) bf16
    head = mm(lp, w256_ref[:, 512:640], 11, 128)
    out_ref[...] = head.astype(out_ref.dtype)


# -----------------------------------------------------------------------------
# Parameter construction (deterministic, mirrors PyTorch __init__) + packing.
# -----------------------------------------------------------------------------
def _kaiming(key, fan_in, fan_out):
    """Kaiming-normal (mode='fan_out', relu): std = sqrt(2/fan_out); bias 0."""
    std = (2.0 / fan_out) ** 0.5
    w = std * jax.random.normal(key, (fan_in, fan_out), dtype=jnp.float32)
    b = jnp.zeros((1, fan_out), dtype=jnp.float32)
    return w, b


def build_params(key, input_size=600):
    defs = [
        ("fe1", input_size, 1024, True), ("fe2", 1024, 512, True),
        ("fe3", 512, 256, True), ("fe4", 256, 128, True),
        ("le1", 128, 32, False), ("le2", 32, 1, False),
        ("ge1", 128, 256, True), ("ge2", 256, 256, True), ("ge3", 256, 128, True),
        ("a1_0", 128, 64, False), ("a1_1", 64, 128, False),
        ("a2_0", 128, 64, False), ("a2_1", 64, 128, False),
        ("gp1", 128, 64, False), ("gp2", 64, 32, False), ("gp3", 32, 1, False),
    ]
    keys = jax.random.split(key, len(defs))
    bn_scale = (1.0 + _BN_EPS) ** -0.5          # eval-mode BN fold (mu=0, var=1)
    raw = {}
    for k, (name, fi, fo, has_bn) in zip(keys, defs):
        w, b = _kaiming(k, fi, fo)
        if has_bn:
            w, b = w * bn_scale, b * bn_scale
        raw[name] = (w, b)
    # TODO(synk): if real trained BN stats / affine params exist, fold them here
    # instead of the eval-mode defaults.

    f32, bf16 = jnp.float32, jnp.bfloat16

    def pad_w(w, rows, cols, r0=0, c0=0):
        z = jnp.zeros((rows, cols), f32)
        return z.at[r0:r0 + w.shape[0], c0:c0 + w.shape[1]].set(w)

    # --- pack weights, grouped by fan-in, column offsets 128-aligned ---
    w640 = pad_w(raw["fe1"][0], _IN_PAD, 1024)                      # (640, 1024)
    w1024 = raw["fe2"][0]                                           # (1024, 512)
    w512 = raw["fe3"][0]                                            # (512, 256)

    # fused head weight (le2 | gp3) over concat([l, p]) -> lanes 0 and 1
    head_w = jnp.zeros((256, 128), f32)
    head_w = head_w.at[0:32, 0:1].set(raw["le2"][0])
    head_w = head_w.at[128:160, 1:2].set(raw["gp3"][0])

    w256 = jnp.concatenate(                                         # (256, 640)
        [raw["fe4"][0],                                             # 0:128
         raw["ge2"][0],                                             # 128:384
         raw["ge3"][0],                                             # 384:512
         head_w], axis=1)                                           # 512:640

    w128 = jnp.concatenate([                                        # (128, 1024)
        pad_w(raw["le1"][0], 128, 128),                             # 0:128   (le1)
        raw["ge1"][0],                                              # 128:384 (ge1)
        jnp.concatenate([raw["a1_0"][0], raw["a2_0"][0]], axis=1),  # 384:512
        pad_w(raw["a1_1"][0], 128, 256, 0, 0)                       # 512:768
        + pad_w(raw["a2_1"][0], 128, 256, 64, 128),                 # (block-diag)
        pad_w(raw["gp1"][0], 128, 128),                             # 768:896
        pad_w(raw["gp2"][0], 128, 128),                             # 896:1024
    ], axis=1)

    # --- pack all biases into one (16, 1024) fp32 buffer ---
    def pad_b(b, width=1024):
        return jnp.pad(b, ((0, 0), (0, width - b.shape[1])))

    bias_rows = [
        raw["fe1"][1], raw["fe2"][1], raw["fe3"][1], raw["fe4"][1],        # 0..3
        jnp.concatenate([pad_b(raw["le1"][1], 128), raw["ge1"][1]], 1),    # 4
        jnp.concatenate([raw["a1_0"][1], raw["a2_0"][1]], axis=1),         # 5
        jnp.concatenate([raw["a1_1"][1], raw["a2_1"][1]], axis=1),         # 6
        raw["ge2"][1], raw["ge3"][1],                                      # 7..8
        raw["gp1"][1], raw["gp2"][1],                                      # 9..10
        jnp.concatenate([raw["le2"][1], raw["gp3"][1]], axis=1),           # 11
    ]
    biases = jnp.concatenate([pad_b(b) for b in bias_rows]
                             + [jnp.zeros((4, 1024), f32)], axis=0)        # (16,1024)

    packed = {
        "w640": w640.astype(bf16), "w1024": w1024.astype(bf16),
        "w512": w512.astype(bf16), "w256": w256.astype(bf16),
        "w128": w128.astype(bf16), "biases": biases,
    }
    raw_list = [(raw[name][0].astype(bf16), raw[name][1])
                for (name, _, _, _) in defs]
    return packed, raw_list


# -----------------------------------------------------------------------------
# Wrapper
# -----------------------------------------------------------------------------
@jax.jit
def ultra_forward(x, packed):
    batch, feat = x.shape
    # Batch tile: up to 256 rows (mult of 16); for small batches aim for >=2
    # grid steps so the "parallel" axis shards across both TCs on v7x.
    tile_b = min(_TILE_B_MAX, max(16, (((batch + 1) // 2 + 15) // 16) * 16))
    padded_batch = ((batch + tile_b - 1) // tile_b) * tile_b
    # bf16 input: halves the per-step HBM input traffic (cast fused into pad).
    x_p = jnp.pad(x.astype(jnp.bfloat16),
                  ((0, padded_batch - batch), (0, _IN_PAD - feat)))

    const2d = lambda arr: pl.BlockSpec(arr.shape, lambda i: (0, 0))
    out = pl.pallas_call(
        _forward_kernel,
        out_shape=jax.ShapeDtypeStruct((padded_batch, 128), jnp.float32),
        grid=(padded_batch // tile_b,),
        in_specs=[
            pl.BlockSpec((tile_b, _IN_PAD), lambda i: (i, 0)),
            const2d(packed["w640"]),
            const2d(packed["w1024"]),
            const2d(packed["w512"]),
            const2d(packed["w256"]),
            const2d(packed["w128"]),
            const2d(packed["biases"]),
        ],
        out_specs=pl.BlockSpec((tile_b, 128), lambda i: (i, 0)),
        compiler_params=pltpu.CompilerParams(
            dimension_semantics=("parallel",),
            vmem_limit_bytes=32 * 1024 * 1024,
        ),
    )(x_p, packed["w640"], packed["w1024"], packed["w512"], packed["w256"],
      packed["w128"], packed["biases"])
    # lane-dense (TB,128) store in-kernel; real outputs live in lanes 0 (L_ecran)
    # and 1 (gap).
    return out[:batch, :2]


# Pure-JAX reference using the RAW (unpacked, BN-folded, bf16) weights — checks
# the packing/padding/fusion logic inside the kernel as well as the math.
def ultra_forward_ref(x, raw_params):
    def lin(h, wb):
        w, b = wb
        return jnp.dot(h.astype(jnp.bfloat16), w,
                       preferred_element_type=jnp.float32) + b
    relu = lambda v: jnp.maximum(v, 0.0)
    (fe1, fe2, fe3, fe4, le1, le2, ge1, ge2, ge3,
     a1_0, a1_1, a2_0, a2_1, gp1, gp2, gp3) = raw_params

    h = relu(lin(x, fe1)); h = relu(lin(h, fe2)); h = relu(lin(h, fe3))
    feats = relu(lin(h, fe4))
    l_ecran = lin(relu(lin(feats, le1)), le2)
    g = relu(lin(feats, ge1)); g = relu(lin(g, ge2)); gap_feats = relu(lin(g, ge3))
    a1 = jax.nn.sigmoid(lin(jnp.tanh(lin(gap_feats, a1_0)), a1_1))
    a2 = jax.nn.sigmoid(lin(relu(lin(gap_feats, a2_0)), a2_1))
    attended = gap_feats * ((a1 + a2) * 0.5)
    p = relu(lin(attended, gp1)); p = relu(lin(p, gp2)); gap = lin(p, gp3)
    return jnp.concatenate([l_ecran, gap], axis=1)


if __name__ == "__main__":
    INPUT_SIZE = 600
    BATCH = 4

    key = jax.random.PRNGKey(0)
    k_params, k_x = jax.random.split(key)

    packed, raw = build_params(k_params, input_size=INPUT_SIZE)
    x = jax.random.normal(k_x, (BATCH, INPUT_SIZE), dtype=jnp.float32)

    out = jax.block_until_ready(ultra_forward(x, packed))
    ref = ultra_forward_ref(x, raw)

    assert out.shape == (BATCH, 2), out.shape
    assert jnp.allclose(out, ref, atol=1e-2, rtol=1e-2), (out, ref)

    print("KERNEL_OK")
</pallas_src>

<mosaic_0001>
module attributes {stable_mosaic.version = 11 : i64} {
  func.func @_forward_kernel(%arg0: i32, %arg1: memref<16x640xbf16, #tpu.memory_space<vmem>>, %arg2: memref<640x1024xbf16, #tpu.memory_space<vmem>>, %arg3: memref<1024x512xbf16, #tpu.memory_space<vmem>>, %arg4: memref<512x256xbf16, #tpu.memory_space<vmem>>, %arg5: memref<256x640xbf16, #tpu.memory_space<vmem>>, %arg6: memref<128x1024xbf16, #tpu.memory_space<vmem>>, %arg7: memref<16x1024xf32, #tpu.memory_space<vmem>>, %arg8: memref<16x128xf32, #tpu.memory_space<vmem>>) attributes {dimension_semantics = [#tpu.dimension_semantics<parallel>], iteration_bounds = array<i64: 1>, scalar_prefetch = 0 : i64, scratch_operands = 0 : i64, tpu.core_type = #tpu.core_type<tc>, window_params = [{transform_indices = @transform_0, window_bounds = array<i64: 16, 640>}, {pipeline_mode = #tpu.pipeline_mode<synchronous>, transform_indices = @transform_1, window_bounds = array<i64: 640, 1024>}, {pipeline_mode = #tpu.pipeline_mode<synchronous>, transform_indices = @transform_2, window_bounds = array<i64: 1024, 512>}, {pipeline_mode = #tpu.pipeline_mode<synchronous>, transform_indices = @transform_3, window_bounds = array<i64: 512, 256>}, {pipeline_mode = #tpu.pipeline_mode<synchronous>, transform_indices = @transform_4, window_bounds = array<i64: 256, 640>}, {pipeline_mode = #tpu.pipeline_mode<synchronous>, transform_indices = @transform_5, window_bounds = array<i64: 128, 1024>}, {pipeline_mode = #tpu.pipeline_mode<synchronous>, transform_indices = @transform_6, window_bounds = array<i64: 16, 1024>}, {transform_indices = @transform_7, window_bounds = array<i64: 16, 128>}]} {
    %c0 = arith.constant 0 : index
    %c0_0 = arith.constant 0 : index
    %0 = vector.load %arg1[%c0, %c0_0] : memref<16x640xbf16, #tpu.memory_space<vmem>>, vector<16x640xbf16>
    %c0_1 = arith.constant 0 : index
    %c0_2 = arith.constant 0 : index
    %1 = vector.load %arg2[%c0_1, %c0_2] : memref<640x1024xbf16, #tpu.memory_space<vmem>>, vector<640x1024xbf16>
    %cst = arith.constant dense<0.000000e+00> : vector<16x1024xf32>
    %2 = tpu.matmul %0, %1, %cst {dimension_numbers = #tpu.dot_dimension_numbers<[1], [0], [0], [1], [0, 0, 1, 1], [], []>} : vector<16x640xbf16>, vector<640x1024xbf16>, vector<16x1024xf32> -> vector<16x1024xf32>
    %c0_3 = arith.constant 0 : index
    %c0_4 = arith.constant 0 : index
    %3 = vector.load %arg7[%c0_3, %c0_4] : memref<16x1024xf32, #tpu.memory_space<vmem>>, vector<1x1024xf32>
    %4 = vector.broadcast %3 : vector<1x1024xf32> to vector<16x1024xf32>
    %5 = arith.addf %2, %4 : vector<16x1024xf32>
    %cst_5 = arith.constant 0.000000e+00 : f32
    %6 = vector.broadcast %cst_5 : f32 to vector<16x1024xf32>
    %7 = arith.maximumf %5, %6 : vector<16x1024xf32>
    %8 = arith.truncf %7 : vector<16x1024xf32> to vector<16x1024xbf16>
    %c0_6 = arith.constant 0 : index
    %c0_7 = arith.constant 0 : index
    %9 = vector.load %arg3[%c0_6, %c0_7] : memref<1024x512xbf16, #tpu.memory_space<vmem>>, vector<1024x512xbf16>
    %cst_8 = arith.constant dense<0.000000e+00> : vector<16x512xf32>
    %10 = tpu.matmul %8, %9, %cst_8 {dimension_numbers = #tpu.dot_dimension_numbers<[1], [0], [0], [1], [0, 0, 1, 1], [], []>} : vector<16x1024xbf16>, vector<1024x512xbf16>, vector<16x512xf32> -> vector<16x512xf32>
    %c1 = arith.constant 1 : index
    %c0_9 = arith.constant 0 : index
    %11 = vector.load %arg7[%c1, %c0_9] : memref<16x1024xf32, #tpu.memory_space<vmem>>, vector<1x512xf32>
    %12 = vector.broadcast %11 : vector<1x512xf32> to vector<16x512xf32>
    %13 = arith.addf %10, %12 : vector<16x512xf32>
    %cst_10 = arith.constant 0.000000e+00 : f32
    %14 = vector.broadcast %cst_10 : f32 to vector<16x512xf32>
    %15 = arith.maximumf %13, %14 : vector<16x512xf32>
    %16 = arith.truncf %15 : vector<16x512xf32> to vector<16x512xbf16>
    %c0_11 = arith.constant 0 : index
    %c0_12 = arith.constant 0 : index
    %17 = vector.load %arg4[%c0_11, %c0_12] : memref<512x256xbf16, #tpu.memory_space<vmem>>, vector<512x256xbf16>
    %cst_13 = arith.constant dense<0.000000e+00> : vector<16x256xf32>
    %18 = tpu.matmul %16, %17, %cst_13 {dimension_numbers = #tpu.dot_dimension_numbers<[1], [0], [0], [1], [0, 0, 1, 1], [], []>} : vector<16x512xbf16>, vector<512x256xbf16>, vector<16x256xf32> -> vector<16x256xf32>
    %c2 = arith.constant 2 : index
    %c0_14 = arith.constant 0 : index
    %19 = vector.load %arg7[%c2, %c0_14] : memref<16x1024xf32, #tpu.memory_space<vmem>>, vector<1x256xf32>
    %20 = vector.broadcast %19 : vector<1x256xf32> to vector<16x256xf32>
    %21 = arith.addf %18, %20 : vector<16x256xf32>
    %cst_15 = arith.constant 0.000000e+00 : f32
    %22 = vector.broadcast %cst_15 : f32 to vector<16x256xf32>
    %23 = arith.maximumf %21, %22 : vector<16x256xf32>
    %24 = arith.truncf %23 : vector<16x256xf32> to vector<16x256xbf16>
    %c0_16 = arith.constant 0 : index
    %c0_17 = arith.constant 0 : index
    %25 = vector.load %arg5[%c0_16, %c0_17] : memref<256x640xbf16, #tpu.memory_space<vmem>>, vector<256x128xbf16>
    %cst_18 = arith.constant dense<0.000000e+00> : vector<16x128xf32>
    %26 = tpu.matmul %24, %25, %cst_18 {dimension_numbers = #tpu.dot_dimension_numbers<[1], [0], [0], [1], [0, 0, 1, 1], [], []>} : vector<16x256xbf16>, vector<256x128xbf16>, vector<16x128xf32> -> vector<16x128xf32>
    %c3 = arith.constant 3 : index
    %c0_19 = arith.constant 0 : index
    %27 = vector.load %arg7[%c3, %c0_19] : memref<16x1024xf32, #tpu.memory_space<vmem>>, vector<1x128xf32>
    %28 = vector.broadcast %27 : vector<1x128xf32> to vector<16x128xf32>
    %29 = arith.addf %26, %28 : vector<16x128xf32>
    %cst_20 = arith.constant 0.000000e+00 : f32
    %30 = vector.broadcast %cst_20 : f32 to vector<16x128xf32>
    %31 = arith.maximumf %29, %30 : vector<16x128xf32>
    %32 = arith.truncf %31 : vector<16x128xf32> to vector<16x128xbf16>
    %c0_21 = arith.constant 0 : index
    %c0_22 = arith.constant 0 : index
    %33 = vector.load %arg6[%c0_21, %c0_22] : memref<128x1024xbf16, #tpu.memory_space<vmem>>, vector<128x384xbf16>
    %cst_23 = arith.constant dense<0.000000e+00> : vector<16x384xf32>
    %34 = tpu.matmul %32, %33, %cst_23 {dimension_numbers = #tpu.dot_dimension_numbers<[1], [0], [0], [1], [0, 0, 1, 1], [], []>} : vector<16x128xbf16>, vector<128x384xbf16>, vector<16x384xf32> -> vector<16x384xf32>
    %c4 = arith.constant 4 : index
    %c0_24 = arith.constant 0 : index
    %35 = vector.load %arg7[%c4, %c0_24] : memref<16x1024xf32, #tpu.memory_space<vmem>>, vector<1x384xf32>
    %36 = vector.broadcast %35 : vector<1x384xf32> to vector<16x384xf32>
    %37 = arith.addf %34, %36 : vector<16x384xf32>
    %cst_25 = arith.constant 0.000000e+00 : f32
    %38 = vector.broadcast %cst_25 : f32 to vector<16x384xf32>
    %39 = arith.maximumf %37, %38 : vector<16x384xf32>
    %40 = vector.extract_strided_slice %39 {offsets = [0, 0], sizes = [16, 128], strides = [1, 1]} : vector<16x384xf32> to vector<16x128xf32>
    %41 = arith.truncf %40 : vector<16x128xf32> to vector<16x128xbf16>
    %42 = vector.extract_strided_slice %39 {offsets = [0, 128], sizes = [16, 256], strides = [1, 1]} : vector<16x384xf32> to vector<16x256xf32>
    %43 = arith.truncf %42 : vector<16x256xf32> to vector<16x256xbf16>
    %c0_26 = arith.constant 0 : index
    %c128 = arith.constant 128 : index
    %44 = vector.load %arg5[%c0_26, %c128] : memref<256x640xbf16, #tpu.memory_space<vmem>>, vector<256x256xbf16>
    %cst_27 = arith.constant dense<0.000000e+00> : vector<16x256xf32>
    %45 = tpu.matmul %43, %44, %cst_27 {dimension_numbers = #tpu.dot_dimension_numbers<[1], [0], [0], [1], [0, 0, 1, 1], [], []>} : vector<16x256xbf16>, vector<256x256xbf16>, vector<16x256xf32> -> vector<16x256xf32>
    %c7 = arith.constant 7 : index
    %c0_28 = arith.constant 0 : index
    %46 = vector.load %arg7[%c7, %c0_28] : memref<16x1024xf32, #tpu.memory_space<vmem>>, vector<1x256xf32>
    %47 = vector.broadcast %46 : vector<1x256xf32> to vector<16x256xf32>
    %48 = arith.addf %45, %47 : vector<16x256xf32>
    %cst_29 = arith.constant 0.000000e+00 : f32
    %49 = vector.broadcast %cst_29 : f32 to vector<16x256xf32>
    %50 = arith.maximumf %48, %49 : vector<16x256xf32>
    %51 = arith.truncf %50 : vector<16x256xf32> to vector<16x256xbf16>
    %c0_30 = arith.constant 0 : index
    %c384 = arith.constant 384 : index
    %52 = vector.load %arg5[%c0_30, %c384] : memref<256x640xbf16, #tpu.memory_space<vmem>>, vector<256x128xbf16>
    %cst_31 = arith.constant dense<0.000000e+00> : vector<16x128xf32>
    %53 = tpu.matmul %51, %52, %cst_31 {dimension_numbers = #tpu.dot_dimension_numbers<[1], [0], [0], [1], [0, 0, 1, 1], [], []>} : vector<16x256xbf16>, vector<256x128xbf16>, vector<16x128xf32> -> vector<16x128xf32>
    %c8 = arith.constant 8 : index
    %c0_32 = arith.constant 0 : index
    %54 = vector.load %arg7[%c8, %c0_32] : memref<16x1024xf32, #tpu.memory_space<vmem>>, vector<1x128xf32>
    %55 = vector.broadcast %54 : vector<1x128xf32> to vector<16x128xf32>
    %56 = arith.addf %53, %55 : vector<16x128xf32>
    %cst_33 = arith.constant 0.000000e+00 : f32
    %57 = vector.broadcast %cst_33 : f32 to vector<16x128xf32>
    %58 = arith.maximumf %56, %57 : vector<16x128xf32>
    %59 = arith.truncf %58 : vector<16x128xf32> to vector<16x128xbf16>
    %c0_34 = arith.constant 0 : index
    %c384_35 = arith.constant 384 : index
    %60 = vector.load %arg6[%c0_34, %c384_35] : memref<128x1024xbf16, #tpu.memory_space<vmem>>, vector<128x128xbf16>
    %cst_36 = arith.constant dense<0.000000e+00> : vector<16x128xf32>
    %61 = tpu.matmul %59, %60, %cst_36 {dimension_numbers = #tpu.dot_dimension_numbers<[1], [0], [0], [1], [0, 0, 1, 1], [], []>} : vector<16x128xbf16>, vector<128x128xbf16>, vector<16x128xf32> -> vector<16x128xf32>
    %c5 = arith.constant 5 : index
    %c0_37 = arith.constant 0 : index
    %62 = vector.load %arg7[%c5, %c0_37] : memref<16x1024xf32, #tpu.memory_space<vmem>>, vector<1x128xf32>
    %63 = vector.broadcast %62 : vector<1x128xf32> to vector<16x128xf32>
    %64 = arith.addf %61, %63 : vector<16x128xf32>
    %65 = tpu.iota {dimensions = array<i32: 1>} : vector<16x128xi32>
    %c64_i32 = arith.constant 64 : i32
    %66 = vector.broadcast %c64_i32 : i32 to vector<16x128xi32>
    %67 = arith.cmpi slt, %65, %66 : vector<16x128xi32>
    %68 = math.tanh %64 : vector<16x128xf32>
    %cst_38 = arith.constant 0.000000e+00 : f32
    %69 = vector.broadcast %cst_38 : f32 to vector<16x128xf32>
    %70 = arith.maximumf %64, %69 : vector<16x128xf32>
    %71 = arith.select %67, %68, %70 : vector<16x128xi1>, vector<16x128xf32>
    %72 = arith.truncf %71 : vector<16x128xf32> to vector<16x128xbf16>
    %c0_39 = arith.constant 0 : index
    %c512 = arith.constant 512 : index
    %73 = vector.load %arg6[%c0_39, %c512] : memref<128x1024xbf16, #tpu.memory_space<vmem>>, vector<128x256xbf16>
    %cst_40 = arith.constant dense<0.000000e+00> : vector<16x256xf32>
    %74 = tpu.matmul %72, %73, %cst_40 {dimension_numbers = #tpu.dot_dimension_numbers<[1], [0], [0], [1], [0, 0, 1, 1], [], []>} : vector<16x128xbf16>, vector<128x256xbf16>, vector<16x256xf32> -> vector<16x256xf32>
    %c6 = arith.constant 6 : index
    %c0_41 = arith.constant 0 : index
    %75 = vector.load %arg7[%c6, %c0_41] : memref<16x1024xf32, #tpu.memory_space<vmem>>, vector<1x256xf32>
    %76 = vector.broadcast %75 : vector<1x256xf32> to vector<16x256xf32>
    %77 = arith.addf %74, %76 : vector<16x256xf32>
    %78 = arith.negf %77 : vector<16x256xf32>
    %79 = math.exp %78 : vector<16x256xf32>
    %cst_42 = arith.constant 1.000000e+00 : f32
    %80 = vector.broadcast %cst_42 : f32 to vector<16x256xf32>
    %81 = arith.addf %80, %79 : vector<16x256xf32>
    %82 = arith.divf %80, %81 : vector<16x256xf32>
    %83 = vector.extract_strided_slice %82 {offsets = [0, 0], sizes = [16, 128], strides = [1, 1]} : vector<16x256xf32> to vector<16x128xf32>
    %84 = vector.extract_strided_slice %82 {offsets = [0, 128], sizes = [16, 128], strides = [1, 1]} : vector<16x256xf32> to vector<16x128xf32>
    %85 = arith.addf %83, %84 : vector<16x128xf32>
    %cst_43 = arith.constant 5.000000e-01 : f32
    %86 = vector.broadcast %cst_43 : f32 to vector<16x128xf32>
    %87 = arith.mulf %85, %86 : vector<16x128xf32>
    %88 = arith.mulf %58, %87 : vector<16x128xf32>
    %89 = arith.truncf %88 : vector<16x128xf32> to vector<16x128xbf16>
    %c0_44 = arith.constant 0 : index
    %c768 = arith.constant 768 : index
    %90 = vector.load %arg6[%c0_44, %c768] : memref<128x1024xbf16, #tpu.memory_space<vmem>>, vector<128x128xbf16>
    %cst_45 = arith.constant dense<0.000000e+00> : vector<16x128xf32>
    %91 = tpu.matmul %89, %90, %cst_45 {dimension_numbers = #tpu.dot_dimension_numbers<[1], [0], [0], [1], [0, 0, 1, 1], [], []>} : vector<16x128xbf16>, vector<128x128xbf16>, vector<16x128xf32> -> vector<16x128xf32>
    %c9 = arith.constant 9 : index
    %c0_46 = arith.constant 0 : index
    %92 = vector.load %arg7[%c9, %c0_46] : memref<16x1024xf32, #tpu.memory_space<vmem>>, vector<1x128xf32>
    %93 = vector.broadcast %92 : vector<1x128xf32> to vector<16x128xf32>
    %94 = arith.addf %91, %93 : vector<16x128xf32>
    %cst_47 = arith.constant 0.000000e+00 : f32
    %95 = vector.broadcast %cst_47 : f32 to vector<16x128xf32>
    %96 = arith.maximumf %94, %95 : vector<16x128xf32>
    %97 = arith.truncf %96 : vector<16x128xf32> to vector<16x128xbf16>
    %c0_48 = arith.constant 0 : index
    %c896 = arith.constant 896 : index
    %98 = vector.load %arg6[%c0_48, %c896] : memref<128x1024xbf16, #tpu.memory_space<vmem>>, vector<128x128xbf16>
    %cst_49 = arith.constant dense<0.000000e+00> : vector<16x128xf32>
    %99 = tpu.matmul %97, %98, %cst_49 {dimension_numbers = #tpu.dot_dimension_numbers<[1], [0], [0], [1], [0, 0, 1, 1], [], []>} : vector<16x128xbf16>, vector<128x128xbf16>, vector<16x128xf32> -> vector<16x128xf32>
    %c10 = arith.constant 10 : index
    %c0_50 = arith.constant 0 : index
    %100 = vector.load %arg7[%c10, %c0_50] : memref<16x1024xf32, #tpu.memory_space<vmem>>, vector<1x128xf32>
    %101 = vector.broadcast %100 : vector<1x128xf32> to vector<16x128xf32>
    %102 = arith.addf %99, %101 : vector<16x128xf32>
    %cst_51 = arith.constant 0.000000e+00 : f32
    %103 = vector.broadcast %cst_51 : f32 to vector<16x128xf32>
    %104 = arith.maximumf %102, %103 : vector<16x128xf32>
    %105 = arith.truncf %104 : vector<16x128xf32> to vector<16x128xbf16>
    %106 = tpu.concatenate %41, %105 in 1 : vector<16x128xbf16>, vector<16x128xbf16> -> vector<16x256xbf16>
    %c0_52 = arith.constant 0 : index
    %c512_53 = arith.constant 512 : index
    %107 = vector.load %arg5[%c0_52, %c512_53] : memref<256x640xbf16, #tpu.memory_space<vmem>>, vector<256x128xbf16>
    %cst_54 = arith.constant dense<0.000000e+00> : vector<16x128xf32>
    %108 = tpu.matmul %106, %107, %cst_54 {dimension_numbers = #tpu.dot_dimension_numbers<[1], [0], [0], [1], [0, 0, 1, 1], [], []>} : vector<16x256xbf16>, vector<256x128xbf16>, vector<16x128xf32> -> vector<16x128xf32>
    %c11 = arith.constant 11 : index
    %c0_55 = arith.constant 0 : index
    %109 = vector.load %arg7[%c11, %c0_55] : memref<16x1024xf32, #tpu.memory_space<vmem>>, vector<1x128xf32>
    %110 = vector.broadcast %109 : vector<1x128xf32> to vector<16x128xf32>
    %111 = arith.addf %108, %110 : vector<16x128xf32>
    %c0_56 = arith.constant 0 : index
    %c0_57 = arith.constant 0 : index
    %112 = vector.load %arg8[%c0_56, %c0_57] : memref<16x128xf32, #tpu.memory_space<vmem>>, vector<16x128xf32>
    tpu.vector_store %arg8[%c0_56, %c0_57], %111 {strides = array<i32>} : memref<16x128xf32, #tpu.memory_space<vmem>>, vector<16x128xf32>,
    return
  }
  func.func @transform_0(%arg0: i32) -> (i32, i32) {
    %c0_i32 = arith.constant 0 : i32
    %c0_i32_0 = arith.constant 0 : i32
    return %arg0, %c0_i32 : i32, i32
  }
  func.func @transform_1(%arg0: i32) -> (i32, i32) {
    %c0_i32 = arith.constant 0 : i32
    %c0_i32_0 = arith.constant 0 : i32
    %c0_i32_1 = arith.constant 0 : i32
    return %c0_i32, %c0_i32_0 : i32, i32
  }
  func.func @transform_2(%arg0: i32) -> (i32, i32) {
    %c0_i32 = arith.constant 0 : i32
    %c0_i32_0 = arith.constant 0 : i32
    %c0_i32_1 = arith.constant 0 : i32
    return %c0_i32, %c0_i32_0 : i32, i32
  }
  func.func @transform_3(%arg0: i32) -> (i32, i32) {
    %c0_i32 = arith.constant 0 : i32
    %c0_i32_0 = arith.constant 0 : i32
    %c0_i32_1 = arith.constant 0 : i32
    return %c0_i32, %c0_i32_0 : i32, i32
  }
  func.func @transform_4(%arg0: i32) -> (i32, i32) {
    %c0_i32 = arith.constant 0 : i32
    %c0_i32_0 = arith.constant 0 : i32
    %c0_i32_1 = arith.constant 0 : i32
    return %c0_i32, %c0_i32_0 : i32, i32
  }
  func.func @transform_5(%arg0: i32) -> (i32, i32) {
    %c0_i32 = arith.constant 0 : i32
    %c0_i32_0 = arith.constant 0 : i32
    %c0_i32_1 = arith.constant 0 : i32
    return %c0_i32, %c0_i32_0 : i32, i32
  }
  func.func @transform_6(%arg0: i32) -> (i32, i32) {
    %c0_i32 = arith.constant 0 : i32
    %c0_i32_0 = arith.constant 0 : i32
    %c0_i32_1 = arith.constant 0 : i32
    return %c0_i32, %c0_i32_0 : i32, i32
  }
  func.func @transform_7(%arg0: i32) -> (i32, i32) {
    %c0_i32 = arith.constant 0 : i32
    %c0_i32_0 = arith.constant 0 : i32
    return %arg0, %c0_i32 : i32, i32
  }
}

</mosaic_0001>

<llo_original>
// kernel: ultra_forward.1
$region0: #{ultra_forward.1}
  #allocation0 [shape = 'u32[]', space=smem, size = 0x4, offset = 0x4, fixed_abs, tag = 'smem constant byte address 0x4 - core index']
  #allocation1 [shape = 'u32[144,128]{1,0:T(1,128)}', space=vmem, size = 0x12000, scoped, tag = 'internal scratch']
  %s0 = inlined_call_operand.vmem [shape: bf16[16,640], index: 0, kind: input, shape index: {}]
  %s1 = inlined_call_operand.hbm [shape: bf16[640,1024], index: 1, kind: input, shape index: {}]
  %s2 = inlined_call_operand.hbm [shape: bf16[1024,512], index: 2, kind: input, shape index: {}]
  %s3 = inlined_call_operand.hbm [shape: bf16[512,256], index: 3, kind: input, shape index: {}]
  %s4 = inlined_call_operand.hbm [shape: bf16[256,640], index: 4, kind: input, shape index: {}]
  %s5 = inlined_call_operand.hbm [shape: bf16[128,1024], index: 5, kind: input, shape index: {}]
  %s6 = inlined_call_operand.hbm [shape: f32[16,1024], index: 6, kind: input, shape index: {}]
  %s7 = inlined_call_operand.vmem [shape: f32[16,128], index: 7, kind: output, shape index: {}]
  %s8 = sld [smem:[#allocation0]]
  $region62: #{ultra_forward.1} parent=0
    _
  %s10 = ssub.s32 1, %s8
  %s11 = scalar_select 0, %s10, %s8
  $region1: #{ultra_forward.1} parent=0
    #allocation2 [shape = 'u8[1310720]{0}', space=vmem, size = 0x140000, scoped, tag = 'input window, operand 1, single buffered']
    #allocation3 [shape = 's32[1]{0}', space=sflag, size = 0x4, scoped, tag = 'scoped memory for ultra_forward.1']
    #allocation4 [shape = 'u8[1048576]{0}', space=vmem, size = 0x100000, scoped, tag = 'input window, operand 2, single buffered']
    #allocation5 [shape = 's32[1]{0}', space=sflag, size = 0x4, scoped, tag = 'scoped memory for ultra_forward.1']
    #allocation6 [shape = 'u8[262144]{0}', space=vmem, size = 0x40000, scoped, tag = 'input window, operand 3, single buffered']
    #allocation7 [shape = 'u8[327680]{0}', space=vmem, size = 0x50000, scoped, tag = 'input window, operand 4, single buffered']
    #allocation8 [shape = 's32[1]{0}', space=sflag, size = 0x4, scoped, tag = 'scoped memory for ultra_forward.1']
    #allocation9 [shape = 'u8[262144]{0}', space=vmem, size = 0x40000, scoped, tag = 'input window, operand 5, single buffered']
    #allocation10 [shape = 'u8[65536]{0}', space=vmem, size = 0x10000, scoped, tag = 'input window, operand 6, single buffered']
    #allocation11 [shape = 's32[1]{0}', space=sflag, size = 0x4, scoped, tag = 'scoped memory for ultra_forward.1']
    %12 = vsyncpa [#allocation3], 0
    %13 = vsyncpa [#allocation5], 0
    %14 = vsyncpa [#allocation8], 0
    %15 = vsyncpa [#allocation11], 0
    // Predicated region
    $region2: #{ultra_forward.1} parent=1 // pred_check
      _
    $region3: #{ultra_forward.1} parent=1 // pred_check_branch
      %17 = sbr.rel (0) target = $region5
    $region4: #{ultra_forward.1} parent=1 // pred_region
      _
    $region5: #{ultra_forward.1} parent=1 // pred_fallthru
      _
    // Predicated region
    $region6: #{ultra_forward.1} parent=1 // pred_check
      _
    $region7: #{ultra_forward.1} parent=1 // pred_check_branch
      %19 = sbr.rel (0) target = $region9
    $region8: #{ultra_forward.1} parent=1 // pred_region
      %s21 = ssub.s32 40960, 40960
      %22 = vsyncadd [#allocation3], %s21
      %s23 = sshll.u32 [#allocation2], 4
      %s24 = int_to_ptr.vmem [resolvable:$true] %s23
      %29 = dma.hbm_to_vmem [thread:$0]  %s1, 40960, %s24, [#allocation3], 512, 512, 32
    $region9: #{ultra_forward.1} parent=1 // pred_fallthru
      _
    // Predicated region
    $region10: #{ultra_forward.1} parent=1 // pred_check
      _
    $region11: #{ultra_forward.1} parent=1 // pred_check_branch
      %31 = sbr.rel (0) target = $region13
    $region12: #{ultra_forward.1} parent=1 // pred_region
      %s33 = ssub.s32 32768, 32768
      %34 = vsyncadd [#allocation5], %s33
      %s35 = sshll.u32 [#allocation4], 4
      %s36 = int_to_ptr.vmem [resolvable:$true] %s35
      %41 = dma.hbm_to_vmem [thread:$0]  %s2, 32768, %s36, [#allocation5], 256, 256, 16
    $region13: #{ultra_forward.1} parent=1 // pred_fallthru
      _
    // Predicated region
    $region14: #{ultra_forward.1} parent=1 // pred_check
      _
    $region15: #{ultra_forward.1} parent=1 // pred_check_branch
      %43 = sbr.rel (0) target = $region17
    $region16: #{ultra_forward.1} parent=1 // pred_region
      %s45 = ssub.s32 8192, 8192
      %46 = vsyncadd [#allocation5], %s45
      %s47 = sshll.u32 [#allocation6], 4
      %s48 = int_to_ptr.vmem [resolvable:$true] %s47
      %53 = dma.hbm_to_vmem [thread:$0]  %s3, 8192, %s48, [#allocation5], 128, 128, 8
    $region17: #{ultra_forward.1} parent=1 // pred_fallthru
      _
    // Predicated region
    $region18: #{ultra_forward.1} parent=1 // pred_check
      _
    $region19: #{ultra_forward.1} parent=1 // pred_check_branch
      %55 = sbr.rel (0) target = $region21
    $region20: #{ultra_forward.1} parent=1 // pred_region
      %s57 = ssub.s32 10240, 10240
      %58 = vsyncadd [#allocation8], %s57
      %s59 = sshll.u32 [#allocation7], 4
      %s60 = int_to_ptr.vmem [resolvable:$true] %s59
      %65 = dma.hbm_to_vmem [thread:$0]  %s4, 10240, %s60, [#allocation8], 320, 320, 20
    $region21: #{ultra_forward.1} parent=1 // pred_fallthru
      _
    // Predicated region
    $region22: #{ultra_forward.1} parent=1 // pred_check
      _
    $region23: #{ultra_forward.1} parent=1 // pred_check_branch
      %67 = sbr.rel (0) target = $region25
    $region24: #{ultra_forward.1} parent=1 // pred_region
      %s69 = ssub.s32 8192, 8192
      %70 = vsyncadd [#allocation8], %s69
      %s71 = sshll.u32 [#allocation9], 4
      %s72 = int_to_ptr.vmem [resolvable:$true] %s71
      %77 = dma.hbm_to_vmem [thread:$0]  %s5, 8192, %s72, [#allocation8], 512, 512, 32
    $region25: #{ultra_forward.1} parent=1 // pred_fallthru
      _
    // Predicated region
    $region26: #{ultra_forward.1} parent=1 // pred_check
      _
    $region27: #{ultra_forward.1} parent=1 // pred_check_branch
      %79 = sbr.rel (0) target = $region29
    $region28: #{ultra_forward.1} parent=1 // pred_region
      %s81 = ssub.s32 2048, 2048
      %82 = vsyncadd [#allocation11], %s81
      %s83 = sshll.u32 [#allocation10], 4
      %s84 = int_to_ptr.vmem [resolvable:$true] %s83
      %89 = dma.hbm_to_vmem [thread:$0]  %s6, 2048, %s84, [#allocation11], 1024, 1024, 64
    $region29: #{ultra_forward.1} parent=1 // pred_fallthru
      _
    // Predicated region
    $region30: #{ultra_forward.1} parent=1 // pred_check
      _
    $region31: #{ultra_forward.1} parent=1 // pred_check_branch
      %91 = sbr.rel (0) target = $region33
    $region32: #{ultra_forward.1} parent=1 // pred_region
      %92 = dma.done [#allocation3], 40960
    $region33: #{ultra_forward.1} parent=1 // pred_fallthru
      _
    // Predicated region
    $region34: #{ultra_forward.1} parent=1 // pred_check
      _
    $region35: #{ultra_forward.1} parent=1 // pred_check_branch
      %94 = sbr.rel (0) target = $region37
    $region36: #{ultra_forward.1} parent=1 // pred_region
      %95 = dma.done [#allocation5], 32768
    $region37: #{ultra_forward.1} parent=1 // pred_fallthru
      _
    // Predicated region
    $region38: #{ultra_forward.1} parent=1 // pred_check
      _
    $region39: #{ultra_forward.1} parent=1 // pred_check_branch
      %97 = sbr.rel (0) target = $region41
    $region40: #{ultra_forward.1} parent=1 // pred_region
      %98 = dma.done [#allocation5], 8192
    $region41: #{ultra_forward.1} parent=1 // pred_fallthru
      _
    // Predicated region
    $region42: #{ultra_forward.1} parent=1 // pred_check
      _
    $region43: #{ultra_forward.1} parent=1 // pred_check_branch
      %100 = sbr.rel (0) target = $region45
    $region44: #{ultra_forward.1} parent=1 // pred_region
      %101 = dma.done [#allocation8], 10240
    $region45: #{ultra_forward.1} parent=1 // pred_fallthru
      _
    // Predicated region
    $region46: #{ultra_forward.1} parent=1 // pred_check
      _
    $region47: #{ultra_forward.1} parent=1 // pred_check_branch
      %103 = sbr.rel (0) target = $region49
    $region48: #{ultra_forward.1} parent=1 // pred_region
      %104 = dma.done [#allocation8], 8192
    $region49: #{ultra_forward.1} parent=1 // pred_fallthru
      _
    // Predicated region
    $region50: #{ultra_forward.1} parent=1 // pred_check
      _
    $region51: #{ultra_forward.1} parent=1 // pred_check_branch
      %106 = sbr.rel (0) target = $region53
    $region52: #{ultra_forward.1} parent=1 // pred_region
      %107 = dma.done [#allocation11], 2048
    $region53: #{ultra_forward.1} parent=1 // pred_fallthru
      _
    %v109 = vld [vmem:[%s0] sm:$0xff]
    %v110 = vld [vmem:[%s0 + $0x8] sm:$0xff]
    %v111 = vld [vmem:[%s0 + $0x10] sm:$0xf]
    %v112 = vld [vmem:[%s0 + $0x14] sm:$0xff]
    %v113 = vld [vmem:[%s0 + $0x1c] sm:$0xff]
    %v114 = vld [vmem:[%s0 + $0x24] sm:$0xf]
    %v115 = vld [vmem:[#allocation2] sm:$0xff]
    %v116 = vld [vmem:[#allocation2 + $0x8] sm:$0xff]
    %v117 = vld [vmem:[#allocation2 + $0x10] sm:$0xff]
    %v118 = vld [vmem:[#allocation2 + $0x18] sm:$0xff]
    %v119 = vld [vmem:[#allocation2 + $0x20] sm:$0xff]
    %v120 = vld [vmem:[#allocation2 + $0x28] sm:$0xff]
    %v121 = vld [vmem:[#allocation2 + $0x30] sm:$0xff]
    %v122 = vld [vmem:[#allocation2 + $0x38] sm:$0xff]
    %v123 = vld [vmem:[#allocation2 + $0x40] sm:$0xff]
    %v124 = vld [vmem:[#allocation2 + $0x48] sm:$0xff]
    %v125 = vld [vmem:[#allocation2 + $0x50] sm:$0xff]
    %v126 = vld [vmem:[#allocation2 + $0x58] sm:$0xff]
    %v127 = vld [vmem:[#allocation2 + $0x60] sm:$0xff]
    %v128 = vld [vmem:[#allocation2 + $0x68] sm:$0xff]
    %v129 = vld [vmem:[#allocation2 + $0x70] sm:$0xff]
    %v130 = vld [vmem:[#allocation2 + $0x78] sm:$0xff]
    %v131 = vld [vmem:[#allocation2 + $0x80] sm:$0xff]
    %v132 = vld [vmem:[#allocation2 + $0x88] sm:$0xff]
    %v133 = vld [vmem:[#allocation2 + $0x90] sm:$0xff]
    %v134 = vld [vmem:[#allocation2 + $0x98] sm:$0xff]
    %v135 = vld [vmem:[#allocation2 + $0xa0] sm:$0xff]
    %v136 = vld [vmem:[#allocation2 + $0xa8] sm:$0xff]
    %v137 = vld [vmem:[#allocation2 + $0xb0] sm:$0xff]
    %v138 = vld [vmem:[#allocation2 + $0xb8] sm:$0xff]
    %v139 = vld [vmem:[#allocation2 + $0xc0] sm:$0xff]
    %v140 = vld [vmem:[#allocation2 + $0xc8] sm:$0xff]
    %v141 = vld [vmem:[#allocation2 + $0xd0] sm:$0xff]
    %v142 = vld [vmem:[#allocation2 + $0xd8] sm:$0xff]
    %v143 = vld [vmem:[#allocation2 + $0xe0] sm:$0xff]
    %v144 = vld [vmem:[#allocation2 + $0xe8] sm:$0xff]
    %v145 = vld [vmem:[#allocation2 + $0xf0] sm:$0xff]
    %v146 = vld [vmem:[#allocation2 + $0xf8] sm:$0xff]
    %v147 = vld [vmem:[#allocation2 + $0x100] sm:$0xff]
    %v148 = vld [vmem:[#allocation2 + $0x108] sm:$0xff]
    %v149 = vld [vmem:[#allocation2 + $0x110] sm:$0xff]
    %v150 = vld [vmem:[#allocation2 + $0x118] sm:$0xff]
    %v151 = vld [vmem:[#allocation2 + $0x120] sm:$0xff]
    %v152 = vld [vmem:[#allocation2 + $0x128] sm:$0xff]
    %v153 = vld [vmem:[#allocation2 + $0x130] sm:$0xff]
    %v154 = vld [vmem:[#allocation2 + $0x138] sm:$0xff]
    %v155 = vld [vmem:[#allocation2 + $0x140] sm:$0xff]
    %v156 = vld [vmem:[#allocation2 + $0x148] sm:$0xff]
    %v157 = vld [vmem:[#allocation2 + $0x150] sm:$0xff]
    %v158 = vld [vmem:[#allocation2 + $0x158] sm:$0xff]
    %v159 = vld [vmem:[#allocation2 + $0x160] sm:$0xff]
    %v160 = vld [vmem:[#allocation2 + $0x168] sm:$0xff]
    %v161 = vld [vmem:[#allocation2 + $0x170] sm:$0xff]
    %v162 = vld [vmem:[#allocation2 + $0x178] sm:$0xff]
    %v163 = vld [vmem:[#allocation2 + $0x180] sm:$0xff]
    %v164 = vld [vmem:[#allocation2 + $0x188] sm:$0xff]
    %v165 = vld [vmem:[#allocation2 + $0x190] sm:$0xff]
    %v166 = vld [vmem:[#allocation2 + $0x198] sm:$0xff]
    %v167 = vld [vmem:[#allocation2 + $0x1a0] sm:$0xff]
    %v168 = vld [vmem:[#allocation2 + $0x1a8] sm:$0xff]
    %v169 = vld [vmem:[#allocation2 + $0x1b0] sm:$0xff]
    %v170 = vld [vmem:[#allocation2 + $0x1b8] sm:$0xff]
    %v171 = vld [vmem:[#allocation2 + $0x1c0] sm:$0xff]
    %v172 = vld [vmem:[#allocation2 + $0x1c8] sm:$0xff]
    %v173 = vld [vmem:[#allocation2 + $0x1d0] sm:$0xff]
    %v174 = vld [vmem:[#allocation2 + $0x1d8] sm:$0xff]
    %v175 = vld [vmem:[#allocation2 + $0x1e0] sm:$0xff]
    %v176 = vld [vmem:[#allocation2 + $0x1e8] sm:$0xff]
    %v177 = vld [vmem:[#allocation2 + $0x1f0] sm:$0xff]
    %v178 = vld [vmem:[#allocation2 + $0x1f8] sm:$0xff]
    %v179 = vld [vmem:[#allocation2 + $0x200] sm:$0xff]
    %v180 = vld [vmem:[#allocation2 + $0x208] sm:$0xff]
    %v181 = vld [vmem:[#allocation2 + $0x210] sm:$0xff]
    %v182 = vld [vmem:[#allocation2 + $0x218] sm:$0xff]
    %v183 = vld [vmem:[#allocation2 + $0x220] sm:$0xff]
    %v184 = vld [vmem:[#allocation2 + $0x228] sm:$0xff]
    %v185 = vld [vmem:[#allocation2 + $0x230] sm:$0xff]
    %v186 = vld [vmem:[#allocation2 + $0x238] sm:$0xff]
    %v187 = vld [vmem:[#allocation2 + $0x240] sm:$0xff]
    %v188 = vld [vmem:[#allocation2 + $0x248] sm:$0xff]
    %v189 = vld [vmem:[#allocation2 + $0x250] sm:$0xff]
    %v190 = vld [vmem:[#allocation2 + $0x258] sm:$0xff]
    %v191 = vld [vmem:[#allocation2 + $0x260] sm:$0xff]
    %v192 = vld [vmem:[#allocation2 + $0x268] sm:$0xff]
    %v193 = vld [vmem:[#allocation2 + $0x270] sm:$0xff]
    %v194 = vld [vmem:[#allocation2 + $0x278] sm:$0xff]
    %v195 = vld [vmem:[#allocation2 + $0x280] sm:$0xff]
    %v196 = vld [vmem:[#allocation2 + $0x288] sm:$0xff]
    %v197 = vld [vmem:[#allocation2 + $0x290] sm:$0xff]
    %v198 = vld [vmem:[#allocation2 + $0x298] sm:$0xff]
    %v199 = vld [vmem:[#allocation2 + $0x2a0] sm:$0xff]
    %v200 = vld [vmem:[#allocation2 + $0x2a8] sm:$0xff]
    %v201 = vld [vmem:[#allocation2 + $0x2b0] sm:$0xff]
    %v202 = vld [vmem:[#allocation2 + $0x2b8] sm:$0xff]
    %v203 = vld [vmem:[#allocation2 + $0x2c0] sm:$0xff]
    %v204 = vld [vmem:[#allocation2 + $0x2c8] sm:$0xff]
    %v205 = vld [vmem:[#allocation2 + $0x2d0] sm:$0xff]
    %v206 = vld [vmem:[#allocation2 + $0x2d8] sm:$0xff]
    %v207 = vld [vmem:[#allocation2 + $0x2e0] sm:$0xff]
    %v208 = vld [vmem:[#allocation2 + $0x2e8] sm:$0xff]
    %v209 = vld [vmem:[#allocation2 + $0x2f0] sm:$0xff]
    %v210 = vld [vmem:[#allocation2 + $0x2f8] sm:$0xff]
    %v211 = vld [vmem:[#allocation2 + $0x300] sm:$0xff]
    %v212 = vld [vmem:[#allocation2 + $0x308] sm:$0xff]
    %v213 = vld [vmem:[#allocation2 + $0x310] sm:$0xff]
    %v214 = vld [vmem:[#allocation2 + $0x318] sm:$0xff]
    %v215 = vld [vmem:[#allocation2 + $0x320] sm:$0xff]
    %v216 = vld [vmem:[#allocation2 + $0x328] sm:$0xff]
    %v217 = vld [vmem:[#allocation2 + $0x330] sm:$0xff]
    %v218 = vld [vmem:[#allocation2 + $0x338] sm:$0xff]
    %v219 = vld [vmem:[#allocation2 + $0x340] sm:$0xff]
    %v220 = vld [vmem:[#allocation2 + $0x348] sm:$0xff]
    %v221 = vld [vmem:[#allocation2 + $0x350] sm:$0xff]
    %v222 = vld [vmem:[#allocation2 + $0x358] sm:$0xff]
    %v223 = vld [vmem:[#allocation2 + $0x360] sm:$0xff]
    %v224 = vld [vmem:[#allocation2 + $0x368] sm:$0xff]
    %v225 = vld [vmem:[#allocation2 + $0x370] sm:$0xff]
    %v226 = vld [vmem:[#allocation2 + $0x378] sm:$0xff]
    %v227 = vld [vmem:[#allocation2 + $0x380] sm:$0xff]
    %v228 = vld [vmem:[#allocation2 + $0x388] sm:$0xff]
    %v229 = vld [vmem:[#allocation2 + $0x390] sm:$0xff]
    %v230 = vld [vmem:[#allocation2 + $0x398] sm:$0xff]
    %v231 = vld [vmem:[#allocation2 + $0x3a0] sm:$0xff]
    %v232 = vld [vmem:[#allocation2 + $0x3a8] sm:$0xff]
    %v233 = vld [vmem:[#allocation2 + $0x3b0] sm:$0xff]
    %v234 = vld [vmem:[#allocation2 + $0x3b8] sm:$0xff]
    %v235 = vld [vmem:[#allocation2 + $0x3c0] sm:$0xff]
    %v236 = vld [vmem:[#allocation2 + $0x3c8] sm:$0xff]
    %v237 = vld [vmem:[#allocation2 + $0x3d0] sm:$0xff]
    %v238 = vld [vmem:[#allocation2 + $0x3d8] sm:$0xff]
    %v239 = vld [vmem:[#allocation2 + $0x3e0] sm:$0xff]
    %v240 = vld [vmem:[#allocation2 + $0x3e8] sm:$0xff]
    %v241 = vld [vmem:[#allocation2 + $0x3f0] sm:$0xff]
    %v242 = vld [vmem:[#allocation2 + $0x3f8] sm:$0xff]
    %v243 = vld [vmem:[#allocation2 + $0x400] sm:$0xff]
    %v244 = vld [vmem:[#allocation2 + $0x408] sm:$0xff]
    %v245 = vld [vmem:[#allocation2 + $0x410] sm:$0xff]
    %v246 = vld [vmem:[#allocation2 + $0x418] sm:$0xff]
    %v247 = vld [vmem:[#allocation2 + $0x420] sm:$0xff]
    %v248 = vld [vmem:[#allocation2 + $0x428] sm:$0xff]
    %v249 = vld [vmem:[#allocation2 + $0x430] sm:$0xff]
    %v250 = vld [vmem:[#allocation2 + $0x438] sm:$0xff]
    %v251 = vld [vmem:[#allocation2 + $0x440] sm:$0xff]
    %v252 = vld [vmem:[#allocation2 + $0x448] sm:$0xff]
    %v253 = vld [vmem:[#allocation2 + $0x450] sm:$0xff]
    %v254 = vld [vmem:[#allocation2 + $0x458] sm:$0xff]
    %v255 = vld [vmem:[#allocation2 + $0x460] sm:$0xff]
    %v256 = vld [vmem:[#allocation2 + $0x468] sm:$0xff]
    %v257 = vld [vmem:[#allocation2 + $0x470] sm:$0xff]
    %v258 = vld [vmem:[#allocation2 + $0x478] sm:$0xff]
    %v259 = vld [vmem:[#allocation2 + $0x480] sm:$0xff]
    %v260 = vld [vmem:[#allocation2 + $0x488] sm:$0xff]
    %v261 = vld [vmem:[#allocation2 + $0x490] sm:$0xff]
    %v262 = vld [vmem:[#allocation2 + $0x498] sm:$0xff]
    %v263 = vld [vmem:[#allocation2 + $0x4a0] sm:$0xff]
    %v264 = vld [vmem:[#allocation2 + $0x4a8] sm:$0xff]
    %v265 = vld [vmem:[#allocation2 + $0x4b0] sm:$0xff]
    %v266 = vld [vmem:[#allocation2 + $0x4b8] sm:$0xff]
    %v267 = vld [vmem:[#allocation2 + $0x4c0] sm:$0xff]
    %v268 = vld [vmem:[#allocation2 + $0x4c8] sm:$0xff]
    %v269 = vld [vmem:[#allocation2 + $0x4d0] sm:$0xff]
    %v270 = vld [vmem:[#allocation2 + $0x4d8] sm:$0xff]
    %v271 = vld [vmem:[#allocation2 + $0x4e0] sm:$0xff]
    %v272 = vld [vmem:[#allocation2 + $0x4e8] sm:$0xff]
    %v273 = vld [vmem:[#allocation2 + $0x4f0] sm:$0xff]
    %v274 = vld [vmem:[#allocation2 + $0x4f8] sm:$0xff]
    %v275 = vld [vmem:[#allocation2 + $0x500] sm:$0xff]
    %v276 = vld [vmem:[#allocation2 + $0x508] sm:$0xff]
    %v277 = vld [vmem:[#allocation2 + $0x510] sm:$0xff]
    %v278 = vld [vmem:[#allocation2 + $0x518] sm:$0xff]
    %v279 = vld [vmem:[#allocation2 + $0x520] sm:$0xff]
    %v280 = vld [vmem:[#allocation2 + $0x528] sm:$0xff]
    %v281 = vld [vmem:[#allocation2 + $0x530] sm:$0xff]
    %v282 = vld [vmem:[#allocation2 + $0x538] sm:$0xff]
    %v283 = vld [vmem:[#allocation2 + $0x540] sm:$0xff]
    %v284 = vld [vmem:[#allocation2 + $0x548] sm:$0xff]
    %v285 = vld [vmem:[#allocation2 + $0x550] sm:$0xff]
    %v286 = vld [vmem:[#allocation2 + $0x558] sm:$0xff]
    %v287 = vld [vmem:[#allocation2 + $0x560] sm:$0xff]
    %v288 = vld [vmem:[#allocation2 + $0x568] sm:$0xff]
    %v289 = vld [vmem:[#allocation2 + $0x570] sm:$0xff]
    %v290 = vld [vmem:[#allocation2 + $0x578] sm:$0xff]
    %v291 = vld [vmem:[#allocation2 + $0x580] sm:$0xff]
    %v292 = vld [vmem:[#allocation2 + $0x588] sm:$0xff]
    %v293 = vld [vmem:[#allocation2 + $0x590] sm:$0xff]
    %v294 = vld [vmem:[#allocation2 + $0x598] sm:$0xff]
    %v295 = vld [vmem:[#allocation2 + $0x5a0] sm:$0xff]
    %v296 = vld [vmem:[#allocation2 + $0x5a8] sm:$0xff]
    %v297 = vld [vmem:[#allocation2 + $0x5b0] sm:$0xff]
    %v298 = vld [vmem:[#allocation2 + $0x5b8] sm:$0xff]
    %v299 = vld [vmem:[#allocation2 + $0x5c0] sm:$0xff]
    %v300 = vld [vmem:[#allocation2 + $0x5c8] sm:$0xff]
    %v301 = vld [vmem:[#allocation2 + $0x5d0] sm:$0xff]
    %v302 = vld [vmem:[#allocation2 + $0x5d8] sm:$0xff]
    %v303 = vld [vmem:[#allocation2 + $0x5e0] sm:$0xff]
    %v304 = vld [vmem:[#allocation2 + $0x5e8] sm:$0xff]
    %v305 = vld [vmem:[#allocation2 + $0x5f0] sm:$0xff]
    %v306 = vld [vmem:[#allocation2 + $0x5f8] sm:$0xff]
    %v307 = vld [vmem:[#allocation2 + $0x600] sm:$0xff]
    %v308 = vld [vmem:[#allocation2 + $0x608] sm:$0xff]
    %v309 = vld [vmem:[#allocation2 + $0x610] sm:$0xff]
    %v310 = vld [vmem:[#allocation2 + $0x618] sm:$0xff]
    %v311 = vld [vmem:[#allocation2 + $0x620] sm:$0xff]
    %v312 = vld [vmem:[#allocation2 + $0x628] sm:$0xff]
    %v313 = vld [vmem:[#allocation2 + $0x630] sm:$0xff]
    %v314 = vld [vmem:[#allocation2 + $0x638] sm:$0xff]
    %v315 = vld [vmem:[#allocation2 + $0x640] sm:$0xff]
    %v316 = vld [vmem:[#allocation2 + $0x648] sm:$0xff]
    %v317 = vld [vmem:[#allocation2 + $0x650] sm:$0xff]
    %v318 = vld [vmem:[#allocation2 + $0x658] sm:$0xff]
    %v319 = vld [vmem:[#allocation2 + $0x660] sm:$0xff]
    %v320 = vld [vmem:[#allocation2 + $0x668] sm:$0xff]
    %v321 = vld [vmem:[#allocation2 + $0x670] sm:$0xff]
    %v322 = vld [vmem:[#allocation2 + $0x678] sm:$0xff]
    %v323 = vld [vmem:[#allocation2 + $0x680] sm:$0xff]
    %v324 = vld [vmem:[#allocation2 + $0x688] sm:$0xff]
    %v325 = vld [vmem:[#allocation2 + $0x690] sm:$0xff]
    %v326 = vld [vmem:[#allocation2 + $0x698] sm:$0xff]
    %v327 = vld [vmem:[#allocation2 + $0x6a0] sm:$0xff]
    %v328 = vld [vmem:[#allocation2 + $0x6a8] sm:$0xff]
    %v329 = vld [vmem:[#allocation2 + $0x6b0] sm:$0xff]
    %v330 = vld [vmem:[#allocation2 + $0x6b8] sm:$0xff]
    %v331 = vld [vmem:[#allocation2 + $0x6c0] sm:$0xff]
    %v332 = vld [vmem:[#allocation2 + $0x6c8] sm:$0xff]
    %v333 = vld [vmem:[#allocation2 + $0x6d0] sm:$0xff]
    %v334 = vld [vmem:[#allocation2 + $0x6d8] sm:$0xff]
    %v335 = vld [vmem:[#allocation2 + $0x6e0] sm:$0xff]
    %v336 = vld [vmem:[#allocation2 + $0x6e8] sm:$0xff]
    %v337 = vld [vmem:[#allocation2 + $0x6f0] sm:$0xff]
    %v338 = vld [vmem:[#allocation2 + $0x6f8] sm:$0xff]
    %v339 = vld [vmem:[#allocation2 + $0x700] sm:$0xff]
    %v340 = vld [vmem:[#allocation2 + $0x708] sm:$0xff]
    %v341 = vld [vmem:[#allocation2 + $0x710] sm:$0xff]
    %v342 = vld [vmem:[#allocation2 + $0x718] sm:$0xff]
    %v343 = vld [vmem:[#allocation2 + $0x720] sm:$0xff]
    %v344 = vld [vmem:[#allocation2 + $0x728] sm:$0xff]
    %v345 = vld [vmem:[#allocation2 + $0x730] sm:$0xff]
    %v346 = vld [vmem:[#allocation2 + $0x738] sm:$0xff]
    %v347 = vld [vmem:[#allocation2 + $0x740] sm:$0xff]
    %v348 = vld [vmem:[#allocation2 + $0x748] sm:$0xff]
    %v349 = vld [vmem:[#allocation2 + $0x750] sm:$0xff]
    %v350 = vld [vmem:[#allocation2 + $0x758] sm:$0xff]
    %v351 = vld [vmem:[#allocation2 + $0x760] sm:$0xff]
    %v352 = vld [vmem:[#allocation2 + $0x768] sm:$0xff]
    %v353 = vld [vmem:[#allocation2 + $0x770] sm:$0xff]
    %v354 = vld [vmem:[#allocation2 + $0x778] sm:$0xff]
    %v355 = vld [vmem:[#allocation2 + $0x780] sm:$0xff]
    %v356 = vld [vmem:[#allocation2 + $0x788] sm:$0xff]
    %v357 = vld [vmem:[#allocation2 + $0x790] sm:$0xff]
    %v358 = vld [vmem:[#allocation2 + $0x798] sm:$0xff]
    %v359 = vld [vmem:[#allocation2 + $0x7a0] sm:$0xff]
    %v360 = vld [vmem:[#allocation2 + $0x7a8] sm:$0xff]
    %v361 = vld [vmem:[#allocation2 + $0x7b0] sm:$0xff]
    %v362 = vld [vmem:[#allocation2 + $0x7b8] sm:$0xff]
    %v363 = vld [vmem:[#allocation2 + $0x7c0] sm:$0xff]
    %v364 = vld [vmem:[#allocation2 + $0x7c8] sm:$0xff]
    %v365 = vld [vmem:[#allocation2 + $0x7d0] sm:$0xff]
    %v366 = vld [vmem:[#allocation2 + $0x7d8] sm:$0xff]
    %v367 = vld [vmem:[#allocation2 + $0x7e0] sm:$0xff]
    %v368 = vld [vmem:[#allocation2 + $0x7e8] sm:$0xff]
    %v369 = vld [vmem:[#allocation2 + $0x7f0] sm:$0xff]
    %v370 = vld [vmem:[#allocation2 + $0x7f8] sm:$0xff]
    %v371 = vld [vmem:[#allocation2 + $0x800] sm:$0xff]
    %v372 = vld [vmem:[#allocation2 + $0x808] sm:$0xff]
    %v373 = vld [vmem:[#allocation2 + $0x810] sm:$0xff]
    %v374 = vld [vmem:[#allocation2 + $0x818] sm:$0xff]
    %v375 = vld [vmem:[#allocation2 + $0x820] sm:$0xff]
    %v376 = vld [vmem:[#allocation2 + $0x828] sm:$0xff]
    %v377 = vld [vmem:[#allocation2 + $0x830] sm:$0xff]
    %v378 = vld [vmem:[#allocation2 + $0x838] sm:$0xff]
    %v379 = vld [vmem:[#allocation2 + $0x840] sm:$0xff]
    %v380 = vld [vmem:[#allocation2 + $0x848] sm:$0xff]
    %v381 = vld [vmem:[#allocation2 + $0x850] sm:$0xff]
    %v382 = vld [vmem:[#allocation2 + $0x858] sm:$0xff]
    %v383 = vld [vmem:[#allocation2 + $0x860] sm:$0xff]
    %v384 = vld [vmem:[#allocation2 + $0x868] sm:$0xff]
    %v385 = vld [vmem:[#allocation2 + $0x870] sm:$0xff]
    %v386 = vld [vmem:[#allocation2 + $0x878] sm:$0xff]
    %v387 = vld [vmem:[#allocation2 + $0x880] sm:$0xff]
    %v388 = vld [vmem:[#allocation2 + $0x888] sm:$0xff]
    %v389 = vld [vmem:[#allocation2 + $0x890] sm:$0xff]
    %v390 = vld [vmem:[#allocation2 + $0x898] sm:$0xff]
    %v391 = vld [vmem:[#allocation2 + $0x8a0] sm:$0xff]
    %v392 = vld [vmem:[#allocation2 + $0x8a8] sm:$0xff]
    %v393 = vld [vmem:[#allocation2 + $0x8b0] sm:$0xff]
    %v394 = vld [vmem:[#allocation2 + $0x8b8] sm:$0xff]
    %v395 = vld [vmem:[#allocation2 + $0x8c0] sm:$0xff]
    %v396 = vld [vmem:[#allocation2 + $0x8c8] sm:$0xff]
    %v397 = vld [vmem:[#allocation2 + $0x8d0] sm:$0xff]
    %v398 = vld [vmem:[#allocation2 + $0x8d8] sm:$0xff]
    %v399 = vld [vmem:[#allocation2 + $0x8e0] sm:$0xff]
    %v400 = vld [vmem:[#allocation2 + $0x8e8] sm:$0xff]
    %v401 = vld [vmem:[#allocation2 + $0x8f0] sm:$0xff]
    %v402 = vld [vmem:[#allocation2 + $0x8f8] sm:$0xff]
    %v403 = vld [vmem:[#allocation2 + $0x900] sm:$0xff]
    %v404 = vld [vmem:[#allocation2 + $0x908] sm:$0xff]
    %v405 = vld [vmem:[#allocation2 + $0x910] sm:$0xff]
    %v406 = vld [vmem:[#allocation2 + $0x918] sm:$0xff]
    %v407 = vld [vmem:[#allocation2 + $0x920] sm:$0xff]
    %v408 = vld [vmem:[#allocation2 + $0x928] sm:$0xff]
    %v409 = vld [vmem:[#allocation2 + $0x930] sm:$0xff]
    %v410 = vld [vmem:[#allocation2 + $0x938] sm:$0xff]
    %v411 = vld [vmem:[#allocation2 + $0x940] sm:$0xff]
    %v412 = vld [vmem:[#allocation2 + $0x948] sm:$0xff]
    %v413 = vld [vmem:[#allocation2 + $0x950] sm:$0xff]
    %v414 = vld [vmem:[#allocation2 + $0x958] sm:$0xff]
    %v415 = vld [vmem:[#allocation2 + $0x960] sm:$0xff]
    %v416 = vld [vmem:[#allocation2 + $0x968] sm:$0xff]
    %v417 = vld [vmem:[#allocation2 + $0x970] sm:$0xff]
    %v418 = vld [vmem:[#allocation2 + $0x978] sm:$0xff]
    %v419 = vld [vmem:[#allocation2 + $0x980] sm:$0xff]
    %v420 = vld [vmem:[#allocation2 + $0x988] sm:$0xff]
    %v421 = vld [vmem:[#allocation2 + $0x990] sm:$0xff]
    %v422 = vld [vmem:[#allocation2 + $0x998] sm:$0xff]
    %v423 = vld [vmem:[#allocation2 + $0x9a0] sm:$0xff]
    %v424 = vld [vmem:[#allocation2 + $0x9a8] sm:$0xff]
    %v425 = vld [vmem:[#allocation2 + $0x9b0] sm:$0xff]
    %v426 = vld [vmem:[#allocation2 + $0x9b8] sm:$0xff]
    %v427 = vld [vmem:[#allocation2 + $0x9c0] sm:$0xff]
    %v428 = vld [vmem:[#allocation2 + $0x9c8] sm:$0xff]
    %v429 = vld [vmem:[#allocation2 + $0x9d0] sm:$0xff]
    %v430 = vld [vmem:[#allocation2 + $0x9d8] sm:$0xff]
    %v431 = vld [vmem:[#allocation2 + $0x9e0] sm:$0xff]
    %v432 = vld [vmem:[#allocation2 + $0x9e8] sm:$0xff]
    %v433 = vld [vmem:[#allocation2 + $0x9f0] sm:$0xff]
    %v434 = vld [vmem:[#allocation2 + $0x9f8] sm:$0xff]
    %v435 = vld [vmem:[#allocation10] ss:$8 sm:$0xf]
    %v436 = vld [vmem:[#allocation10] ss:$8 sm:$0xf0]
    %v437 = vor.u32 %v435, %v436
    %v439 = vlaneseq
    %v440 = vshrl.u32 %v439, 7
    %v441 = vsub.s32 0, %v440
    %v442 = vrot.slane %v437, %v441
    %v443 = vlaneseq
    %v444 = vshrl.u32 %v443, 7
    %v445 = vsub.s32 1, %v444
    %v446 = vrot.slane %v437, %v445
    %v447 = vlaneseq
    %v448 = vshrl.u32 %v447, 7
    %v449 = vsub.s32 2, %v448
    %v450 = vrot.slane %v437, %v449
    %v451 = vlaneseq
    %v452 = vshrl.u32 %v451, 7
    %v453 = vsub.s32 3, %v452
    %v454 = vrot.slane %v437, %v453
    %v455 = vlaneseq
    %v456 = vshrl.u32 %v455, 7
    %v457 = vsub.s32 4, %v456
    %v458 = vrot.slane %v437, %v457
    %v459 = vlaneseq
    %v460 = vshrl.u32 %v459, 7
    %v461 = vsub.s32 5, %v460
    %v462 = vrot.slane %v437, %v461
    %v463 = vlaneseq
    %v464 = vshrl.u32 %v463, 7
    %v465 = vsub.s32 6, %v464
    %v466 = vrot.slane %v437, %v465
    %v467 = vlaneseq
    %v468 = vshrl.u32 %v467, 7
    %v469 = vsub.s32 7, %v468
    %v470 = vrot.slane %v437, %v469
    %v485 = vunpack.c.l.b16 %v109
    %v486 = vunpack.c.h.b16 %v109
    %v487 = vunpack.c.l.b16 %v110
    %v488 = vunpack.c.h.b16 %v110
    %v489 = vunpack.c.l.b16 %v111
    %v490 = vunpack.c.l.b16 %v112
    %v491 = vunpack.c.h.b16 %v112
    %v492 = vunpack.c.l.b16 %v113
    %v493 = vunpack.c.h.b16 %v113
    %v494 = vunpack.c.l.b16 %v114
    %v495 = vpack.c.b16 %v490, %v485
    %v496 = vpack.c.b16 %v491, %v486
    %v497 = vpack.c.b16 %v492, %v487
    %v498 = vpack.c.b16 %v493, %v488
    %v499 = vpack.c.b16 %v494, %v489
    %v825 = vunpack.c.l.b16 %v115
    %v826 = vunpack.c.h.b16 %v115
    %v827 = vunpack.c.l.b16 %v116
    %v828 = vunpack.c.h.b16 %v116
    %v829 = vunpack.c.l.b16 %v117
    %v830 = vunpack.c.h.b16 %v117
    %v831 = vunpack.c.l.b16 %v118
    %v832 = vunpack.c.h.b16 %v118
    %v833 = vunpack.c.l.b16 %v119
    %v834 = vunpack.c.h.b16 %v119
    %v835 = vunpack.c.l.b16 %v120
    %v836 = vunpack.c.h.b16 %v120
    %v837 = vunpack.c.l.b16 %v121
    %v838 = vunpack.c.h.b16 %v121
    %v839 = vunpack.c.l.b16 %v122
    %v840 = vunpack.c.h.b16 %v122
    %v841 = vunpack.c.l.b16 %v123
    %v842 = vunpack.c.h.b16 %v123
    %v843 = vunpack.c.l.b16 %v124
    %v844 = vunpack.c.h.b16 %v124
    %v845 = vunpack.c.l.b16 %v125
    %v846 = vunpack.c.h.b16 %v125
    %v847 = vunpack.c.l.b16 %v126
    %v848 = vunpack.c.h.b16 %v126
    %v849 = vunpack.c.l.b16 %v127
    %v850 = vunpack.c.h.b16 %v127
    %v851 = vunpack.c.l.b16 %v128
    %v852 = vunpack.c.h.b16 %v128
    %v853 = vunpack.c.l.b16 %v129
    %v854 = vunpack.c.h.b16 %v129
    %v855 = vunpack.c.l.b16 %v130
    %v856 = vunpack.c.h.b16 %v130
    %v857 = vunpack.c.l.b16 %v131
    %v858 = vunpack.c.h.b16 %v131
    %v859 = vunpack.c.l.b16 %v132
    %v860 = vunpack.c.h.b16 %v132
    %v861 = vunpack.c.l.b16 %v133
    %v862 = vunpack.c.h.b16 %v133
    %v863 = vunpack.c.l.b16 %v134
    %v864 = vunpack.c.h.b16 %v134
    %v865 = vunpack.c.l.b16 %v135
    %v866 = vunpack.c.h.b16 %v135
    %v867 = vunpack.c.l.b16 %v136
    %v868 = vunpack.c.h.b16 %v136
    %v869 = vunpack.c.l.b16 %v137
    %v870 = vunpack.c.h.b16 %v137
    %v871 = vunpack.c.l.b16 %v138
    %v872 = vunpack.c.h.b16 %v138
    %v873 = vunpack.c.l.b16 %v139
    %v874 = vunpack.c.h.b16 %v139
    %v875 = vunpack.c.l.b16 %v140
    %v876 = vunpack.c.h.b16 %v140
    %v877 = vunpack.c.l.b16 %v141
    %v878 = vunpack.c.h.b16 %v141
    %v879 = vunpack.c.l.b16 %v142
    %v880 = vunpack.c.h.b16 %v142
    %v881 = vunpack.c.l.b16 %v143
    %v882 = vunpack.c.h.b16 %v143
    %v883 = vunpack.c.l.b16 %v144
    %v884 = vunpack.c.h.b16 %v144
    %v885 = vunpack.c.l.b16 %v145
    %v886 = vunpack.c.h.b16 %v145
    %v887 = vunpack.c.l.b16 %v146
    %v888 = vunpack.c.h.b16 %v146
    %v889 = vunpack.c.l.b16 %v147
    %v890 = vunpack.c.h.b16 %v147
    %v891 = vunpack.c.l.b16 %v148
    %v892 = vunpack.c.h.b16 %v148
    %v893 = vunpack.c.l.b16 %v149
    %v894 = vunpack.c.h.b16 %v149
    %v895 = vunpack.c.l.b16 %v150
    %v896 = vunpack.c.h.b16 %v150
    %v897 = vunpack.c.l.b16 %v151
    %v898 = vunpack.c.h.b16 %v151
    %v899 = vunpack.c.l.b16 %v152
    %v900 = vunpack.c.h.b16 %v152
    %v901 = vunpack.c.l.b16 %v153
    %v902 = vunpack.c.h.b16 %v153
    %v903 = vunpack.c.l.b16 %v154
    %v904 = vunpack.c.h.b16 %v154
    %v905 = vunpack.c.l.b16 %v155
    %v906 = vunpack.c.h.b16 %v155
    %v907 = vunpack.c.l.b16 %v156
    %v908 = vunpack.c.h.b16 %v156
    %v909 = vunpack.c.l.b16 %v157
    %v910 = vunpack.c.h.b16 %v157
    %v911 = vunpack.c.l.b16 %v158
    %v912 = vunpack.c.h.b16 %v158
    %v913 = vunpack.c.l.b16 %v159
    %v914 = vunpack.c.h.b16 %v159
    %v915 = vunpack.c.l.b16 %v160
    %v916 = vunpack.c.h.b16 %v160
    %v917 = vunpack.c.l.b16 %v161
    %v918 = vunpack.c.h.b16 %v161
    %v919 = vunpack.c.l.b16 %v162
    %v920 = vunpack.c.h.b16 %v162
    %v921 = vunpack.c.l.b16 %v163
    %v922 = vunpack.c.h.b16 %v163
    %v923 = vunpack.c.l.b16 %v164
    %v924 = vunpack.c.h.b16 %v164
    %v925 = vunpack.c.l.b16 %v165
    %v926 = vunpack.c.h.b16 %v165
    %v927 = vunpack.c.l.b16 %v166
    %v928 = vunpack.c.h.b16 %v166
    %v929 = vunpack.c.l.b16 %v167
    %v930 = vunpack.c.h.b16 %v167
    %v931 = vunpack.c.l.b16 %v168
    %v932 = vunpack.c.h.b16 %v168
    %v933 = vunpack.c.l.b16 %v169
    %v934 = vunpack.c.h.b16 %v169
    %v935 = vunpack.c.l.b16 %v170
    %v936 = vunpack.c.h.b16 %v170
    %v937 = vunpack.c.l.b16 %v171
    %v938 = vunpack.c.h.b16 %v171
    %v939 = vunpack.c.l.b16 %v172
    %v940 = vunpack.c.h.b16 %v172
    %v941 = vunpack.c.l.b16 %v173
    %v942 = vunpack.c.h.b16 %v173
    %v943 = vunpack.c.l.b16 %v174
    %v944 = vunpack.c.h.b16 %v174
    %v945 = vunpack.c.l.b16 %v175
    %v946 = vunpack.c.h.b16 %v175
    %v947 = vunpack.c.l.b16 %v176
    %v948 = vunpack.c.h.b16 %v176
    %v949 = vunpack.c.l.b16 %v177
    %v950 = vunpack.c.h.b16 %v177
    %v951 = vunpack.c.l.b16 %v178
    %v952 = vunpack.c.h.b16 %v178
    %v953 = vunpack.c.l.b16 %v179
    %v954 = vunpack.c.h.b16 %v179
    %v955 = vunpack.c.l.b16 %v180
    %v956 = vunpack.c.h.b16 %v180
    %v957 = vunpack.c.l.b16 %v181
    %v958 = vunpack.c.h.b16 %v181
    %v959 = vunpack.c.l.b16 %v182
    %v960 = vunpack.c.h.b16 %v182
    %v961 = vunpack.c.l.b16 %v183
    %v962 = vunpack.c.h.b16 %v183
    %v963 = vunpack.c.l.b16 %v184
    %v964 = vunpack.c.h.b16 %v184
    %v965 = vunpack.c.l.b16 %v185
    %v966 = vunpack.c.h.b16 %v185
    %v967 = vunpack.c.l.b16 %v186
    %v968 = vunpack.c.h.b16 %v186
    %v969 = vunpack.c.l.b16 %v187
    %v970 = vunpack.c.h.b16 %v187
    %v971 = vunpack.c.l.b16 %v188
    %v972 = vunpack.c.h.b16 %v188
    %v973 = vunpack.c.l.b16 %v189
    %v974 = vunpack.c.h.b16 %v189
    %v975 = vunpack.c.l.b16 %v190
    %v976 = vunpack.c.h.b16 %v190
    %v977 = vunpack.c.l.b16 %v191
    %v978 = vunpack.c.h.b16 %v191
    %v979 = vunpack.c.l.b16 %v192
    %v980 = vunpack.c.h.b16 %v192
    %v981 = vunpack.c.l.b16 %v193
    %v982 = vunpack.c.h.b16 %v193
    %v983 = vunpack.c.l.b16 %v194
    %v984 = vunpack.c.h.b16 %v194
    %v985 = vunpack.c.l.b16 %v195
    %v986 = vunpack.c.h.b16 %v195
    %v987 = vunpack.c.l.b16 %v196
    %v988 = vunpack.c.h.b16 %v196
    %v989 = vunpack.c.l.b16 %v197
    %v990 = vunpack.c.h.b16 %v197
    %v991 = vunpack.c.l.b16 %v198
    %v992 = vunpack.c.h.b16 %v198
    %v993 = vunpack.c.l.b16 %v199
    %v994 = vunpack.c.h.b16 %v199
    %v995 = vunpack.c.l.b16 %v200
    %v996 = vunpack.c.h.b16 %v200
    %v997 = vunpack.c.l.b16 %v201
    %v998 = vunpack.c.h.b16 %v201
    %v999 = vunpack.c.l.b16 %v202
    %v1000 = vunpack.c.h.b16 %v202
    %v1001 = vunpack.c.l.b16 %v203
    %v1002 = vunpack.c.h.b16 %v203
    %v1003 = vunpack.c.l.b16 %v204
    %v1004 = vunpack.c.h.b16 %v204
    %v1005 = vunpack.c.l.b16 %v205
    %v1006 = vunpack.c.h.b16 %v205
    %v1007 = vunpack.c.l.b16 %v206
    %v1008 = vunpack.c.h.b16 %v206
    %v1009 = vunpack.c.l.b16 %v207
    %v1010 = vunpack.c.h.b16 %v207
    %v1011 = vunpack.c.l.b16 %v208
    %v1012 = vunpack.c.h.b16 %v208
    %v1013 = vunpack.c.l.b16 %v209
    %v1014 = vunpack.c.h.b16 %v209
    %v1015 = vunpack.c.l.b16 %v210
    %v1016 = vunpack.c.h.b16 %v210
    %v1017 = vunpack.c.l.b16 %v211
    %v1018 = vunpack.c.h.b16 %v211
    %v1019 = vunpack.c.l.b16 %v212
    %v1020 = vunpack.c.h.b16 %v212
    %v1021 = vunpack.c.l.b16 %v213
    %v1022 = vunpack.c.h.b16 %v213
    %v1023 = vunpack.c.l.b16 %v214
    %v1024 = vunpack.c.h.b16 %v214
    %v1025 = vunpack.c.l.b16 %v215
    %v1026 = vunpack.c.h.b16 %v215
    %v1027 = vunpack.c.l.b16 %v216
    %v1028 = vunpack.c.h.b16 %v216
    %v1029 = vunpack.c.l.b16 %v217
    %v1030 = vunpack.c.h.b16 %v217
    %v1031 = vunpack.c.l.b16 %v218
    %v1032 = vunpack.c.h.b16 %v218
    %v1033 = vunpack.c.l.b16 %v219
    %v1034 = vunpack.c.h.b16 %v219
    %v1035 = vunpack.c.l.b16 %v220
    %v1036 = vunpack.c.h.b16 %v220
    %v1037 = vunpack.c.l.b16 %v221
    %v1038 = vunpack.c.h.b16 %v221
    %v1039 = vunpack.c.l.b16 %v222
    %v1040 = vunpack.c.h.b16 %v222
    %v1041 = vunpack.c.l.b16 %v223
    %v1042 = vunpack.c.h.b16 %v223
    %v1043 = vunpack.c.l.b16 %v224
    %v1044 = vunpack.c.h.b16 %v224
    %v1045 = vunpack.c.l.b16 %v225
    %v1046 = vunpack.c.h.b16 %v225
    %v1047 = vunpack.c.l.b16 %v226
    %v1048 = vunpack.c.h.b16 %v226
    %v1049 = vunpack.c.l.b16 %v227
    %v1050 = vunpack.c.h.b16 %v227
    %v1051 = vunpack.c.l.b16 %v228
    %v1052 = vunpack.c.h.b16 %v228
    %v1053 = vunpack.c.l.b16 %v229
    %v1054 = vunpack.c.h.b16 %v229
    %v1055 = vunpack.c.l.b16 %v230
    %v1056 = vunpack.c.h.b16 %v230
    %v1057 = vunpack.c.l.b16 %v231
    %v1058 = vunpack.c.h.b16 %v231
    %v1059 = vunpack.c.l.b16 %v232
    %v1060 = vunpack.c.h.b16 %v232
    %v1061 = vunpack.c.l.b16 %v233
    %v1062 = vunpack.c.h.b16 %v233
    %v1063 = vunpack.c.l.b16 %v234
    %v1064 = vunpack.c.h.b16 %v234
    %v1065 = vunpack.c.l.b16 %v235
    %v1066 = vunpack.c.h.b16 %v235
    %v1067 = vunpack.c.l.b16 %v236
    %v1068 = vunpack.c.h.b16 %v236
    %v1069 = vunpack.c.l.b16 %v237
    %v1070 = vunpack.c.h.b16 %v237
    %v1071 = vunpack.c.l.b16 %v238
    %v1072 = vunpack.c.h.b16 %v238
    %v1073 = vunpack.c.l.b16 %v239
    %v1074 = vunpack.c.h.b16 %v239
    %v1075 = vunpack.c.l.b16 %v240
    %v1076 = vunpack.c.h.b16 %v240
    %v1077 = vunpack.c.l.b16 %v241
    %v1078 = vunpack.c.h.b16 %v241
    %v1079 = vunpack.c.l.b16 %v242
    %v1080 = vunpack.c.h.b16 %v242
    %v1081 = vunpack.c.l.b16 %v243
    %v1082 = vunpack.c.h.b16 %v243
    %v1083 = vunpack.c.l.b16 %v244
    %v1084 = vunpack.c.h.b16 %v244
    %v1085 = vunpack.c.l.b16 %v245
    %v1086 = vunpack.c.h.b16 %v245
    %v1087 = vunpack.c.l.b16 %v246
    %v1088 = vunpack.c.h.b16 %v246
    %v1089 = vunpack.c.l.b16 %v247
    %v1090 = vunpack.c.h.b16 %v247
    %v1091 = vunpack.c.l.b16 %v248
    %v1092 = vunpack.c.h.b16 %v248
    %v1093 = vunpack.c.l.b16 %v249
    %v1094 = vunpack.c.h.b16 %v249
    %v1095 = vunpack.c.l.b16 %v250
    %v1096 = vunpack.c.h.b16 %v250
    %v1097 = vunpack.c.l.b16 %v251
    %v1098 = vunpack.c.h.b16 %v251
    %v1099 = vunpack.c.l.b16 %v252
    %v1100 = vunpack.c.h.b16 %v252
    %v1101 = vunpack.c.l.b16 %v253
    %v1102 = vunpack.c.h.b16 %v253
    %v1103 = vunpack.c.l.b16 %v254
    %v1104 = vunpack.c.h.b16 %v254
    %v1105 = vunpack.c.l.b16 %v255
    %v1106 = vunpack.c.h.b16 %v255
    %v1107 = vunpack.c.l.b16 %v256
    %v1108 = vunpack.c.h.b16 %v256
    %v1109 = vunpack.c.l.b16 %v257
    %v1110 = vunpack.c.h.b16 %v257
    %v1111 = vunpack.c.l.b16 %v258
    %v1112 = vunpack.c.h.b16 %v258
    %v1113 = vunpack.c.l.b16 %v259
    %v1114 = vunpack.c.h.b16 %v259
    %v1115 = vunpack.c.l.b16 %v260
    %v1116 = vunpack.c.h.b16 %v260
    %v1117 = vunpack.c.l.b16 %v261
    %v1118 = vunpack.c.h.b16 %v261
    %v1119 = vunpack.c.l.b16 %v262
    %v1120 = vunpack.c.h.b16 %v262
    %v1121 = vunpack.c.l.b16 %v263
    %v1122 = vunpack.c.h.b16 %v263
    %v1123 = vunpack.c.l.b16 %v264
    %v1124 = vunpack.c.h.b16 %v264
    %v1125 = vunpack.c.l.b16 %v265
    %v1126 = vunpack.c.h.b16 %v265
    %v1127 = vunpack.c.l.b16 %v266
    %v1128 = vunpack.c.h.b16 %v266
    %v1129 = vunpack.c.l.b16 %v267
    %v1130 = vunpack.c.h.b16 %v267
    %v1131 = vunpack.c.l.b16 %v268
    %v1132 = vunpack.c.h.b16 %v268
    %v1133 = vunpack.c.l.b16 %v269
    %v1134 = vunpack.c.h.b16 %v269
    %v1135 = vunpack.c.l.b16 %v270
    %v1136 = vunpack.c.h.b16 %v270
    %v1137 = vunpack.c.l.b16 %v271
    %v1138 = vunpack.c.h.b16 %v271
    %v1139 = vunpack.c.l.b16 %v272
    %v1140 = vunpack.c.h.b16 %v272
    %v1141 = vunpack.c.l.b16 %v273
    %v1142 = vunpack.c.h.b16 %v273
    %v1143 = vunpack.c.l.b16 %v274
    %v1144 = vunpack.c.h.b16 %v274
    %v1145 = vunpack.c.l.b16 %v275
    %v1146 = vunpack.c.h.b16 %v275
    %v1147 = vunpack.c.l.b16 %v276
    %v1148 = vunpack.c.h.b16 %v276
    %v1149 = vunpack.c.l.b16 %v277
    %v1150 = vunpack.c.h.b16 %v277
    %v1151 = vunpack.c.l.b16 %v278
    %v1152 = vunpack.c.h.b16 %v278
    %v1153 = vunpack.c.l.b16 %v279
    %v1154 = vunpack.c.h.b16 %v279
    %v1155 = vunpack.c.l.b16 %v280
    %v1156 = vunpack.c.h.b16 %v280
    %v1157 = vunpack.c.l.b16 %v281
    %v1158 = vunpack.c.h.b16 %v281
    %v1159 = vunpack.c.l.b16 %v282
    %v1160 = vunpack.c.h.b16 %v282
    %v1161 = vunpack.c.l.b16 %v283
    %v1162 = vunpack.c.h.b16 %v283
    %v1163 = vunpack.c.l.b16 %v284
    %v1164 = vunpack.c.h.b16 %v284
    %v1165 = vunpack.c.l.b16 %v285
    %v1166 = vunpack.c.h.b16 %v285
    %v1167 = vunpack.c.l.b16 %v286
    %v1168 = vunpack.c.h.b16 %v286
    %v1169 = vunpack.c.l.b16 %v287
    %v1170 = vunpack.c.h.b16 %v287
    %v1171 = vunpack.c.l.b16 %v288
    %v1172 = vunpack.c.h.b16 %v288
    %v1173 = vunpack.c.l.b16 %v289
    %v1174 = vunpack.c.h.b16 %v289
    %v1175 = vunpack.c.l.b16 %v290
    %v1176 = vunpack.c.h.b16 %v290
    %v1177 = vunpack.c.l.b16 %v291
    %v1178 = vunpack.c.h.b16 %v291
    %v1179 = vunpack.c.l.b16 %v292
    %v1180 = vunpack.c.h.b16 %v292
    %v1181 = vunpack.c.l.b16 %v293
    %v1182 = vunpack.c.h.b16 %v293
    %v1183 = vunpack.c.l.b16 %v294
    %v1184 = vunpack.c.h.b16 %v294
    %v1185 = vunpack.c.l.b16 %v295
    %v1186 = vunpack.c.h.b16 %v295
    %v1187 = vunpack.c.l.b16 %v296
    %v1188 = vunpack.c.h.b16 %v296
    %v1189 = vunpack.c.l.b16 %v297
    %v1190 = vunpack.c.h.b16 %v297
    %v1191 = vunpack.c.l.b16 %v298
    %v1192 = vunpack.c.h.b16 %v298
    %v1193 = vunpack.c.l.b16 %v299
    %v1194 = vunpack.c.h.b16 %v299
    %v1195 = vunpack.c.l.b16 %v300
    %v1196 = vunpack.c.h.b16 %v300
    %v1197 = vunpack.c.l.b16 %v301
    %v1198 = vunpack.c.h.b16 %v301
    %v1199 = vunpack.c.l.b16 %v302
    %v1200 = vunpack.c.h.b16 %v302
    %v1201 = vunpack.c.l.b16 %v303
    %v1202 = vunpack.c.h.b16 %v303
    %v1203 = vunpack.c.l.b16 %v304
    %v1204 = vunpack.c.h.b16 %v304
    %v1205 = vunpack.c.l.b16 %v305
    %v1206 = vunpack.c.h.b16 %v305
    %v1207 = vunpack.c.l.b16 %v306
    %v1208 = vunpack.c.h.b16 %v306
    %v1209 = vunpack.c.l.b16 %v307
    %v1210 = vunpack.c.h.b16 %v307
    %v1211 = vunpack.c.l.b16 %v308
    %v1212 = vunpack.c.h.b16 %v308
    %v1213 = vunpack.c.l.b16 %v309
    %v1214 = vunpack.c.h.b16 %v309
    %v1215 = vunpack.c.l.b16 %v310
    %v1216 = vunpack.c.h.b16 %v310
    %v1217 = vunpack.c.l.b16 %v311
    %v1218 = vunpack.c.h.b16 %v311
    %v1219 = vunpack.c.l.b16 %v312
    %v1220 = vunpack.c.h.b16 %v312
    %v1221 = vunpack.c.l.b16 %v313
    %v1222 = vunpack.c.h.b16 %v313
    %v1223 = vunpack.c.l.b16 %v314
    %v1224 = vunpack.c.h.b16 %v314
    %v1225 = vunpack.c.l.b16 %v315
    %v1226 = vunpack.c.h.b16 %v315
    %v1227 = vunpack.c.l.b16 %v316
    %v1228 = vunpack.c.h.b16 %v316
    %v1229 = vunpack.c.l.b16 %v317
    %v1230 = vunpack.c.h.b16 %v317
    %v1231 = vunpack.c.l.b16 %v318
    %v1232 = vunpack.c.h.b16 %v318
    %v1233 = vunpack.c.l.b16 %v319
    %v1234 = vunpack.c.h.b16 %v319
    %v1235 = vunpack.c.l.b16 %v320
    %v1236 = vunpack.c.h.b16 %v320
    %v1237 = vunpack.c.l.b16 %v321
    %v1238 = vunpack.c.h.b16 %v321
    %v1239 = vunpack.c.l.b16 %v322
    %v1240 = vunpack.c.h.b16 %v322
    %v1241 = vunpack.c.l.b16 %v323
    %v1242 = vunpack.c.h.b16 %v323
    %v1243 = vunpack.c.l.b16 %v324
    %v1244 = vunpack.c.h.b16 %v324
    %v1245 = vunpack.c.l.b16 %v325
    %v1246 = vunpack.c.h.b16 %v325
    %v1247 = vunpack.c.l.b16 %v326
    %v1248 = vunpack.c.h.b16 %v326
    %v1249 = vunpack.c.l.b16 %v327
    %v1250 = vunpack.c.h.b16 %v327
    %v1251 = vunpack.c.l.b16 %v328
    %v1252 = vunpack.c.h.b16 %v328
    %v1253 = vunpack.c.l.b16 %v329
    %v1254 = vunpack.c.h.b16 %v329
    %v1255 = vunpack.c.l.b16 %v330
    %v1256 = vunpack.c.h.b16 %v330
    %v1257 = vunpack.c.l.b16 %v331
    %v1258 = vunpack.c.h.b16 %v331
    %v1259 = vunpack.c.l.b16 %v332
    %v1260 = vunpack.c.h.b16 %v332
    %v1261 = vunpack.c.l.b16 %v333
    %v1262 = vunpack.c.h.b16 %v333
    %v1263 = vunpack.c.l.b16 %v334
    %v1264 = vunpack.c.h.b16 %v334
    %v1265 = vunpack.c.l.b16 %v335
    %v1266 = vunpack.c.h.b16 %v335
    %v1267 = vunpack.c.l.b16 %v336
    %v1268 = vunpack.c.h.b16 %v336
    %v1269 = vunpack.c.l.b16 %v337
    %v1270 = vunpack.c.h.b16 %v337
    %v1271 = vunpack.c.l.b16 %v338
    %v1272 = vunpack.c.h.b16 %v338
    %v1273 = vunpack.c.l.b16 %v339
    %v1274 = vunpack.c.h.b16 %v339
    %v1275 = vunpack.c.l.b16 %v340
    %v1276 = vunpack.c.h.b16 %v340
    %v1277 = vunpack.c.l.b16 %v341
    %v1278 = vunpack.c.h.b16 %v341
    %v1279 = vunpack.c.l.b16 %v342
    %v1280 = vunpack.c.h.b16 %v342
    %v1281 = vunpack.c.l.b16 %v343
    %v1282 = vunpack.c.h.b16 %v343
    %v1283 = vunpack.c.l.b16 %v344
    %v1284 = vunpack.c.h.b16 %v344
    %v1285 = vunpack.c.l.b16 %v345
    %v1286 = vunpack.c.h.b16 %v345
    %v1287 = vunpack.c.l.b16 %v346
    %v1288 = vunpack.c.h.b16 %v346
    %v1289 = vunpack.c.l.b16 %v347
    %v1290 = vunpack.c.h.b16 %v347
    %v1291 = vunpack.c.l.b16 %v348
    %v1292 = vunpack.c.h.b16 %v348
    %v1293 = vunpack.c.l.b16 %v349
    %v1294 = vunpack.c.h.b16 %v349
    %v1295 = vunpack.c.l.b16 %v350
    %v1296 = vunpack.c.h.b16 %v350
    %v1297 = vunpack.c.l.b16 %v351
    %v1298 = vunpack.c.h.b16 %v351
    %v1299 = vunpack.c.l.b16 %v352
    %v1300 = vunpack.c.h.b16 %v352
    %v1301 = vunpack.c.l.b16 %v353
    %v1302 = vunpack.c.h.b16 %v353
    %v1303 = vunpack.c.l.b16 %v354
    %v1304 = vunpack.c.h.b16 %v354
    %v1305 = vunpack.c.l.b16 %v355
    %v1306 = vunpack.c.h.b16 %v355
    %v1307 = vunpack.c.l.b16 %v356
    %v1308 = vunpack.c.h.b16 %v356
    %v1309 = vunpack.c.l.b16 %v357
    %v1310 = vunpack.c.h.b16 %v357
    %v1311 = vunpack.c.l.b16 %v358
    %v1312 = vunpack.c.h.b16 %v358
    %v1313 = vunpack.c.l.b16 %v359
    %v1314 = vunpack.c.h.b16 %v359
    %v1315 = vunpack.c.l.b16 %v360
    %v1316 = vunpack.c.h.b16 %v360
    %v1317 = vunpack.c.l.b16 %v361
    %v1318 = vunpack.c.h.b16 %v361
    %v1319 = vunpack.c.l.b16 %v362
    %v1320 = vunpack.c.h.b16 %v362
    %v1321 = vunpack.c.l.b16 %v363
    %v1322 = vunpack.c.h.b16 %v363
    %v1323 = vunpack.c.l.b16 %v364
    %v1324 = vunpack.c.h.b16 %v364
    %v1325 = vunpack.c.l.b16 %v365
    %v1326 = vunpack.c.h.b16 %v365
    %v1327 = vunpack.c.l.b16 %v366
    %v1328 = vunpack.c.h.b16 %v366
    %v1329 = vunpack.c.l.b16 %v367
    %v1330 = vunpack.c.h.b16 %v367
    %v1331 = vunpack.c.l.b16 %v368
    %v1332 = vunpack.c.h.b16 %v368
    %v1333 = vunpack.c.l.b16 %v369
    %v1334 = vunpack.c.h.b16 %v369
    %v1335 = vunpack.c.l.b16 %v370
    %v1336 = vunpack.c.h.b16 %v370
    %v1337 = vunpack.c.l.b16 %v371
    %v1338 = vunpack.c.h.b16 %v371
    %v1339 = vunpack.c.l.b16 %v372
    %v1340 = vunpack.c.h.b16 %v372
    %v1341 = vunpack.c.l.b16 %v373
    %v1342 = vunpack.c.h.b16 %v373
    %v1343 = vunpack.c.l.b16 %v374
    %v1344 = vunpack.c.h.b16 %v374
    %v1345 = vunpack.c.l.b16 %v375
    %v1346 = vunpack.c.h.b16 %v375
    %v1347 = vunpack.c.l.b16 %v376
    %v1348 = vunpack.c.h.b16 %v376
    %v1349 = vunpack.c.l.b16 %v377
    %v1350 = vunpack.c.h.b16 %v377
    %v1351 = vunpack.c.l.b16 %v378
    %v1352 = vunpack.c.h.b16 %v378
    %v1353 = vunpack.c.l.b16 %v379
    %v1354 = vunpack.c.h.b16 %v379
    %v1355 = vunpack.c.l.b16 %v380
    %v1356 = vunpack.c.h.b16 %v380
    %v1357 = vunpack.c.l.b16 %v381
    %v1358 = vunpack.c.h.b16 %v381
    %v1359 = vunpack.c.l.b16 %v382
    %v1360 = vunpack.c.h.b16 %v382
    %v1361 = vunpack.c.l.b16 %v383
    %v1362 = vunpack.c.h.b16 %v383
    %v1363 = vunpack.c.l.b16 %v384
    %v1364 = vunpack.c.h.b16 %v384
    %v1365 = vunpack.c.l.b16 %v385
    %v1366 = vunpack.c.h.b16 %v385
    %v1367 = vunpack.c.l.b16 %v386
    %v1368 = vunpack.c.h.b16 %v386
    %v1369 = vunpack.c.l.b16 %v387
    %v1370 = vunpack.c.h.b16 %v387
    %v1371 = vunpack.c.l.b16 %v388
    %v1372 = vunpack.c.h.b16 %v388
    %v1373 = vunpack.c.l.b16 %v389
    %v1374 = vunpack.c.h.b16 %v389
    %v1375 = vunpack.c.l.b16 %v390
    %v1376 = vunpack.c.h.b16 %v390
    %v1377 = vunpack.c.l.b16 %v391
    %v1378 = vunpack.c.h.b16 %v391
    %v1379 = vunpack.c.l.b16 %v392
    %v1380 = vunpack.c.h.b16 %v392
    %v1381 = vunpack.c.l.b16 %v393
    %v1382 = vunpack.c.h.b16 %v393
    %v1383 = vunpack.c.l.b16 %v394
    %v1384 = vunpack.c.h.b16 %v394
    %v1385 = vunpack.c.l.b16 %v395
    %v1386 = vunpack.c.h.b16 %v395
    %v1387 = vunpack.c.l.b16 %v396
    %v1388 = vunpack.c.h.b16 %v396
    %v1389 = vunpack.c.l.b16 %v397
    %v1390 = vunpack.c.h.b16 %v397
    %v1391 = vunpack.c.l.b16 %v398
    %v1392 = vunpack.c.h.b16 %v398
    %v1393 = vunpack.c.l.b16 %v399
    %v1394 = vunpack.c.h.b16 %v399
    %v1395 = vunpack.c.l.b16 %v400
    %v1396 = vunpack.c.h.b16 %v400
    %v1397 = vunpack.c.l.b16 %v401
    %v1398 = vunpack.c.h.b16 %v401
    %v1399 = vunpack.c.l.b16 %v402
    %v1400 = vunpack.c.h.b16 %v402
    %v1401 = vunpack.c.l.b16 %v403
    %v1402 = vunpack.c.h.b16 %v403
    %v1403 = vunpack.c.l.b16 %v404
    %v1404 = vunpack.c.h.b16 %v404
    %v1405 = vunpack.c.l.b16 %v405
    %v1406 = vunpack.c.h.b16 %v405
    %v1407 = vunpack.c.l.b16 %v406
    %v1408 = vunpack.c.h.b16 %v406
    %v1409 = vunpack.c.l.b16 %v407
    %v1410 = vunpack.c.h.b16 %v407
    %v1411 = vunpack.c.l.b16 %v408
    %v1412 = vunpack.c.h.b16 %v408
    %v1413 = vunpack.c.l.b16 %v409
    %v1414 = vunpack.c.h.b16 %v409
    %v1415 = vunpack.c.l.b16 %v410
    %v1416 = vunpack.c.h.b16 %v410
    %v1417 = vunpack.c.l.b16 %v411
    %v1418 = vunpack.c.h.b16 %v411
    %v1419 = vunpack.c.l.b16 %v412
    %v1420 = vunpack.c.h.b16 %v412
    %v1421 = vunpack.c.l.b16 %v413
    %v1422 = vunpack.c.h.b16 %v413
    %v1423 = vunpack.c.l.b16 %v414
    %v1424 = vunpack.c.h.b16 %v414
    %v1425 = vunpack.c.l.b16 %v415
    %v1426 = vunpack.c.h.b16 %v415
    %v1427 = vunpack.c.l.b16 %v416
    %v1428 = vunpack.c.h.b16 %v416
    %v1429 = vunpack.c.l.b16 %v417
    %v1430 = vunpack.c.h.b16 %v417
    %v1431 = vunpack.c.l.b16 %v418
    %v1432 = vunpack.c.h.b16 %v418
    %v1433 = vunpack.c.l.b16 %v419
    %v1434 = vunpack.c.h.b16 %v419
    %v1435 = vunpack.c.l.b16 %v420
    %v1436 = vunpack.c.h.b16 %v420
    %v1437 = vunpack.c.l.b16 %v421
    %v1438 = vunpack.c.h.b16 %v421
    %v1439 = vunpack.c.l.b16 %v422
    %v1440 = vunpack.c.h.b16 %v422
    %v1441 = vunpack.c.l.b16 %v423
    %v1442 = vunpack.c.h.b16 %v423
    %v1443 = vunpack.c.l.b16 %v424
    %v1444 = vunpack.c.h.b16 %v424
    %v1445 = vunpack.c.l.b16 %v425
    %v1446 = vunpack.c.h.b16 %v425
    %v1447 = vunpack.c.l.b16 %v426
    %v1448 = vunpack.c.h.b16 %v426
    %v1449 = vunpack.c.l.b16 %v427
    %v1450 = vunpack.c.h.b16 %v427
    %v1451 = vunpack.c.l.b16 %v428
    %v1452 = vunpack.c.h.b16 %v428
    %v1453 = vunpack.c.l.b16 %v429
    %v1454 = vunpack.c.h.b16 %v429
    %v1455 = vunpack.c.l.b16 %v430
    %v1456 = vunpack.c.h.b16 %v430
    %v1457 = vunpack.c.l.b16 %v431
    %v1458 = vunpack.c.h.b16 %v431
    %v1459 = vunpack.c.l.b16 %v432
    %v1460 = vunpack.c.h.b16 %v432
    %v1461 = vunpack.c.l.b16 %v433
    %v1462 = vunpack.c.h.b16 %v433
    %v1463 = vunpack.c.l.b16 %v434
    %v1464 = vunpack.c.h.b16 %v434
    %v1465 = vpack.c.b16 %v833, %v825
    %v1466 = vpack.c.b16 %v834, %v826
    %v1467 = vpack.c.b16 %v835, %v827
    %v1468 = vpack.c.b16 %v836, %v828
    %v1469 = vpack.c.b16 %v837, %v829
    %v1470 = vpack.c.b16 %v838, %v830
    %v1471 = vpack.c.b16 %v839, %v831
    %v1472 = vpack.c.b16 %v840, %v832
    %v1473 = vpack.c.b16 %v849, %v841
    %v1474 = vpack.c.b16 %v850, %v842
    %v1475 = vpack.c.b16 %v851, %v843
    %v1476 = vpack.c.b16 %v852, %v844
    %v1477 = vpack.c.b16 %v853, %v845
    %v1478 = vpack.c.b16 %v854, %v846
    %v1479 = vpack.c.b16 %v855, %v847
    %v1480 = vpack.c.b16 %v856, %v848
    %v1481 = vpack.c.b16 %v865, %v857
    %v1482 = vpack.c.b16 %v866, %v858
    %v1483 = vpack.c.b16 %v867, %v859
    %v1484 = vpack.c.b16 %v868, %v860
    %v1485 = vpack.c.b16 %v869, %v861
    %v1486 = vpack.c.b16 %v870, %v862
    %v1487 = vpack.c.b16 %v871, %v863
    %v1488 = vpack.c.b16 %v872, %v864
    %v1489 = vpack.c.b16 %v881, %v873
    %v1490 = vpack.c.b16 %v882, %v874
    %v1491 = vpack.c.b16 %v883, %v875
    %v1492 = vpack.c.b16 %v884, %v876
    %v1493 = vpack.c.b16 %v885, %v877
    %v1494 = vpack.c.b16 %v886, %v878
    %v1495 = vpack.c.b16 %v887, %v879
    %v1496 = vpack.c.b16 %v888, %v880
    %v1497 = vpack.c.b16 %v897, %v889
    %v1498 = vpack.c.b16 %v898, %v890
    %v1499 = vpack.c.b16 %v899, %v891
    %v1500 = vpack.c.b16 %v900, %v892
    %v1501 = vpack.c.b16 %v901, %v893
    %v1502 = vpack.c.b16 %v902, %v894
    %v1503 = vpack.c.b16 %v903, %v895
    %v1504 = vpack.c.b16 %v904, %v896
    %v1505 = vpack.c.b16 %v913, %v905
    %v1506 = vpack.c.b16 %v914, %v906
    %v1507 = vpack.c.b16 %v915, %v907
    %v1508 = vpack.c.b16 %v916, %v908
    %v1509 = vpack.c.b16 %v917, %v909
    %v1510 = vpack.c.b16 %v918, %v910
    %v1511 = vpack.c.b16 %v919, %v911
    %v1512 = vpack.c.b16 %v920, %v912
    %v1513 = vpack.c.b16 %v929, %v921
    %v1514 = vpack.c.b16 %v930, %v922
    %v1515 = vpack.c.b16 %v931, %v923
    %v1516 = vpack.c.b16 %v932, %v924
    %v1517 = vpack.c.b16 %v933, %v925
    %v1518 = vpack.c.b16 %v934, %v926
    %v1519 = vpack.c.b16 %v935, %v927
    %v1520 = vpack.c.b16 %v936, %v928
    %v1521 = vpack.c.b16 %v945, %v937
    %v1522 = vpack.c.b16 %v946, %v938
    %v1523 = vpack.c.b16 %v947, %v939
    %v1524 = vpack.c.b16 %v948, %v940
    %v1525 = vpack.c.b16 %v949, %v941
    %v1526 = vpack.c.b16 %v950, %v942
    %v1527 = vpack.c.b16 %v951, %v943
    %v1528 = vpack.c.b16 %v952, %v944
    %v1529 = vpack.c.b16 %v961, %v953
    %v1530 = vpack.c.b16 %v962, %v954
    %v1531 = vpack.c.b16 %v963, %v955
    %v1532 = vpack.c.b16 %v964, %v956
    %v1533 = vpack.c.b16 %v965, %v957
    %v1534 = vpack.c.b16 %v966, %v958
    %v1535 = vpack.c.b16 %v967, %v959
    %v1536 = vpack.c.b16 %v968, %v960
    %v1537 = vpack.c.b16 %v977, %v969
    %v1538 = vpack.c.b16 %v978, %v970
    %v1539 = vpack.c.b16 %v979, %v971
    %v1540 = vpack.c.b16 %v980, %v972
    %v1541 = vpack.c.b16 %v981, %v973
    %v1542 = vpack.c.b16 %v982, %v974
    %v1543 = vpack.c.b16 %v983, %v975
    %v1544 = vpack.c.b16 %v984, %v976
    %v1545 = vpack.c.b16 %v993, %v985
    %v1546 = vpack.c.b16 %v994, %v986
    %v1547 = vpack.c.b16 %v995, %v987
    %v1548 = vpack.c.b16 %v996, %v988
    %v1549 = vpack.c.b16 %v997, %v989
    %v1550 = vpack.c.b16 %v998, %v990
    %v1551 = vpack.c.b16 %v999, %v991
    %v1552 = vpack.c.b16 %v1000, %v992
    %v1553 = vpack.c.b16 %v1009, %v1001
    %v1554 = vpack.c.b16 %v1010, %v1002
    %v1555 = vpack.c.b16 %v1011, %v1003
    %v1556 = vpack.c.b16 %v1012, %v1004
    %v1557 = vpack.c.b16 %v1013, %v1005
    %v1558 = vpack.c.b16 %v1014, %v1006
    %v1559 = vpack.c.b16 %v1015, %v1007
    %v1560 = vpack.c.b16 %v1016, %v1008
    %v1561 = vpack.c.b16 %v1025, %v1017
    %v1562 = vpack.c.b16 %v1026, %v1018
    %v1563 = vpack.c.b16 %v1027, %v1019
    %v1564 = vpack.c.b16 %v1028, %v1020
    %v1565 = vpack.c.b16 %v1029, %v1021
    %v1566 = vpack.c.b16 %v1030, %v1022
    %v1567 = vpack.c.b16 %v1031, %v1023
    %v1568 = vpack.c.b16 %v1032, %v1024
    %v1569 = vpack.c.b16 %v1041, %v1033
    %v1570 = vpack.c.b16 %v1042, %v1034
    %v1571 = vpack.c.b16 %v1043, %v1035
    %v1572 = vpack.c.b16 %v1044, %v1036
    %v1573 = vpack.c.b16 %v1045, %v1037
    %v1574 = vpack.c.b16 %v1046, %v1038
    %v1575 = vpack.c.b16 %v1047, %v1039
    %v1576 = vpack.c.b16 %v1048, %v1040
    %v1577 = vpack.c.b16 %v1057, %v1049
    %v1578 = vpack.c.b16 %v1058, %v1050
    %v1579 = vpack.c.b16 %v1059, %v1051
    %v1580 = vpack.c.b16 %v1060, %v1052
    %v1581 = vpack.c.b16 %v1061, %v1053
    %v1582 = vpack.c.b16 %v1062, %v1054
    %v1583 = vpack.c.b16 %v1063, %v1055
    %v1584 = vpack.c.b16 %v1064, %v1056
    %v1585 = vpack.c.b16 %v1073, %v1065
    %v1586 = vpack.c.b16 %v1074, %v1066
    %v1587 = vpack.c.b16 %v1075, %v1067
    %v1588 = vpack.c.b16 %v1076, %v1068
    %v1589 = vpack.c.b16 %v1077, %v1069
    %v1590 = vpack.c.b16 %v1078, %v1070
    %v1591 = vpack.c.b16 %v1079, %v1071
    %v1592 = vpack.c.b16 %v1080, %v1072
    %v1593 = vpack.c.b16 %v1089, %v1081
    %v1594 = vpack.c.b16 %v1090, %v1082
    %v1595 = vpack.c.b16 %v1091, %v1083
    %v1596 = vpack.c.b16 %v1092, %v1084
    %v1597 = vpack.c.b16 %v1093, %v1085
    %v1598 = vpack.c.b16 %v1094, %v1086
    %v1599 = vpack.c.b16 %v1095, %v1087
    %v1600 = vpack.c.b16 %v1096, %v1088
    %v1601 = vpack.c.b16 %v1105, %v1097
    %v1602 = vpack.c.b16 %v1106, %v1098
    %v1603 = vpack.c.b16 %v1107, %v1099
    %v1604 = vpack.c.b16 %v1108, %v1100
    %v1605 = vpack.c.b16 %v1109, %v1101
    %v1606 = vpack.c.b16 %v1110, %v1102
    %v1607 = vpack.c.b16 %v1111, %v1103
    %v1608 = vpack.c.b16 %v1112, %v1104
    %v1609 = vpack.c.b16 %v1121, %v1113
    %v1610 = vpack.c.b16 %v1122, %v1114
    %v1611 = vpack.c.b16 %v1123, %v1115
    %v1612 = vpack.c.b16 %v1124, %v1116
    %v1613 = vpack.c.b16 %v1125, %v1117
    %v1614 = vpack.c.b16 %v1126, %v1118
    %v1615 = vpack.c.b16 %v1127, %v1119
    %v1616 = vpack.c.b16 %v1128, %v1120
    %v1617 = vpack.c.b16 %v1137, %v1129
    %v1618 = vpack.c.b16 %v1138, %v1130
    %v1619 = vpack.c.b16 %v1139, %v1131
    %v1620 = vpack.c.b16 %v1140, %v1132
    %v1621 = vpack.c.b16 %v1141, %v1133
    %v1622 = vpack.c.b16 %v1142, %v1134
    %v1623 = vpack.c.b16 %v1143, %v1135
    %v1624 = vpack.c.b16 %v1144, %v1136
    %v1625 = vpack.c.b16 %v1153, %v1145
    %v1626 = vpack.c.b16 %v1154, %v1146
    %v1627 = vpack.c.b16 %v1155, %v1147
    %v1628 = vpack.c.b16 %v1156, %v1148
    %v1629 = vpack.c.b16 %v1157, %v1149
    %v1630 = vpack.c.b16 %v1158, %v1150
    %v1631 = vpack.c.b16 %v1159, %v1151
    %v1632 = vpack.c.b16 %v1160, %v1152
    %v1633 = vpack.c.b16 %v1169, %v1161
    %v1634 = vpack.c.b16 %v1170, %v1162
    %v1635 = vpack.c.b16 %v1171, %v1163
    %v1636 = vpack.c.b16 %v1172, %v1164
    %v1637 = vpack.c.b16 %v1173, %v1165
    %v1638 = vpack.c.b16 %v1174, %v1166
    %v1639 = vpack.c.b16 %v1175, %v1167
    %v1640 = vpack.c.b16 %v1176, %v1168
    %v1641 = vpack.c.b16 %v1185, %v1177
    %v1642 = vpack.c.b16 %v1186, %v1178
    %v1643 = vpack.c.b16 %v1187, %v1179
    %v1644 = vpack.c.b16 %v1188, %v1180
    %v1645 = vpack.c.b16 %v1189, %v1181
    %v1646 = vpack.c.b16 %v1190, %v1182
    %v1647 = vpack.c.b16 %v1191, %v1183
    %v1648 = vpack.c.b16 %v1192, %v1184
    %v1649 = vpack.c.b16 %v1201, %v1193
    %v1650 = vpack.c.b16 %v1202, %v1194
    %v1651 = vpack.c.b16 %v1203, %v1195
    %v1652 = vpack.c.b16 %v1204, %v1196
    %v1653 = vpack.c.b16 %v1205, %v1197
    %v1654 = vpack.c.b16 %v1206, %v1198
    %v1655 = vpack.c.b16 %v1207, %v1199
    %v1656 = vpack.c.b16 %v1208, %v1200
    %v1657 = vpack.c.b16 %v1217, %v1209
    %v1658 = vpack.c.b16 %v1218, %v1210
    %v1659 = vpack.c.b16 %v1219, %v1211
    %v1660 = vpack.c.b16 %v1220, %v1212
    %v1661 = vpack.c.b16 %v1221, %v1213
    %v1662 = vpack.c.b16 %v1222, %v1214
    %v1663 = vpack.c.b16 %v1223, %v1215
    %v1664 = vpack.c.b16 %v1224, %v1216
    %v1665 = vpack.c.b16 %v1233, %v1225
    %v1666 = vpack.c.b16 %v1234, %v1226
    %v1667 = vpack.c.b16 %v1235, %v1227
    %v1668 = vpack.c.b16 %v1236, %v1228
    %v1669 = vpack.c.b16 %v1237, %v1229
    %v1670 = vpack.c.b16 %v1238, %v1230
    %v1671 = vpack.c.b16 %v1239, %v1231
    %v1672 = vpack.c.b16 %v1240, %v1232
    %v1673 = vpack.c.b16 %v1249, %v1241
    %v1674 = vpack.c.b16 %v1250, %v1242
    %v1675 = vpack.c.b16 %v1251, %v1243
    %v1676 = vpack.c.b16 %v1252, %v1244
    %v1677 = vpack.c.b16 %v1253, %v1245
    %v1678 = vpack.c.b16 %v1254, %v1246
    %v1679 = vpack.c.b16 %v1255, %v1247
    %v1680 = vpack.c.b16 %v1256, %v1248
    %v1681 = vpack.c.b16 %v1265, %v1257
    %v1682 = vpack.c.b16 %v1266, %v1258
    %v1683 = vpack.c.b16 %v1267, %v1259
    %v1684 = vpack.c.b16 %v1268, %v1260
    %v1685 = vpack.c.b16 %v1269, %v1261
    %v1686 = vpack.c.b16 %v1270, %v1262
    %v1687 = vpack.c.b16 %v1271, %v1263
    %v1688 = vpack.c.b16 %v1272, %v1264
    %v1689 = vpack.c.b16 %v1281, %v1273
    %v1690 = vpack.c.b16 %v1282, %v1274
    %v1691 = vpack.c.b16 %v1283, %v1275
    %v1692 = vpack.c.b16 %v1284, %v1276
    %v1693 = vpack.c.b16 %v1285, %v1277
    %v1694 = vpack.c.b16 %v1286, %v1278
    %v1695 = vpack.c.b16 %v1287, %v1279
    %v1696 = vpack.c.b16 %v1288, %v1280
    %v1697 = vpack.c.b16 %v1297, %v1289
    %v1698 = vpack.c.b16 %v1298, %v1290
    %v1699 = vpack.c.b16 %v1299, %v1291
    %v1700 = vpack.c.b16 %v1300, %v1292
    %v1701 = vpack.c.b16 %v1301, %v1293
    %v1702 = vpack.c.b16 %v1302, %v1294
    %v1703 = vpack.c.b16 %v1303, %v1295
    %v1704 = vpack.c.b16 %v1304, %v1296
    %v1705 = vpack.c.b16 %v1313, %v1305
    %v1706 = vpack.c.b16 %v1314, %v1306
    %v1707 = vpack.c.b16 %v1315, %v1307
    %v1708 = vpack.c.b16 %v1316, %v1308
    %v1709 = vpack.c.b16 %v1317, %v1309
    %v1710 = vpack.c.b16 %v1318, %v1310
    %v1711 = vpack.c.b16 %v1319, %v1311
    %v1712 = vpack.c.b16 %v1320, %v1312
    %v1713 = vpack.c.b16 %v1329, %v1321
    %v1714 = vpack.c.b16 %v1330, %v1322
    %v1715 = vpack.c.b16 %v1331, %v1323
    %v1716 = vpack.c.b16 %v1332, %v1324
    %v1717 = vpack.c.b16 %v1333, %v1325
    %v1718 = vpack.c.b16 %v1334, %v1326
    %v1719 = vpack.c.b16 %v1335, %v1327
    %v1720 = vpack.c.b16 %v1336, %v1328
    %v1721 = vpack.c.b16 %v1345, %v1337
    %v1722 = vpack.c.b16 %v1346, %v1338
    %v1723 = vpack.c.b16 %v1347, %v1339
    %v1724 = vpack.c.b16 %v1348, %v1340
    %v1725 = vpack.c.b16 %v1349, %v1341
    %v1726 = vpack.c.b16 %v1350, %v1342
    %v1727 = vpack.c.b16 %v1351, %v1343
    %v1728 = vpack.c.b16 %v1352, %v1344
    %v1729 = vpack.c.b16 %v1361, %v1353
    %v1730 = vpack.c.b16 %v1362, %v1354
    %v1731 = vpack.c.b16 %v1363, %v1355
    %v1732 = vpack.c.b16 %v1364, %v1356
    %v1733 = vpack.c.b16 %v1365, %v1357
    %v1734 = vpack.c.b16 %v1366, %v1358
    %v1735 = vpack.c.b16 %v1367, %v1359
    %v1736 = vpack.c.b16 %v1368, %v1360
    %v1737 = vpack.c.b16 %v1377, %v1369
    %v1738 = vpack.c.b16 %v1378, %v1370
    %v1739 = vpack.c.b16 %v1379, %v1371
    %v1740 = vpack.c.b16 %v1380, %v1372
    %v1741 = vpack.c.b16 %v1381, %v1373
    %v1742 = vpack.c.b16 %v1382, %v1374
    %v1743 = vpack.c.b16 %v1383, %v1375
    %v1744 = vpack.c.b16 %v1384, %v1376
    %v1745 = vpack.c.b16 %v1393, %v1385
    %v1746 = vpack.c.b16 %v1394, %v1386
    %v1747 = vpack.c.b16 %v1395, %v1387
    %v1748 = vpack.c.b16 %v1396, %v1388
    %v1749 = vpack.c.b16 %v1397, %v1389
    %v1750 = vpack.c.b16 %v1398, %v1390
    %v1751 = vpack.c.b16 %v1399, %v1391
    %v1752 = vpack.c.b16 %v1400, %v1392
    %v1753 = vpack.c.b16 %v1409, %v1401
    %v1754 = vpack.c.b16 %v1410, %v1402
    %v1755 = vpack.c.b16 %v1411, %v1403
    %v1756 = vpack.c.b16 %v1412, %v1404
    %v1757 = vpack.c.b16 %v1413, %v1405
    %v1758 = vpack.c.b16 %v1414, %v1406
    %v1759 = vpack.c.b16 %v1415, %v1407
    %v1760 = vpack.c.b16 %v1416, %v1408
    %v1761 = vpack.c.b16 %v1425, %v1417
    %v1762 = vpack.c.b16 %v1426, %v1418
    %v1763 = vpack.c.b16 %v1427, %v1419
    %v1764 = vpack.c.b16 %v1428, %v1420
    %v1765 = vpack.c.b16 %v1429, %v1421
    %v1766 = vpack.c.b16 %v1430, %v1422
    %v1767 = vpack.c.b16 %v1431, %v1423
    %v1768 = vpack.c.b16 %v1432, %v1424
    %v1769 = vpack.c.b16 %v1441, %v1433
    %v1770 = vpack.c.b16 %v1442, %v1434
    %v1771 = vpack.c.b16 %v1443, %v1435
    %v1772 = vpack.c.b16 %v1444, %v1436
    %v1773 = vpack.c.b16 %v1445, %v1437
    %v1774 = vpack.c.b16 %v1446, %v1438
    %v1775 = vpack.c.b16 %v1447, %v1439
    %v1776 = vpack.c.b16 %v1448, %v1440
    %v1777 = vpack.c.b16 %v1457, %v1449
    %v1778 = vpack.c.b16 %v1458, %v1450
    %v1779 = vpack.c.b16 %v1459, %v1451
    %v1780 = vpack.c.b16 %v1460, %v1452
    %v1781 = vpack.c.b16 %v1461, %v1453
    %v1782 = vpack.c.b16 %v1462, %v1454
    %v1783 = vpack.c.b16 %v1463, %v1455
    %v1784 = vpack.c.b16 %v1464, %v1456
    %2105 = vmatprep.subr.bf16.mxu0 %v1466
    %2106 = vmatpush1.bf16.msra.mxu0 %v1465
    %2107 = vmatprep.subr.bf16.mxu0 %v1474
    %2108 = vmatpush1.bf16.msra.mxu0 %v1473
    %2109 = vmatprep.subr.bf16.mxu0 %v1482
    %2110 = vmatpush1.bf16.msra.mxu0 %v1481
    %2111 = vmatprep.subr.bf16.mxu0 %v1490
    %2112 = vmatpush1.bf16.msra.mxu0 %v1489
    %2113 = vmatprep.subr.bf16.mxu0 %v1498
    %2114 = vmatpush1.bf16.msra.mxu0 %v1497
    %2115 = vmatprep.subr.bf16.mxu0 %v1506
    %2116 = vmatpush1.bf16.msra.mxu0 %v1505
    %2117 = vmatprep.subr.bf16.mxu0 %v1514
    %2118 = vmatpush1.bf16.msra.mxu0 %v1513
    %2119 = vmatprep.subr.bf16.mxu0 %v1522
    %2120 = vmatpush1.bf16.msra.mxu0 %v1521
    %2121 = vmatprep.subr.bf16.mxu0 %v1530
    %2122 = vmatpush1.bf16.msra.mxu0 %v1529
    %2123 = vmatprep.subr.bf16.mxu0 %v1538
    %2124 = vmatpush1.bf16.msra.mxu0 %v1537
    %2125 = vmatprep.subr.bf16.mxu0 %v1546
    %2126 = vmatpush1.bf16.msra.mxu0 %v1545
    %2127 = vmatprep.subr.bf16.mxu0 %v1554
    %2128 = vmatpush1.bf16.msra.mxu0 %v1553
    %2129 = vmatprep.subr.bf16.mxu0 %v1562
    %2130 = vmatpush1.bf16.msra.mxu0 %v1561
    %2131 = vmatprep.subr.bf16.mxu0 %v1570
    %2132 = vmatpush1.bf16.msra.mxu0 %v1569
    %2133 = vmatprep.subr.bf16.mxu0 %v1578
    %2134 = vmatpush1.bf16.msra.mxu0 %v1577
    %2135 = vmatprep.subr.bf16.mxu0 %v1586
    %2136 = vmatpush1.bf16.msra.mxu0 %v1585
    %2137 = vmatprep.mubr.bf16.mxu0 %v496
    %2138 = vmatmul.mubr.bf16.gmra.mrb[0].mxu0 %v495
    %v2139 = vpop.f32.mrb[0].mxu0
    %v2140 = vadd.f32 %v442, %v2139
    %v2141 = vpop.f32.mrb[0].mxu0
    %v2142 = vadd.f32 %v446, %v2141
    %v2143 = vpop.f32.mrb[0].mxu0
    %v2144 = vadd.f32 %v442, %v2143
    %v2145 = vpop.f32.mrb[0].mxu0
    %v2146 = vadd.f32 %v446, %v2145
    %2147 = vdwg.mxu0
    %2148 = vmatprep.subr.bf16.mxu0 %v1594
    %2149 = vmatpush1.bf16.msra.mxu0 %v1593
    %2150 = vmatprep.subr.bf16.mxu0 %v1602
    %2151 = vmatpush1.bf16.msra.mxu0 %v1601
    %2152 = vmatprep.subr.bf16.mxu0 %v1610
    %2153 = vmatpush1.bf16.msra.mxu0 %v1609
    %2154 = vmatprep.subr.bf16.mxu0 %v1618
    %2155 = vmatpush1.bf16.msra.mxu0 %v1617
    %2156 = vmatprep.subr.bf16.mxu0 %v1626
    %2157 = vmatpush1.bf16.msra.mxu0 %v1625
    %2158 = vmatprep.subr.bf16.mxu0 %v1634
    %2159 = vmatpush1.bf16.msra.mxu0 %v1633
    %2160 = vmatprep.subr.bf16.mxu0 %v1642
    %2161 = vmatpush1.bf16.msra.mxu0 %v1641
    %2162 = vmatprep.subr.bf16.mxu0 %v1650
    %2163 = vmatpush1.bf16.msra.mxu0 %v1649
    %2164 = vmatprep.subr.bf16.mxu0 %v1658
    %2165 = vmatpush1.bf16.msra.mxu0 %v1657
    %2166 = vmatprep.subr.bf16.mxu0 %v1666
    %2167 = vmatpush1.bf16.msra.mxu0 %v1665
    %2168 = vmatprep.subr.bf16.mxu0 %v1674
    %2169 = vmatpush1.bf16.msra.mxu0 %v1673
    %2170 = vmatprep.subr.bf16.mxu0 %v1682
    %2171 = vmatpush1.bf16.msra.mxu0 %v1681
    %2172 = vmatprep.subr.bf16.mxu0 %v1690
    %2173 = vmatpush1.bf16.msra.mxu0 %v1689
    %2174 = vmatprep.subr.bf16.mxu0 %v1698
    %2175 = vmatpush1.bf16.msra.mxu0 %v1697
    %2176 = vmatprep.subr.bf16.mxu0 %v1706
    %2177 = vmatpush1.bf16.msra.mxu0 %v1705
    %2178 = vmatprep.subr.bf16.mxu0 %v1714
    %2179 = vmatpush1.bf16.msra.mxu0 %v1713
    %2180 = vmatprep.mubr.bf16.mxu0 %v498
    %2181 = vmatmul.mubr.bf16.gmra.mrb[0].mxu0 %v497
    %v2182 = vpop.f32.mrb[0].mxu0
    %v2183 = vadd.f32 %v2140, %v2182
    %v2184 = vpop.f32.mrb[0].mxu0
    %v2185 = vadd.f32 %v2142, %v2184
    %v2186 = vpop.f32.mrb[0].mxu0
    %v2187 = vadd.f32 %v2144, %v2186
    %v2188 = vpop.f32.mrb[0].mxu0
    %v2189 = vadd.f32 %v2146, %v2188
    %2190 = vdwg.mxu0
    %2191 = vmatprep.subr.bf16.mxu0 %v1722
    %2192 = vmatpush1.bf16.msra.mxu0 %v1721
    %2193 = vmatprep.subr.bf16.mxu0 %v1730
    %2194 = vmatpush1.bf16.msra.mxu0 %v1729
    %2195 = vmatprep.subr.bf16.mxu0 %v1738
    %2196 = vmatpush1.bf16.msra.mxu0 %v1737
    %2197 = vmatprep.subr.bf16.mxu0 %v1746
    %2198 = vmatpush1.bf16.msra.mxu0 %v1745
    %2199 = vmatprep.subr.bf16.mxu0 %v1754
    %2200 = vmatpush1.bf16.msra.mxu0 %v1753
    %2201 = vmatprep.subr.bf16.mxu0 %v1762
    %2202 = vmatpush1.bf16.msra.mxu0 %v1761
    %2203 = vmatprep.subr.bf16.mxu0 %v1770
    %2204 = vmatpush1.bf16.msra.mxu0 %v1769
    %2205 = vmatprep.subr.bf16.mxu0 %v1778
    %2206 = vmatpush1.bf16.msra.mxu0 %v1777
    %2207 = vmatprep.subr.bf16.mxu0 0
    %2208 = vmatpush1.bf16.msra.mxu0 0
    %2209 = vmatprep.subr.bf16.mxu0 0
    %2210 = vmatpush1.bf16.msra.mxu0 0
    %2211 = vmatprep.subr.bf16.mxu0 0
    %2212 = vmatpush1.bf16.msra.mxu0 0
    %2213 = vmatprep.subr.bf16.mxu0 0
    %2214 = vmatpush1.bf16.msra.mxu0 0
    %2215 = vmatprep.subr.bf16.mxu0 0
    %2216 = vmatpush1.bf16.msra.mxu0 0
    %2217 = vmatprep.subr.bf16.mxu0 0
    %2218 = vmatpush1.bf16.msra.mxu0 0
    %2219 = vmatprep.subr.bf16.mxu0 0
    %2220 = vmatpush1.bf16.msra.mxu0 0
    %2221 = vmatprep.subr.bf16.mxu0 0
    %2222 = vmatpush1.bf16.msra.mxu0 0
    %2223 = vmatprep.mubr.bf16.mxu0 0
    %2224 = vmatmul.mubr.bf16.gmra.mrb[0].mxu0 %v499
    %v2225 = vpop.f32.mrb[0].mxu0
    %v2226 = vadd.f32 %v2183, %v2225
    %v2227 = vpop.f32.mrb[0].mxu0
    %v2228 = vadd.f32 %v2185, %v2227
    %v2229 = vpop.f32.mrb[0].mxu0
    %v2230 = vadd.f32 %v2187, %v2229
    %v2231 = vpop.f32.mrb[0].mxu0
    %v2232 = vadd.f32 %v2189, %v2231
    %2233 = vdwg.mxu0
    %2234 = vmatprep.subr.bf16.mxu0 %v1468
    %2235 = vmatpush1.bf16.msra.mxu0 %v1467
    %2236 = vmatprep.subr.bf16.mxu0 %v1476
    %2237 = vmatpush1.bf16.msra.mxu0 %v1475
    %2238 = vmatprep.subr.bf16.mxu0 %v1484
    %2239 = vmatpush1.bf16.msra.mxu0 %v1483
    %2240 = vmatprep.subr.bf16.mxu0 %v1492
    %2241 = vmatpush1.bf16.msra.mxu0 %v1491
    %2242 = vmatprep.subr.bf16.mxu0 %v1500
    %2243 = vmatpush1.bf16.msra.mxu0 %v1499
    %2244 = vmatprep.subr.bf16.mxu0 %v1508
    %2245 = vmatpush1.bf16.msra.mxu0 %v1507
    %2246 = vmatprep.subr.bf16.mxu0 %v1516
    %2247 = vmatpush1.bf16.msra.mxu0 %v1515
    %2248 = vmatprep.subr.bf16.mxu0 %v1524
    %2249 = vmatpush1.bf16.msra.mxu0 %v1523
    %2250 = vmatprep.subr.bf16.mxu0 %v1532
    %2251 = vmatpush1.bf16.msra.mxu0 %v1531
    %2252 = vmatprep.subr.bf16.mxu0 %v1540
    %2253 = vmatpush1.bf16.msra.mxu0 %v1539
    %2254 = vmatprep.subr.bf16.mxu0 %v1548
    %2255 = vmatpush1.bf16.msra.mxu0 %v1547
    %2256 = vmatprep.subr.bf16.mxu0 %v1556
    %2257 = vmatpush1.bf16.msra.mxu0 %v1555
    %2258 = vmatprep.subr.bf16.mxu0 %v1564
    %2259 = vmatpush1.bf16.msra.mxu0 %v1563
    %2260 = vmatprep.subr.bf16.mxu0 %v1572
    %2261 = vmatpush1.bf16.msra.mxu0 %v1571
    %2262 = vmatprep.subr.bf16.mxu0 %v1580
    %2263 = vmatpush1.bf16.msra.mxu0 %v1579
    %2264 = vmatprep.subr.bf16.mxu0 %v1588
    %2265 = vmatpush1.bf16.msra.mxu0 %v1587
    %2266 = vmatprep.mubr.bf16.mxu0 %v496
    %2267 = vmatmul.mubr.bf16.gmra.mrb[0].mxu0 %v495
    %v2268 = vpop.f32.mrb[0].mxu0
    %v2269 = vadd.f32 %v450, %v2268
    %v2270 = vpop.f32.mrb[0].mxu0
    %v2271 = vadd.f32 %v454, %v2270
    %v2272 = vpop.f32.mrb[0].mxu0
    %v2273 = vadd.f32 %v450, %v2272
    %v2274 = vpop.f32.mrb[0].mxu0
    %v2275 = vadd.f32 %v454, %v2274
    %2276 = vdwg.mxu0
    %2277 = vmatprep.subr.bf16.mxu0 %v1596
    %2278 = vmatpush1.bf16.msra.mxu0 %v1595
    %2279 = vmatprep.subr.bf16.mxu0 %v1604
    %2280 = vmatpush1.bf16.msra.mxu0 %v1603
    %2281 = vmatprep.subr.bf16.mxu0 %v1612
    %2282 = vmatpush1.bf16.msra.mxu0 %v1611
    %2283 = vmatprep.subr.bf16.mxu0 %v1620
    %2284 = vmatpush1.bf16.msra.mxu0 %v1619
    %2285 = vmatprep.subr.bf16.mxu0 %v1628
    %2286 = vmatpush1.bf16.msra.mxu0 %v1627
    %2287 = vmatprep.subr.bf16.mxu0 %v1636
    %2288 = vmatpush1.bf16.msra.mxu0 %v1635
    %2289 = vmatprep.subr.bf16.mxu0 %v1644
    %2290 = vmatpush1.bf16.msra.mxu0 %v1643
    %2291 = vmatprep.subr.bf16.mxu0 %v1652
    %2292 = vmatpush1.bf16.msra.mxu0 %v1651
    %2293 = vmatprep.subr.bf16.mxu0 %v1660
    %2294 = vmatpush1.bf16.msra.mxu0 %v1659
    %2295 = vmatprep.subr.bf16.mxu0 %v1668
    %2296 = vmatpush1.bf16.msra.mxu0 %v1667
    %2297 = vmatprep.subr.bf16.mxu0 %v1676
    %2298 = vmatpush1.bf16.msra.mxu0 %v1675
    %2299 = vmatprep.subr.bf16.mxu0 %v1684
    %2300 = vmatpush1.bf16.msra.mxu0 %v1683
    %2301 = vmatprep.subr.bf16.mxu0 %v1692
    %2302 = vmatpush1.bf16.msra.mxu0 %v1691
    %2303 = vmatprep.subr.bf16.mxu0 %v1700
    %2304 = vmatpush1.bf16.msra.mxu0 %v1699
    %2305 = vmatprep.subr.bf16.mxu0 %v1708
    %2306 = vmatpush1.bf16.msra.mxu0 %v1707
    %2307 = vmatprep.subr.bf16.mxu0 %v1716
    %2308 = vmatpush1.bf16.msra.mxu0 %v1715
    %2309 = vmatprep.mubr.bf16.mxu0 %v498
    %2310 = vmatmul.mubr.bf16.gmra.mrb[0].mxu0 %v497
    %v2311 = vpop.f32.mrb[0].mxu0
    %v2312 = vadd.f32 %v2269, %v2311
    %v2313 = vpop.f32.mrb[0].mxu0
    %v2314 = vadd.f32 %v2271, %v2313
    %v2315 = vpop.f32.mrb[0].mxu0
    %v2316 = vadd.f32 %v2273, %v2315
    %v2317 = vpop.f32.mrb[0].mxu0
    %v2318 = vadd.f32 %v2275, %v2317
    %2319 = vdwg.mxu0
    %2320 = vmatprep.subr.bf16.mxu0 %v1724
    %2321 = vmatpush1.bf16.msra.mxu0 %v1723
    %2322 = vmatprep.subr.bf16.mxu0 %v1732
    %2323 = vmatpush1.bf16.msra.mxu0 %v1731
    %2324 = vmatprep.subr.bf16.mxu0 %v1740
    %2325 = vmatpush1.bf16.msra.mxu0 %v1739
    %2326 = vmatprep.subr.bf16.mxu0 %v1748
    %2327 = vmatpush1.bf16.msra.mxu0 %v1747
    %2328 = vmatprep.subr.bf16.mxu0 %v1756
    %2329 = vmatpush1.bf16.msra.mxu0 %v1755
    %2330 = vmatprep.subr.bf16.mxu0 %v1764
    %2331 = vmatpush1.bf16.msra.mxu0 %v1763
    %2332 = vmatprep.subr.bf16.mxu0 %v1772
    %2333 = vmatpush1.bf16.msra.mxu0 %v1771
    %2334 = vmatprep.subr.bf16.mxu0 %v1780
    %2335 = vmatpush1.bf16.msra.mxu0 %v1779
    %2336 = vmatprep.subr.bf16.mxu0 0
    %2337 = vmatpush1.bf16.msra.mxu0 0
    %2338 = vmatprep.subr.bf16.mxu0 0
    %2339 = vmatpush1.bf16.msra.mxu0 0
    %2340 = vmatprep.subr.bf16.mxu0 0
    %2341 = vmatpush1.bf16.msra.mxu0 0
    %2342 = vmatprep.subr.bf16.mxu0 0
    %2343 = vmatpush1.bf16.msra.mxu0 0
    %2344 = vmatprep.subr.bf16.mxu0 0
    %2345 = vmatpush1.bf16.msra.mxu0 0
    %2346 = vmatprep.subr.bf16.mxu0 0
    %2347 = vmatpush1.bf16.msra.mxu0 0
    %2348 = vmatprep.subr.bf16.mxu0 0
    %2349 = vmatpush1.bf16.msra.mxu0 0
    %2350 = vmatprep.subr.bf16.mxu0 0
    %2351 = vmatpush1.bf16.msra.mxu0 0
    %2352 = vmatprep.mubr.bf16.mxu0 0
    %2353 = vmatmul.mubr.bf16.gmra.mrb[0].mxu0 %v499
    %v2354 = vpop.f32.mrb[0].mxu0
    %v2355 = vadd.f32 %v2312, %v2354
    %v2356 = vpop.f32.mrb[0].mxu0
    %v2357 = vadd.f32 %v2314, %v2356
    %v2358 = vpop.f32.mrb[0].mxu0
    %v2359 = vadd.f32 %v2316, %v2358
    %v2360 = vpop.f32.mrb[0].mxu0
    %v2361 = vadd.f32 %v2318, %v2360
    %2362 = vdwg.mxu0
    %2363 = vmatprep.subr.bf16.mxu0 %v1470
    %2364 = vmatpush1.bf16.msra.mxu0 %v1469
    %2365 = vmatprep.subr.bf16.mxu0 %v1478
    %2366 = vmatpush1.bf16.msra.mxu0 %v1477
    %2367 = vmatprep.subr.bf16.mxu0 %v1486
    %2368 = vmatpush1.bf16.msra.mxu0 %v1485
    %2369 = vmatprep.subr.bf16.mxu0 %v1494
    %2370 = vmatpush1.bf16.msra.mxu0 %v1493
    %2371 = vmatprep.subr.bf16.mxu0 %v1502
    %2372 = vmatpush1.bf16.msra.mxu0 %v1501
    %2373 = vmatprep.subr.bf16.mxu0 %v1510
    %2374 = vmatpush1.bf16.msra.mxu0 %v1509
    %2375 = vmatprep.subr.bf16.mxu0 %v1518
    %2376 = vmatpush1.bf16.msra.mxu0 %v1517
    %2377 = vmatprep.subr.bf16.mxu0 %v1526
    %2378 = vmatpush1.bf16.msra.mxu0 %v1525
    %2379 = vmatprep.subr.bf16.mxu0 %v1534
    %2380 = vmatpush1.bf16.msra.mxu0 %v1533
    %2381 = vmatprep.subr.bf16.mxu0 %v1542
    %2382 = vmatpush1.bf16.msra.mxu0 %v1541
    %2383 = vmatprep.subr.bf16.mxu0 %v1550
    %2384 = vmatpush1.bf16.msra.mxu0 %v1549
    %2385 = vmatprep.subr.bf16.mxu0 %v1558
    %2386 = vmatpush1.bf16.msra.mxu0 %v1557
    %2387 = vmatprep.subr.bf16.mxu0 %v1566
    %2388 = vmatpush1.bf16.msra.mxu0 %v1565
    %2389 = vmatprep.subr.bf16.mxu0 %v1574
    %2390 = vmatpush1.bf16.msra.mxu0 %v1573
    %2391 = vmatprep.subr.bf16.mxu0 %v1582
    %2392 = vmatpush1.bf16.msra.mxu0 %v1581
    %2393 = vmatprep.subr.bf16.mxu0 %v1590
    %2394 = vmatpush1.bf16.msra.mxu0 %v1589
    %2395 = vmatprep.mubr.bf16.mxu0 %v496
    %2396 = vmatmul.mubr.bf16.gmra.mrb[0].mxu0 %v495
    %v2397 = vpop.f32.mrb[0].mxu0
    %v2398 = vadd.f32 %v458, %v2397
    %v2399 = vpop.f32.mrb[0].mxu0
    %v2400 = vadd.f32 %v462, %v2399
    %v2401 = vpop.f32.mrb[0].mxu0
    %v2402 = vadd.f32 %v458, %v2401
    %v2403 = vpop.f32.mrb[0].mxu0
    %v2404 = vadd.f32 %v462, %v2403
    %2405 = vdwg.mxu0
    %2406 = vmatprep.subr.bf16.mxu0 %v1598
    %2407 = vmatpush1.bf16.msra.mxu0 %v1597
    %2408 = vmatprep.subr.bf16.mxu0 %v1606
    %2409 = vmatpush1.bf16.msra.mxu0 %v1605
    %2410 = vmatprep.subr.bf16.mxu0 %v1614
    %2411 = vmatpush1.bf16.msra.mxu0 %v1613
    %2412 = vmatprep.subr.bf16.mxu0 %v1622
    %2413 = vmatpush1.bf16.msra.mxu0 %v1621
    %2414 = vmatprep.subr.bf16.mxu0 %v1630
    %2415 = vmatpush1.bf16.msra.mxu0 %v1629
    %2416 = vmatprep.subr.bf16.mxu0 %v1638
    %2417 = vmatpush1.bf16.msra.mxu0 %v1637
    %2418 = vmatprep.subr.bf16.mxu0 %v1646
    %2419 = vmatpush1.bf16.msra.mxu0 %v1645
    %2420 = vmatprep.subr.bf16.mxu0 %v1654
    %2421 = vmatpush1.bf16.msra.mxu0 %v1653
    %2422 = vmatprep.subr.bf16.mxu0 %v1662
    %2423 = vmatpush1.bf16.msra.mxu0 %v1661
    %2424 = vmatprep.subr.bf16.mxu0 %v1670
    %2425 = vmatpush1.bf16.msra.mxu0 %v1669
    %2426 = vmatprep.subr.bf16.mxu0 %v1678
    %2427 = vmatpush1.bf16.msra.mxu0 %v1677
    %2428 = vmatprep.subr.bf16.mxu0 %v1686
    %2429 = vmatpush1.bf16.msra.mxu0 %v1685
    %2430 = vmatprep.subr.bf16.mxu0 %v1694
    %2431 = vmatpush1.bf16.msra.mxu0 %v1693
    %2432 = vmatprep.subr.bf16.mxu0 %v1702
    %2433 = vmatpush1.bf16.msra.mxu0 %v1701
    %2434 = vmatprep.subr.bf16.mxu0 %v1710
    %2435 = vmatpush1.bf16.msra.mxu0 %v1709
    %2436 = vmatprep.subr.bf16.mxu0 %v1718
    %2437 = vmatpush1.bf16.msra.mxu0 %v1717
    %2438 = vmatprep.mubr.bf16.mxu0 %v498
    %2439 = vmatmul.mubr.bf16.gmra.mrb[0].mxu0 %v497
    %v2440 = vpop.f32.mrb[0].mxu0
    %v2441 = vadd.f32 %v2398, %v2440
    %v2442 = vpop.f32.mrb[0].mxu0
    %v2443 = vadd.f32 %v2400, %v2442
    %v2444 = vpop.f32.mrb[0].mxu0
    %v2445 = vadd.f32 %v2402, %v2444
    %v2446 = vpop.f32.mrb[0].mxu0
    %v2447 = vadd.f32 %v2404, %v2446
    %2448 = vdwg.mxu0
    %2449 = vmatprep.subr.bf16.mxu0 %v1726
    %2450 = vmatpush1.bf16.msra.mxu0 %v1725
    %2451 = vmatprep.subr.bf16.mxu0 %v1734
    %2452 = vmatpush1.bf16.msra.mxu0 %v1733
    %2453 = vmatprep.subr.bf16.mxu0 %v1742
    %2454 = vmatpush1.bf16.msra.mxu0 %v1741
    %2455 = vmatprep.subr.bf16.mxu0 %v1750
    %2456 = vmatpush1.bf16.msra.mxu0 %v1749
    %2457 = vmatprep.subr.bf16.mxu0 %v1758
    %2458 = vmatpush1.bf16.msra.mxu0 %v1757
    %2459 = vmatprep.subr.bf16.mxu0 %v1766
    %2460 = vmatpush1.bf16.msra.mxu0 %v1765
    %2461 = vmatprep.subr.bf16.mxu0 %v1774
    %2462 = vmatpush1.bf16.msra.mxu0 %v1773
    %2463 = vmatprep.subr.bf16.mxu0 %v1782
    %2464 = vmatpush1.bf16.msra.mxu0 %v1781
    %2465 = vmatprep.subr.bf16.mxu0 0
    %2466 = vmatpush1.bf16.msra.mxu0 0
    %2467 = vmatprep.subr.bf16.mxu0 0
    %2468 = vmatpush1.bf16.msra.mxu0 0
    %2469 = vmatprep.subr.bf16.mxu0 0
    %2470 = vmatpush1.bf16.msra.mxu0 0
    %2471 = vmatprep.subr.bf16.mxu0 0
    %2472 = vmatpush1.bf16.msra.mxu0 0
    %2473 = vmatprep.subr.bf16.mxu0 0
    %2474 = vmatpush1.bf16.msra.mxu0 0
    %2475 = vmatprep.subr.bf16.mxu0 0
    %2476 = vmatpush1.bf16.msra.mxu0 0
    %2477 = vmatprep.subr.bf16.mxu0 0
    %2478 = vmatpush1.bf16.msra.mxu0 0
    %2479 = vmatprep.subr.bf16.mxu0 0
    %2480 = vmatpush1.bf16.msra.mxu0 0
    %2481 = vmatprep.mubr.bf16.mxu0 0
    %2482 = vmatmul.mubr.bf16.gmra.mrb[0].mxu0 %v499
    %v2483 = vpop.f32.mrb[0].mxu0
    %v2484 = vadd.f32 %v2441, %v2483
    %v2485 = vpop.f32.mrb[0].mxu0
    %v2486 = vadd.f32 %v2443, %v2485
    %v2487 = vpop.f32.mrb[0].mxu0
    %v2488 = vadd.f32 %v2445, %v2487
    %v2489 = vpop.f32.mrb[0].mxu0
    %v2490 = vadd.f32 %v2447, %v2489
    %2491 = vdwg.mxu0
    %2492 = vmatprep.subr.bf16.mxu0 %v1472
    %2493 = vmatpush1.bf16.msra.mxu0 %v1471
    %2494 = vmatprep.subr.bf16.mxu0 %v1480
    %2495 = vmatpush1.bf16.msra.mxu0 %v1479
    %2496 = vmatprep.subr.bf16.mxu0 %v1488
    %2497 = vmatpush1.bf16.msra.mxu0 %v1487
    %2498 = vmatprep.subr.bf16.mxu0 %v1496
    %2499 = vmatpush1.bf16.msra.mxu0 %v1495
    %2500 = vmatprep.subr.bf16.mxu0 %v1504
    %2501 = vmatpush1.bf16.msra.mxu0 %v1503
    %2502 = vmatprep.subr.bf16.mxu0 %v1512
    %2503 = vmatpush1.bf16.msra.mxu0 %v1511
    %2504 = vmatprep.subr.bf16.mxu0 %v1520
    %2505 = vmatpush1.bf16.msra.mxu0 %v1519
    %2506 = vmatprep.subr.bf16.mxu0 %v1528
    %2507 = vmatpush1.bf16.msra.mxu0 %v1527
    %2508 = vmatprep.subr.bf16.mxu0 %v1536
    %2509 = vmatpush1.bf16.msra.mxu0 %v1535
    %2510 = vmatprep.subr.bf16.mxu0 %v1544
    %2511 = vmatpush1.bf16.msra.mxu0 %v1543
    %2512 = vmatprep.subr.bf16.mxu0 %v1552
    %2513 = vmatpush1.bf16.msra.mxu0 %v1551
    %2514 = vmatprep.subr.bf16.mxu0 %v1560
    %2515 = vmatpush1.bf16.msra.mxu0 %v1559
    %2516 = vmatprep.subr.bf16.mxu0 %v1568
    %2517 = vmatpush1.bf16.msra.mxu0 %v1567
    %2518 = vmatprep.subr.bf16.mxu0 %v1576
    %2519 = vmatpush1.bf16.msra.mxu0 %v1575
    %2520 = vmatprep.subr.bf16.mxu0 %v1584
    %2521 = vmatpush1.bf16.msra.mxu0 %v1583
    %2522 = vmatprep.subr.bf16.mxu0 %v1592
    %2523 = vmatpush1.bf16.msra.mxu0 %v1591
    %2524 = vmatprep.mubr.bf16.mxu0 %v496
    %2525 = vmatmul.mubr.bf16.gmra.mrb[0].mxu0 %v495
    %v2526 = vpop.f32.mrb[0].mxu0
    %v2527 = vadd.f32 %v466, %v2526
    %v2528 = vpop.f32.mrb[0].mxu0
    %v2529 = vadd.f32 %v470, %v2528
    %v2530 = vpop.f32.mrb[0].mxu0
    %v2531 = vadd.f32 %v466, %v2530
    %v2532 = vpop.f32.mrb[0].mxu0
    %v2533 = vadd.f32 %v470, %v2532
    %2534 = vdwg.mxu0
    %2535 = vmatprep.subr.bf16.mxu0 %v1600
    %2536 = vmatpush1.bf16.msra.mxu0 %v1599
    %2537 = vmatprep.subr.bf16.mxu0 %v1608
    %2538 = vmatpush1.bf16.msra.mxu0 %v1607
    %2539 = vmatprep.subr.bf16.mxu0 %v1616
    %2540 = vmatpush1.bf16.msra.mxu0 %v1615
    %2541 = vmatprep.subr.bf16.mxu0 %v1624
    %2542 = vmatpush1.bf16.msra.mxu0 %v1623
    %2543 = vmatprep.subr.bf16.mxu0 %v1632
    %2544 = vmatpush1.bf16.msra.mxu0 %v1631
    %2545 = vmatprep.subr.bf16.mxu0 %v1640
    %2546 = vmatpush1.bf16.msra.mxu0 %v1639
    %2547 = vmatprep.subr.bf16.mxu0 %v1648
    %2548 = vmatpush1.bf16.msra.mxu0 %v1647
    %2549 = vmatprep.subr.bf16.mxu0 %v1656
    %2550 = vmatpush1.bf16.msra.mxu0 %v1655
    %2551 = vmatprep.subr.bf16.mxu0 %v1664
    %2552 = vmatpush1.bf16.msra.mxu0 %v1663
    %2553 = vmatprep.subr.bf16.mxu0 %v1672
    %2554 = vmatpush1.bf16.msra.mxu0 %v1671
    %2555 = vmatprep.subr.bf16.mxu0 %v1680
    %2556 = vmatpush1.bf16.msra.mxu0 %v1679
    %2557 = vmatprep.subr.bf16.mxu0 %v1688
    %2558 = vmatpush1.bf16.msra.mxu0 %v1687
    %2559 = vmatprep.subr.bf16.mxu0 %v1696
    %2560 = vmatpush1.bf16.msra.mxu0 %v1695
    %2561 = vmatprep.subr.bf16.mxu0 %v1704
    %2562 = vmatpush1.bf16.msra.mxu0 %v1703
    %2563 = vmatprep.subr.bf16.mxu0 %v1712
    %2564 = vmatpush1.bf16.msra.mxu0 %v1711
    %2565 = vmatprep.subr.bf16.mxu0 %v1720
    %2566 = vmatpush1.bf16.msra.mxu0 %v1719
    %2567 = vmatprep.mubr.bf16.mxu0 %v498
    %2568 = vmatmul.mubr.bf16.gmra.mrb[0].mxu0 %v497
    %v2569 = vpop.f32.mrb[0].mxu0
    %v2570 = vadd.f32 %v2527, %v2569
    %v2571 = vpop.f32.mrb[0].mxu0
    %v2572 = vadd.f32 %v2529, %v2571
    %v2573 = vpop.f32.mrb[0].mxu0
    %v2574 = vadd.f32 %v2531, %v2573
    %v2575 = vpop.f32.mrb[0].mxu0
    %v2576 = vadd.f32 %v2533, %v2575
    %2577 = vdwg.mxu0
    %2578 = vmatprep.subr.bf16.mxu0 %v1728
    %2579 = vmatpush1.bf16.msra.mxu0 %v1727
    %2580 = vmatprep.subr.bf16.mxu0 %v1736
    %2581 = vmatpush1.bf16.msra.mxu0 %v1735
    %2582 = vmatprep.subr.bf16.mxu0 %v1744
    %2583 = vmatpush1.bf16.msra.mxu0 %v1743
    %2584 = vmatprep.subr.bf16.mxu0 %v1752
    %2585 = vmatpush1.bf16.msra.mxu0 %v1751
    %2586 = vmatprep.subr.bf16.mxu0 %v1760
    %2587 = vmatpush1.bf16.msra.mxu0 %v1759
    %2588 = vmatprep.subr.bf16.mxu0 %v1768
    %2589 = vmatpush1.bf16.msra.mxu0 %v1767
    %2590 = vmatprep.subr.bf16.mxu0 %v1776
    %2591 = vmatpush1.bf16.msra.mxu0 %v1775
    %2592 = vmatprep.subr.bf16.mxu0 %v1784
    %2593 = vmatpush1.bf16.msra.mxu0 %v1783
    %2594 = vmatprep.subr.bf16.mxu0 0
    %2595 = vmatpush1.bf16.msra.mxu0 0
    %2596 = vmatprep.subr.bf16.mxu0 0
    %2597 = vmatpush1.bf16.msra.mxu0 0
    %2598 = vmatprep.subr.bf16.mxu0 0
    %2599 = vmatpush1.bf16.msra.mxu0 0
    %2600 = vmatprep.subr.bf16.mxu0 0
    %2601 = vmatpush1.bf16.msra.mxu0 0
    %2602 = vmatprep.subr.bf16.mxu0 0
    %2603 = vmatpush1.bf16.msra.mxu0 0
    %2604 = vmatprep.subr.bf16.mxu0 0
    %2605 = vmatpush1.bf16.msra.mxu0 0
    %2606 = vmatprep.subr.bf16.mxu0 0
    %2607 = vmatpush1.bf16.msra.mxu0 0
    %2608 = vmatprep.subr.bf16.mxu0 0
    %2609 = vmatpush1.bf16.msra.mxu0 0
    %2610 = vmatprep.mubr.bf16.mxu0 0
    %2611 = vmatmul.mubr.bf16.gmra.mrb[0].mxu0 %v499
    %v2612 = vpop.f32.mrb[0].mxu0
    %v2613 = vadd.f32 %v2570, %v2612
    %v2614 = vpop.f32.mrb[0].mxu0
    %v2615 = vadd.f32 %v2572, %v2614
    %v2616 = vpop.f32.mrb[0].mxu0
    %v2617 = vadd.f32 %v2574, %v2616
    %v2618 = vpop.f32.mrb[0].mxu0
    %v2619 = vadd.f32 %v2576, %v2618
    %2620 = vdwg.mxu0
    %v2621 = vmax.f32 %v2226, 0.0
    %v2622 = vmax.f32 %v2228, 0.0
    %v2623 = vmax.f32 %v2355, 0.0
    %v2624 = vmax.f32 %v2357, 0.0
    %v2625 = vmax.f32 %v2484, 0.0
    %v2626 = vmax.f32 %v2486, 0.0
    %v2627 = vmax.f32 %v2613, 0.0
    %v2628 = vmax.f32 %v2615, 0.0
    %v2629 = vmax.f32 %v2230, 0.0
    %v2630 = vmax.f32 %v2232, 0.0
    %v2631 = vmax.f32 %v2359, 0.0
    %v2632 = vmax.f32 %v2361, 0.0
    %v2633 = vmax.f32 %v2488, 0.0
    %v2634 = vmax.f32 %v2490, 0.0
    %v2635 = vmax.f32 %v2617, 0.0
    %v2636 = vmax.f32 %v2619, 0.0
    %v2637 = vpack.c.bf16 %v2629, %v2621
    %v2638 = vpack.c.bf16 %v2630, %v2622
    %v2639 = vpack.c.bf16 %v2631, %v2623
    %v2640 = vpack.c.bf16 %v2632, %v2624
    %v2641 = vpack.c.bf16 %v2633, %v2625
    %v2642 = vpack.c.bf16 %v2634, %v2626
    %v2643 = vpack.c.bf16 %v2635, %v2627
    %v2644 = vpack.c.bf16 %v2636, %v2628
    %v2645 = vld [vmem:[#allocation4] sm:$0xff]
    %v2646 = vld [vmem:[#allocation4 + $0x8] sm:$0xff]
    %v2647 = vld [vmem:[#allocation4 + $0x10] sm:$0xff]
    %v2648 = vld [vmem:[#allocation4 + $0x18] sm:$0xff]
    %v2649 = vld [vmem:[#allocation4 + $0x20] sm:$0xff]
    %v2650 = vld [vmem:[#allocation4 + $0x28] sm:$0xff]
    %v2651 = vld [vmem:[#allocation4 + $0x30] sm:$0xff]
    %v2652 = vld [vmem:[#allocation4 + $0x38] sm:$0xff]
    %v2653 = vld [vmem:[#allocation4 + $0x40] sm:$0xff]
    %v2654 = vld [vmem:[#allocation4 + $0x48] sm:$0xff]
    %v2655 = vld [vmem:[#allocation4 + $0x50] sm:$0xff]
    %v2656 = vld [vmem:[#allocation4 + $0x58] sm:$0xff]
    %v2657 = vld [vmem:[#allocation4 + $0x60] sm:$0xff]
    %v2658 = vld [vmem:[#allocation4 + $0x68] sm:$0xff]
    %v2659 = vld [vmem:[#allocation4 + $0x70] sm:$0xff]
    %v2660 = vld [vmem:[#allocation4 + $0x78] sm:$0xff]
    %v2661 = vld [vmem:[#allocation4 + $0x80] sm:$0xff]
    %v2662 = vld [vmem:[#allocation4 + $0x88] sm:$0xff]
    %v2663 = vld [vmem:[#allocation4 + $0x90] sm:$0xff]
    %v2664 = vld [vmem:[#allocation4 + $0x98] sm:$0xff]
    %v2665 = vld [vmem:[#allocation4 + $0xa0] sm:$0xff]
    %v2666 = vld [vmem:[#allocation4 + $0xa8] sm:$0xff]
    %v2667 = vld [vmem:[#allocation4 + $0xb0] sm:$0xff]
    %v2668 = vld [vmem:[#allocation4 + $0xb8] sm:$0xff]
    %v2669 = vld [vmem:[#allocation4 + $0xc0] sm:$0xff]
    %v2670 = vld [vmem:[#allocation4 + $0xc8] sm:$0xff]
    %v2671 = vld [vmem:[#allocation4 + $0xd0] sm:$0xff]
    %v2672 = vld [vmem:[#allocation4 + $0xd8] sm:$0xff]
    %v2673 = vld [vmem:[#allocation4 + $0xe0] sm:$0xff]
    %v2674 = vld [vmem:[#allocation4 + $0xe8] sm:$0xff]
    %v2675 = vld [vmem:[#allocation4 + $0xf0] sm:$0xff]
    %v2676 = vld [vmem:[#allocation4 + $0xf8] sm:$0xff]
    %v2677 = vld [vmem:[#allocation4 + $0x100] sm:$0xff]
    %v2678 = vld [vmem:[#allocation4 + $0x108] sm:$0xff]
    %v2679 = vld [vmem:[#allocation4 + $0x110] sm:$0xff]
    %v2680 = vld [vmem:[#allocation4 + $0x118] sm:$0xff]
    %v2681 = vld [vmem:[#allocation4 + $0x120] sm:$0xff]
    %v2682 = vld [vmem:[#allocation4 + $0x128] sm:$0xff]
    %v2683 = vld [vmem:[#allocation4 + $0x130] sm:$0xff]
    %v2684 = vld [vmem:[#allocation4 + $0x138] sm:$0xff]
    %v2685 = vld [vmem:[#allocation4 + $0x140] sm:$0xff]
    %v2686 = vld [vmem:[#allocation4 + $0x148] sm:$0xff]
    %v2687 = vld [vmem:[#allocation4 + $0x150] sm:$0xff]
    %v2688 = vld [vmem:[#allocation4 + $0x158] sm:$0xff]
    %v2689 = vld [vmem:[#allocation4 + $0x160] sm:$0xff]
    %v2690 = vld [vmem:[#allocation4 + $0x168] sm:$0xff]
    %v2691 = vld [vmem:[#allocation4 + $0x170] sm:$0xff]
    %v2692 = vld [vmem:[#allocation4 + $0x178] sm:$0xff]
    %v2693 = vld [vmem:[#allocation4 + $0x180] sm:$0xff]
    %v2694 = vld [vmem:[#allocation4 + $0x188] sm:$0xff]
    %v2695 = vld [vmem:[#allocation4 + $0x190] sm:$0xff]
    %v2696 = vld [vmem:[#allocation4 + $0x198] sm:$0xff]
    %v2697 = vld [vmem:[#allocation4 + $0x1a0] sm:$0xff]
    %v2698 = vld [vmem:[#allocation4 + $0x1a8] sm:$0xff]
    %v2699 = vld [vmem:[#allocation4 + $0x1b0] sm:$0xff]
    %v2700 = vld [vmem:[#allocation4 + $0x1b8] sm:$0xff]
    %v2701 = vld [vmem:[#allocation4 + $0x1c0] sm:$0xff]
    %v2702 = vld [vmem:[#allocation4 + $0x1c8] sm:$0xff]
    %v2703 = vld [vmem:[#allocation4 + $0x1d0] sm:$0xff]
    %v2704 = vld [vmem:[#allocation4 + $0x1d8] sm:$0xff]
    %v2705 = vld [vmem:[#allocation4 + $0x1e0] sm:$0xff]
    %v2706 = vld [vmem:[#allocation4 + $0x1e8] sm:$0xff]
    %v2707 = vld [vmem:[#allocation4 + $0x1f0] sm:$0xff]
    %v2708 = vld [vmem:[#allocation4 + $0x1f8] sm:$0xff]
    %v2709 = vld [vmem:[#allocation4 + $0x200] sm:$0xff]
    %v2710 = vld [vmem:[#allocation4 + $0x208] sm:$0xff]
    %v2711 = vld [vmem:[#allocation4 + $0x210] sm:$0xff]
    %v2712 = vld [vmem:[#allocation4 + $0x218] sm:$0xff]
    %v2713 = vld [vmem:[#allocation4 + $0x220] sm:$0xff]
    %v2714 = vld [vmem:[#allocation4 + $0x228] sm:$0xff]
    %v2715 = vld [vmem:[#allocation4 + $0x230] sm:$0xff]
    %v2716 = vld [vmem:[#allocation4 + $0x238] sm:$0xff]
    %v2717 = vld [vmem:[#allocation4 + $0x240] sm:$0xff]
    %v2718 = vld [vmem:[#allocation4 + $0x248] sm:$0xff]
    %v2719 = vld [vmem:[#allocation4 + $0x250] sm:$0xff]
    %v2720 = vld [vmem:[#allocation4 + $0x258] sm:$0xff]
    %v2721 = vld [vmem:[#allocation4 + $0x260] sm:$0xff]
    %v2722 = vld [vmem:[#allocation4 + $0x268] sm:$0xff]
    %v2723 = vld [vmem:[#allocation4 + $0x270] sm:$0xff]
    %v2724 = vld [vmem:[#allocation4 + $0x278] sm:$0xff]
    %v2725 = vld [vmem:[#allocation4 + $0x280] sm:$0xff]
    %v2726 = vld [vmem:[#allocation4 + $0x288] sm:$0xff]
    %v2727 = vld [vmem:[#allocation4 + $0x290] sm:$0xff]
    %v2728 = vld [vmem:[#allocation4 + $0x298] sm:$0xff]
    %v2729 = vld [vmem:[#allocation4 + $0x2a0] sm:$0xff]
    %v2730 = vld [vmem:[#allocation4 + $0x2a8] sm:$0xff]
    %v2731 = vld [vmem:[#allocation4 + $0x2b0] sm:$0xff]
    %v2732 = vld [vmem:[#allocation4 + $0x2b8] sm:$0xff]
    %v2733 = vld [vmem:[#allocation4 + $0x2c0] sm:$0xff]
    %v2734 = vld [vmem:[#allocation4 + $0x2c8] sm:$0xff]
    %v2735 = vld [vmem:[#allocation4 + $0x2d0] sm:$0xff]
    %v2736 = vld [vmem:[#allocation4 + $0x2d8] sm:$0xff]
    %v2737 = vld [vmem:[#allocation4 + $0x2e0] sm:$0xff]
    %v2738 = vld [vmem:[#allocation4 + $0x2e8] sm:$0xff]
    %v2739 = vld [vmem:[#allocation4 + $0x2f0] sm:$0xff]
    %v2740 = vld [vmem:[#allocation4 + $0x2f8] sm:$0xff]
    %v2741 = vld [vmem:[#allocation4 + $0x300] sm:$0xff]
    %v2742 = vld [vmem:[#allocation4 + $0x308] sm:$0xff]
    %v2743 = vld [vmem:[#allocation4 + $0x310] sm:$0xff]
    %v2744 = vld [vmem:[#allocation4 + $0x318] sm:$0xff]
    %v2745 = vld [vmem:[#allocation4 + $0x320] sm:$0xff]
    %v2746 = vld [vmem:[#allocation4 + $0x328] sm:$0xff]
    %v2747 = vld [vmem:[#allocation4 + $0x330] sm:$0xff]
    %v2748 = vld [vmem:[#allocation4 + $0x338] sm:$0xff]
    %v2749 = vld [vmem:[#allocation4 + $0x340] sm:$0xff]
    %v2750 = vld [vmem:[#allocation4 + $0x348] sm:$0xff]
    %v2751 = vld [vmem:[#allocation4 + $0x350] sm:$0xff]
    %v2752 = vld [vmem:[#allocation4 + $0x358] sm:$0xff]
    %v2753 = vld [vmem:[#allocation4 + $0x360] sm:$0xff]
    %v2754 = vld [vmem:[#allocation4 + $0x368] sm:$0xff]
    %v2755 = vld [vmem:[#allocation4 + $0x370] sm:$0xff]
    %v2756 = vld [vmem:[#allocation4 + $0x378] sm:$0xff]
    %v2757 = vld [vmem:[#allocation4 + $0x380] sm:$0xff]
    %v2758 = vld [vmem:[#allocation4 + $0x388] sm:$0xff]
    %v2759 = vld [vmem:[#allocation4 + $0x390] sm:$0xff]
    %v2760 = vld [vmem:[#allocation4 + $0x398] sm:$0xff]
    %v2761 = vld [vmem:[#allocation4 + $0x3a0] sm:$0xff]
    %v2762 = vld [vmem:[#allocation4 + $0x3a8] sm:$0xff]
    %v2763 = vld [vmem:[#allocation4 + $0x3b0] sm:$0xff]
    %v2764 = vld [vmem:[#allocation4 + $0x3b8] sm:$0xff]
    %v2765 = vld [vmem:[#allocation4 + $0x3c0] sm:$0xff]
    %v2766 = vld [vmem:[#allocation4 + $0x3c8] sm:$0xff]
    %v2767 = vld [vmem:[#allocation4 + $0x3d0] sm:$0xff]
    %v2768 = vld [vmem:[#allocation4 + $0x3d8] sm:$0xff]
    %v2769 = vld [vmem:[#allocation4 + $0x3e0] sm:$0xff]
    %v2770 = vld [vmem:[#allocation4 + $0x3e8] sm:$0xff]
    %v2771 = vld [vmem:[#allocation4 + $0x3f0] sm:$0xff]
    %v2772 = vld [vmem:[#allocation4 + $0x3f8] sm:$0xff]
    %v2773 = vld [vmem:[#allocation4 + $0x400] sm:$0xff]
    %v2774 = vld [vmem:[#allocation4 + $0x408] sm:$0xff]
    %v2775 = vld [vmem:[#allocation4 + $0x410] sm:$0xff]
    %v2776 = vld [vmem:[#allocation4 + $0x418] sm:$0xff]
    %v2777 = vld [vmem:[#allocation4 + $0x420] sm:$0xff]
    %v2778 = vld [vmem:[#allocation4 + $0x428] sm:$0xff]
    %v2779 = vld [vmem:[#allocation4 + $0x430] sm:$0xff]
    %v2780 = vld [vmem:[#allocation4 + $0x438] sm:$0xff]
    %v2781 = vld [vmem:[#allocation4 + $0x440] sm:$0xff]
    %v2782 = vld [vmem:[#allocation4 + $0x448] sm:$0xff]
    %v2783 = vld [vmem:[#allocation4 + $0x450] sm:$0xff]
    %v2784 = vld [vmem:[#allocation4 + $0x458] sm:$0xff]
    %v2785 = vld [vmem:[#allocation4 + $0x460] sm:$0xff]
    %v2786 = vld [vmem:[#allocation4 + $0x468] sm:$0xff]
    %v2787 = vld [vmem:[#allocation4 + $0x470] sm:$0xff]
    %v2788 = vld [vmem:[#allocation4 + $0x478] sm:$0xff]
    %v2789 = vld [vmem:[#allocation4 + $0x480] sm:$0xff]
    %v2790 = vld [vmem:[#allocation4 + $0x488] sm:$0xff]
    %v2791 = vld [vmem:[#allocation4 + $0x490] sm:$0xff]
    %v2792 = vld [vmem:[#allocation4 + $0x498] sm:$0xff]
    %v2793 = vld [vmem:[#allocation4 + $0x4a0] sm:$0xff]
    %v2794 = vld [vmem:[#allocation4 + $0x4a8] sm:$0xff]
    %v2795 = vld [vmem:[#allocation4 + $0x4b0] sm:$0xff]
    %v2796 = vld [vmem:[#allocation4 + $0x4b8] sm:$0xff]
    %v2797 = vld [vmem:[#allocation4 + $0x4c0] sm:$0xff]
    %v2798 = vld [vmem:[#allocation4 + $0x4c8] sm:$0xff]
    %v2799 = vld [vmem:[#allocation4 + $0x4d0] sm:$0xff]
    %v2800 = vld [vmem:[#allocation4 + $0x4d8] sm:$0xff]
    %v2801 = vld [vmem:[#allocation4 + $0x4e0] sm:$0xff]
    %v2802 = vld [vmem:[#allocation4 + $0x4e8] sm:$0xff]
    %v2803 = vld [vmem:[#allocation4 + $0x4f0] sm:$0xff]
    %v2804 = vld [vmem:[#allocation4 + $0x4f8] sm:$0xff]
    %v2805 = vld [vmem:[#allocation4 + $0x500] sm:$0xff]
    %v2806 = vld [vmem:[#allocation4 + $0x508] sm:$0xff]
    %v2807 = vld [vmem:[#allocation4 + $0x510] sm:$0xff]
    %v2808 = vld [vmem:[#allocation4 + $0x518] sm:$0xff]
    %v2809 = vld [vmem:[#allocation4 + $0x520] sm:$0xff]
    %v2810 = vld [vmem:[#allocation4 + $0x528] sm:$0xff]
    %v2811 = vld [vmem:[#allocation4 + $0x530] sm:$0xff]
    %v2812 = vld [vmem:[#allocation4 + $0x538] sm:$0xff]
    %v2813 = vld [vmem:[#allocation4 + $0x540] sm:$0xff]
    %v2814 = vld [vmem:[#allocation4 + $0x548] sm:$0xff]
    %v2815 = vld [vmem:[#allocation4 + $0x550] sm:$0xff]
    %v2816 = vld [vmem:[#allocation4 + $0x558] sm:$0xff]
    %v2817 = vld [vmem:[#allocation4 + $0x560] sm:$0xff]
    %v2818 = vld [vmem:[#allocation4 + $0x568] sm:$0xff]
    %v2819 = vld [vmem:[#allocation4 + $0x570] sm:$0xff]
    %v2820 = vld [vmem:[#allocation4 + $0x578] sm:$0xff]
    %v2821 = vld [vmem:[#allocation4 + $0x580] sm:$0xff]
    %v2822 = vld [vmem:[#allocation4 + $0x588] sm:$0xff]
    %v2823 = vld [vmem:[#allocation4 + $0x590] sm:$0xff]
    %v2824 = vld [vmem:[#allocation4 + $0x598] sm:$0xff]
    %v2825 = vld [vmem:[#allocation4 + $0x5a0] sm:$0xff]
    %v2826 = vld [vmem:[#allocation4 + $0x5a8] sm:$0xff]
    %v2827 = vld [vmem:[#allocation4 + $0x5b0] sm:$0xff]
    %v2828 = vld [vmem:[#allocation4 + $0x5b8] sm:$0xff]
    %v2829 = vld [vmem:[#allocation4 + $0x5c0] sm:$0xff]
    %v2830 = vld [vmem:[#allocation4 + $0x5c8] sm:$0xff]
    %v2831 = vld [vmem:[#allocation4 + $0x5d0] sm:$0xff]
    %v2832 = vld [vmem:[#allocation4 + $0x5d8] sm:$0xff]
    %v2833 = vld [vmem:[#allocation4 + $0x5e0] sm:$0xff]
    %v2834 = vld [vmem:[#allocation4 + $0x5e8] sm:$0xff]
    %v2835 = vld [vmem:[#allocation4 + $0x5f0] sm:$0xff]
    %v2836 = vld [vmem:[#allocation4 + $0x5f8] sm:$0xff]
    %v2837 = vld [vmem:[#allocation4 + $0x600] sm:$0xff]
    %v2838 = vld [vmem:[#allocation4 + $0x608] sm:$0xff]
    %v2839 = vld [vmem:[#allocation4 + $0x610] sm:$0xff]
    %v2840 = vld [vmem:[#allocation4 + $0x618] sm:$0xff]
    %v2841 = vld [vmem:[#allocation4 + $0x620] sm:$0xff]
    %v2842 = vld [vmem:[#allocation4 + $0x628] sm:$0xff]
    %v2843 = vld [vmem:[#allocation4 + $0x630] sm:$0xff]
    %v2844 = vld [vmem:[#allocation4 + $0x638] sm:$0xff]
    %v2845 = vld [vmem:[#allocation4 + $0x640] sm:$0xff]
    %v2846 = vld [vmem:[#allocation4 + $0x648] sm:$0xff]
    %v2847 = vld [vmem:[#allocation4 + $0x650] sm:$0xff]
    %v2848 = vld [vmem:[#allocation4 + $0x658] sm:$0xff]
    %v2849 = vld [vmem:[#allocation4 + $0x660] sm:$0xff]
    %v2850 = vld [vmem:[#allocation4 + $0x668] sm:$0xff]
    %v2851 = vld [vmem:[#allocation4 + $0x670] sm:$0xff]
    %v2852 = vld [vmem:[#allocation4 + $0x678] sm:$0xff]
    %v2853 = vld [vmem:[#allocation4 + $0x680] sm:$0xff]
    %v2854 = vld [vmem:[#allocation4 + $0x688] sm:$0xff]
    %v2855 = vld [vmem:[#allocation4 + $0x690] sm:$0xff]
    %v2856 = vld [vmem:[#allocation4 + $0x698] sm:$0xff]
    %v2857 = vld [vmem:[#allocation4 + $0x6a0] sm:$0xff]
    %v2858 = vld [vmem:[#allocation4 + $0x6a8] sm:$0xff]
    %v2859 = vld [vmem:[#allocation4 + $0x6b0] sm:$0xff]
    %v2860 = vld [vmem:[#allocation4 + $0x6b8] sm:$0xff]
    %v2861 = vld [vmem:[#allocation4 + $0x6c0] sm:$0xff]
    %v2862 = vld [vmem:[#allocation4 + $0x6c8] sm:$0xff]
    %v2863 = vld [vmem:[#allocation4 + $0x6d0] sm:$0xff]
    %v2864 = vld [vmem:[#allocation4 + $0x6d8] sm:$0xff]
    %v2865 = vld [vmem:[#allocation4 + $0x6e0] sm:$0xff]
    %v2866 = vld [vmem:[#allocation4 + $0x6e8] sm:$0xff]
    %v2867 = vld [vmem:[#allocation4 + $0x6f0] sm:$0xff]
    %v2868 = vld [vmem:[#allocation4 + $0x6f8] sm:$0xff]
    %v2869 = vld [vmem:[#allocation4 + $0x700] sm:$0xff]
    %v2870 = vld [vmem:[#allocation4 + $0x708] sm:$0xff]
    %v2871 = vld [vmem:[#allocation4 + $0x710] sm:$0xff]
    %v2872 = vld [vmem:[#allocation4 + $0x718] sm:$0xff]
    %v2873 = vld [vmem:[#allocation4 + $0x720] sm:$0xff]
    %v2874 = vld [vmem:[#allocation4 + $0x728] sm:$0xff]
    %v2875 = vld [vmem:[#allocation4 + $0x730] sm:$0xff]
    %v2876 = vld [vmem:[#allocation4 + $0x738] sm:$0xff]
    %v2877 = vld [vmem:[#allocation4 + $0x740] sm:$0xff]
    %v2878 = vld [vmem:[#allocation4 + $0x748] sm:$0xff]
    %v2879 = vld [vmem:[#allocation4 + $0x750] sm:$0xff]
    %v2880 = vld [vmem:[#allocation4 + $0x758] sm:$0xff]
    %v2881 = vld [vmem:[#allocation4 + $0x760] sm:$0xff]
    %v2882 = vld [vmem:[#allocation4 + $0x768] sm:$0xff]
    %v2883 = vld [vmem:[#allocation4 + $0x770] sm:$0xff]
    %v2884 = vld [vmem:[#allocation4 + $0x778] sm:$0xff]
    %v2885 = vld [vmem:[#allocation4 + $0x780] sm:$0xff]
    %v2886 = vld [vmem:[#allocation4 + $0x788] sm:$0xff]
    %v2887 = vld [vmem:[#allocation4 + $0x790] sm:$0xff]
    %v2888 = vld [vmem:[#allocation4 + $0x798] sm:$0xff]
    %v2889 = vld [vmem:[#allocation4 + $0x7a0] sm:$0xff]
    %v2890 = vld [vmem:[#allocation4 + $0x7a8] sm:$0xff]
    %v2891 = vld [vmem:[#allocation4 + $0x7b0] sm:$0xff]
    %v2892 = vld [vmem:[#allocation4 + $0x7b8] sm:$0xff]
    %v2893 = vld [vmem:[#allocation4 + $0x7c0] sm:$0xff]
    %v2894 = vld [vmem:[#allocation4 + $0x7c8] sm:$0xff]
    %v2895 = vld [vmem:[#allocation4 + $0x7d0] sm:$0xff]
    %v2896 = vld [vmem:[#allocation4 + $0x7d8] sm:$0xff]
    %v2897 = vld [vmem:[#allocation4 + $0x7e0] sm:$0xff]
    %v2898 = vld [vmem:[#allocation4 + $0x7e8] sm:$0xff]
    %v2899 = vld [vmem:[#allocation4 + $0x7f0] sm:$0xff]
    %v2900 = vld [vmem:[#allocation4 + $0x7f8] sm:$0xff]
    %s2901 = scalar_lea.vmem [#allocation10], 1
    %v2902 = vld [vmem:[%s2901] ss:$8 sm:$0xf]
    %v2904 = vlaneseq
    %v2905 = vshrl.u32 %v2904, 7
    %v2906 = vsub.s32 0, %v2905
    %v2907 = vrot.slane %v2902, %v2906
    %v2908 = vlaneseq
    %v2909 = vshrl.u32 %v2908, 7
    %v2910 = vsub.s32 1, %v2909
    %v2911 = vrot.slane %v2902, %v2910
    %v2912 = vlaneseq
    %v2913 = vshrl.u32 %v2912, 7
    %v2914 = vsub.s32 2, %v2913
    %v2915 = vrot.slane %v2902, %v2914
    %v2916 = vlaneseq
    %v2917 = vshrl.u32 %v2916, 7
    %v2918 = vsub.s32 3, %v2917
    %v2919 = vrot.slane %v2902, %v2918
    %v3180 = vunpack.c.l.b16 %v2645
    %v3181 = vunpack.c.h.b16 %v2645
    %v3182 = vunpack.c.l.b16 %v2646
    %v3183 = vunpack.c.h.b16 %v2646
    %v3184 = vunpack.c.l.b16 %v2647
    %v3185 = vunpack.c.h.b16 %v2647
    %v3186 = vunpack.c.l.b16 %v2648
    %v3187 = vunpack.c.h.b16 %v2648
    %v3188 = vunpack.c.l.b16 %v2649
    %v3189 = vunpack.c.h.b16 %v2649
    %v3190 = vunpack.c.l.b16 %v2650
    %v3191 = vunpack.c.h.b16 %v2650
    %v3192 = vunpack.c.l.b16 %v2651
    %v3193 = vunpack.c.h.b16 %v2651
    %v3194 = vunpack.c.l.b16 %v2652
    %v3195 = vunpack.c.h.b16 %v2652
    %v3196 = vunpack.c.l.b16 %v2653
    %v3197 = vunpack.c.h.b16 %v2653
    %v3198 = vunpack.c.l.b16 %v2654
    %v3199 = vunpack.c.h.b16 %v2654
    %v3200 = vunpack.c.l.b16 %v2655
    %v3201 = vunpack.c.h.b16 %v2655
    %v3202 = vunpack.c.l.b16 %v2656
    %v3203 = vunpack.c.h.b16 %v2656
    %v3204 = vunpack.c.l.b16 %v2657
    %v3205 = vunpack.c.h.b16 %v2657
    %v3206 = vunpack.c.l.b16 %v2658
    %v3207 = vunpack.c.h.b16 %v2658
    %v3208 = vunpack.c.l.b16 %v2659
    %v3209 = vunpack.c.h.b16 %v2659
    %v3210 = vunpack.c.l.b16 %v2660
    %v3211 = vunpack.c.h.b16 %v2660
    %v3212 = vunpack.c.l.b16 %v2661
    %v3213 = vunpack.c.h.b16 %v2661
    %v3214 = vunpack.c.l.b16 %v2662
    %v3215 = vunpack.c.h.b16 %v2662
    %v3216 = vunpack.c.l.b16 %v2663
    %v3217 = vunpack.c.h.b16 %v2663
    %v3218 = vunpack.c.l.b16 %v2664
    %v3219 = vunpack.c.h.b16 %v2664
    %v3220 = vunpack.c.l.b16 %v2665
    %v3221 = vunpack.c.h.b16 %v2665
    %v3222 = vunpack.c.l.b16 %v2666
    %v3223 = vunpack.c.h.b16 %v2666
    %v3224 = vunpack.c.l.b16 %v2667
    %v3225 = vunpack.c.h.b16 %v2667
    %v3226 = vunpack.c.l.b16 %v2668
    %v3227 = vunpack.c.h.b16 %v2668
    %v3228 = vunpack.c.l.b16 %v2669
    %v3229 = vunpack.c.h.b16 %v2669
    %v3230 = vunpack.c.l.b16 %v2670
    %v3231 = vunpack.c.h.b16 %v2670
    %v3232 = vunpack.c.l.b16 %v2671
    %v3233 = vunpack.c.h.b16 %v2671
    %v3234 = vunpack.c.l.b16 %v2672
    %v3235 = vunpack.c.h.b16 %v2672
    %v3236 = vunpack.c.l.b16 %v2673
    %v3237 = vunpack.c.h.b16 %v2673
    %v3238 = vunpack.c.l.b16 %v2674
    %v3239 = vunpack.c.h.b16 %v2674
    %v3240 = vunpack.c.l.b16 %v2675
    %v3241 = vunpack.c.h.b16 %v2675
    %v3242 = vunpack.c.l.b16 %v2676
    %v3243 = vunpack.c.h.b16 %v2676
    %v3244 = vunpack.c.l.b16 %v2677
    %v3245 = vunpack.c.h.b16 %v2677
    %v3246 = vunpack.c.l.b16 %v2678
    %v3247 = vunpack.c.h.b16 %v2678
    %v3248 = vunpack.c.l.b16 %v2679
    %v3249 = vunpack.c.h.b16 %v2679
    %v3250 = vunpack.c.l.b16 %v2680
    %v3251 = vunpack.c.h.b16 %v2680
    %v3252 = vunpack.c.l.b16 %v2681
    %v3253 = vunpack.c.h.b16 %v2681
    %v3254 = vunpack.c.l.b16 %v2682
    %v3255 = vunpack.c.h.b16 %v2682
    %v3256 = vunpack.c.l.b16 %v2683
    %v3257 = vunpack.c.h.b16 %v2683
    %v3258 = vunpack.c.l.b16 %v2684
    %v3259 = vunpack.c.h.b16 %v2684
    %v3260 = vunpack.c.l.b16 %v2685
    %v3261 = vunpack.c.h.b16 %v2685
    %v3262 = vunpack.c.l.b16 %v2686
    %v3263 = vunpack.c.h.b16 %v2686
    %v3264 = vunpack.c.l.b16 %v2687
    %v3265 = vunpack.c.h.b16 %v2687
    %v3266 = vunpack.c.l.b16 %v2688
    %v3267 = vunpack.c.h.b16 %v2688
    %v3268 = vunpack.c.l.b16 %v2689
    %v3269 = vunpack.c.h.b16 %v2689
    %v3270 = vunpack.c.l.b16 %v2690
    %v3271 = vunpack.c.h.b16 %v2690
    %v3272 = vunpack.c.l.b16 %v2691
    %v3273 = vunpack.c.h.b16 %v2691
    %v3274 = vunpack.c.l.b16 %v2692
    %v3275 = vunpack.c.h.b16 %v2692
    %v3276 = vunpack.c.l.b16 %v2693
    %v3277 = vunpack.c.h.b16 %v2693
    %v3278 = vunpack.c.l.b16 %v2694
    %v3279 = vunpack.c.h.b16 %v2694
    %v3280 = vunpack.c.l.b16 %v2695
    %v3281 = vunpack.c.h.b16 %v2695
    %v3282 = vunpack.c.l.b16 %v2696
    %v3283 = vunpack.c.h.b16 %v2696
    %v3284 = vunpack.c.l.b16 %v2697
    %v3285 = vunpack.c.h.b16 %v2697
    %v3286 = vunpack.c.l.b16 %v2698
    %v3287 = vunpack.c.h.b16 %v2698
    %v3288 = vunpack.c.l.b16 %v2699
    %v3289 = vunpack.c.h.b16 %v2699
    %v3290 = vunpack.c.l.b16 %v2700
    %v3291 = vunpack.c.h.b16 %v2700
    %v3292 = vunpack.c.l.b16 %v2701
    %v3293 = vunpack.c.h.b16 %v2701
    %v3294 = vunpack.c.l.b16 %v2702
    %v3295 = vunpack.c.h.b16 %v2702
    %v3296 = vunpack.c.l.b16 %v2703
    %v3297 = vunpack.c.h.b16 %v2703
    %v3298 = vunpack.c.l.b16 %v2704
    %v3299 = vunpack.c.h.b16 %v2704
    %v3300 = vunpack.c.l.b16 %v2705
    %v3301 = vunpack.c.h.b16 %v2705
    %v3302 = vunpack.c.l.b16 %v2706
    %v3303 = vunpack.c.h.b16 %v2706
    %v3304 = vunpack.c.l.b16 %v2707
    %v3305 = vunpack.c.h.b16 %v2707
    %v3306 = vunpack.c.l.b16 %v2708
    %v3307 = vunpack.c.h.b16 %v2708
    %v3308 = vunpack.c.l.b16 %v2709
    %v3309 = vunpack.c.h.b16 %v2709
    %v3310 = vunpack.c.l.b16 %v2710
    %v3311 = vunpack.c.h.b16 %v2710
    %v3312 = vunpack.c.l.b16 %v2711
    %v3313 = vunpack.c.h.b16 %v2711
    %v3314 = vunpack.c.l.b16 %v2712
    %v3315 = vunpack.c.h.b16 %v2712
    %v3316 = vunpack.c.l.b16 %v2713
    %v3317 = vunpack.c.h.b16 %v2713
    %v3318 = vunpack.c.l.b16 %v2714
    %v3319 = vunpack.c.h.b16 %v2714
    %v3320 = vunpack.c.l.b16 %v2715
    %v3321 = vunpack.c.h.b16 %v2715
    %v3322 = vunpack.c.l.b16 %v2716
    %v3323 = vunpack.c.h.b16 %v2716
    %v3324 = vunpack.c.l.b16 %v2717
    %v3325 = vunpack.c.h.b16 %v2717
    %v3326 = vunpack.c.l.b16 %v2718
    %v3327 = vunpack.c.h.b16 %v2718
    %v3328 = vunpack.c.l.b16 %v2719
    %v3329 = vunpack.c.h.b16 %v2719
    %v3330 = vunpack.c.l.b16 %v2720
    %v3331 = vunpack.c.h.b16 %v2720
    %v3332 = vunpack.c.l.b16 %v2721
    %v3333 = vunpack.c.h.b16 %v2721
    %v3334 = vunpack.c.l.b16 %v2722
    %v3335 = vunpack.c.h.b16 %v2722
    %v3336 = vunpack.c.l.b16 %v2723
    %v3337 = vunpack.c.h.b16 %v2723
    %v3338 = vunpack.c.l.b16 %v2724
    %v3339 = vunpack.c.h.b16 %v2724
    %v3340 = vunpack.c.l.b16 %v2725
    %v3341 = vunpack.c.h.b16 %v2725
    %v3342 = vunpack.c.l.b16 %v2726
    %v3343 = vunpack.c.h.b16 %v2726
    %v3344 = vunpack.c.l.b16 %v2727
    %v3345 = vunpack.c.h.b16 %v2727
    %v3346 = vunpack.c.l.b16 %v2728
    %v3347 = vunpack.c.h.b16 %v2728
    %v3348 = vunpack.c.l.b16 %v2729
    %v3349 = vunpack.c.h.b16 %v2729
    %v3350 = vunpack.c.l.b16 %v2730
    %v3351 = vunpack.c.h.b16 %v2730
    %v3352 = vunpack.c.l.b16 %v2731
    %v3353 = vunpack.c.h.b16 %v2731
    %v3354 = vunpack.c.l.b16 %v2732
    %v3355 = vunpack.c.h.b16 %v2732
    %v3356 = vunpack.c.l.b16 %v2733
    %v3357 = vunpack.c.h.b16 %v2733
    %v3358 = vunpack.c.l.b16 %v2734
    %v3359 = vunpack.c.h.b16 %v2734
    %v3360 = vunpack.c.l.b16 %v2735
    %v3361 = vunpack.c.h.b16 %v2735
    %v3362 = vunpack.c.l.b16 %v2736
    %v3363 = vunpack.c.h.b16 %v2736
    %v3364 = vunpack.c.l.b16 %v2737
    %v3365 = vunpack.c.h.b16 %v2737
    %v3366 = vunpack.c.l.b16 %v2738
    %v3367 = vunpack.c.h.b16 %v2738
    %v3368 = vunpack.c.l.b16 %v2739
    %v3369 = vunpack.c.h.b16 %v2739
    %v3370 = vunpack.c.l.b16 %v2740
    %v3371 = vunpack.c.h.b16 %v2740
    %v3372 = vunpack.c.l.b16 %v2741
    %v3373 = vunpack.c.h.b16 %v2741
    %v3374 = vunpack.c.l.b16 %v2742
    %v3375 = vunpack.c.h.b16 %v2742
    %v3376 = vunpack.c.l.b16 %v2743
    %v3377 = vunpack.c.h.b16 %v2743
    %v3378 = vunpack.c.l.b16 %v2744
    %v3379 = vunpack.c.h.b16 %v2744
    %v3380 = vunpack.c.l.b16 %v2745
    %v3381 = vunpack.c.h.b16 %v2745
    %v3382 = vunpack.c.l.b16 %v2746
    %v3383 = vunpack.c.h.b16 %v2746
    %v3384 = vunpack.c.l.b16 %v2747
    %v3385 = vunpack.c.h.b16 %v2747
    %v3386 = vunpack.c.l.b16 %v2748
    %v3387 = vunpack.c.h.b16 %v2748
    %v3388 = vunpack.c.l.b16 %v2749
    %v3389 = vunpack.c.h.b16 %v2749
    %v3390 = vunpack.c.l.b16 %v2750
    %v3391 = vunpack.c.h.b16 %v2750
    %v3392 = vunpack.c.l.b16 %v2751
    %v3393 = vunpack.c.h.b16 %v2751
    %v3394 = vunpack.c.l.b16 %v2752
    %v3395 = vunpack.c.h.b16 %v2752
    %v3396 = vunpack.c.l.b16 %v2753
    %v3397 = vunpack.c.h.b16 %v2753
    %v3398 = vunpack.c.l.b16 %v2754
    %v3399 = vunpack.c.h.b16 %v2754
    %v3400 = vunpack.c.l.b16 %v2755
    %v3401 = vunpack.c.h.b16 %v2755
    %v3402 = vunpack.c.l.b16 %v2756
    %v3403 = vunpack.c.h.b16 %v2756
    %v3404 = vunpack.c.l.b16 %v2757
    %v3405 = vunpack.c.h.b16 %v2757
    %v3406 = vunpack.c.l.b16 %v2758
    %v3407 = vunpack.c.h.b16 %v2758
    %v3408 = vunpack.c.l.b16 %v2759
    %v3409 = vunpack.c.h.b16 %v2759
    %v3410 = vunpack.c.l.b16 %v2760
    %v3411 = vunpack.c.h.b16 %v2760
    %v3412 = vunpack.c.l.b16 %v2761
    %v3413 = vunpack.c.h.b16 %v2761
    %v3414 = vunpack.c.l.b16 %v2762
    %v3415 = vunpack.c.h.b16 %v2762
    %v3416 = vunpack.c.l.b16 %v2763
    %v3417 = vunpack.c.h.b16 %v2763
    %v3418 = vunpack.c.l.b16 %v2764
    %v3419 = vunpack.c.h.b16 %v2764
    %v3420 = vunpack.c.l.b16 %v2765
    %v3421 = vunpack.c.h.b16 %v2765
    %v3422 = vunpack.c.l.b16 %v2766
    %v3423 = vunpack.c.h.b16 %v2766
    %v3424 = vunpack.c.l.b16 %v2767
    %v3425 = vunpack.c.h.b16 %v2767
    %v3426 = vunpack.c.l.b16 %v2768
    %v3427 = vunpack.c.h.b16 %v2768
    %v3428 = vunpack.c.l.b16 %v2769
    %v3429 = vunpack.c.h.b16 %v2769
    %v3430 = vunpack.c.l.b16 %v2770
    %v3431 = vunpack.c.h.b16 %v2770
    %v3432 = vunpack.c.l.b16 %v2771
    %v3433 = vunpack.c.h.b16 %v2771
    %v3434 = vunpack.c.l.b16 %v2772
    %v3435 = vunpack.c.h.b16 %v2772
    %v3436 = vunpack.c.l.b16 %v2773
    %v3437 = vunpack.c.h.b16 %v2773
    %v3438 = vunpack.c.l.b16 %v2774
    %v3439 = vunpack.c.h.b16 %v2774
    %v3440 = vunpack.c.l.b16 %v2775
    %v3441 = vunpack.c.h.b16 %v2775
    %v3442 = vunpack.c.l.b16 %v2776
    %v3443 = vunpack.c.h.b16 %v2776
    %v3444 = vunpack.c.l.b16 %v2777
    %v3445 = vunpack.c.h.b16 %v2777
    %v3446 = vunpack.c.l.b16 %v2778
    %v3447 = vunpack.c.h.b16 %v2778
    %v3448 = vunpack.c.l.b16 %v2779
    %v3449 = vunpack.c.h.b16 %v2779
    %v3450 = vunpack.c.l.b16 %v2780
    %v3451 = vunpack.c.h.b16 %v2780
    %v3452 = vunpack.c.l.b16 %v2781
    %v3453 = vunpack.c.h.b16 %v2781
    %v3454 = vunpack.c.l.b16 %v2782
    %v3455 = vunpack.c.h.b16 %v2782
    %v3456 = vunpack.c.l.b16 %v2783
    %v3457 = vunpack.c.h.b16 %v2783
    %v3458 = vunpack.c.l.b16 %v2784
    %v3459 = vunpack.c.h.b16 %v2784
    %v3460 = vunpack.c.l.b16 %v2785
    %v3461 = vunpack.c.h.b16 %v2785
    %v3462 = vunpack.c.l.b16 %v2786
    %v3463 = vunpack.c.h.b16 %v2786
    %v3464 = vunpack.c.l.b16 %v2787
    %v3465 = vunpack.c.h.b16 %v2787
    %v3466 = vunpack.c.l.b16 %v2788
    %v3467 = vunpack.c.h.b16 %v2788
    %v3468 = vunpack.c.l.b16 %v2789
    %v3469 = vunpack.c.h.b16 %v2789
    %v3470 = vunpack.c.l.b16 %v2790
    %v3471 = vunpack.c.h.b16 %v2790
    %v3472 = vunpack.c.l.b16 %v2791
    %v3473 = vunpack.c.h.b16 %v2791
    %v3474 = vunpack.c.l.b16 %v2792
    %v3475 = vunpack.c.h.b16 %v2792
    %v3476 = vunpack.c.l.b16 %v2793
    %v3477 = vunpack.c.h.b16 %v2793
    %v3478 = vunpack.c.l.b16 %v2794
    %v3479 = vunpack.c.h.b16 %v2794
    %v3480 = vunpack.c.l.b16 %v2795
    %v3481 = vunpack.c.h.b16 %v2795
    %v3482 = vunpack.c.l.b16 %v2796
    %v3483 = vunpack.c.h.b16 %v2796
    %v3484 = vunpack.c.l.b16 %v2797
    %v3485 = vunpack.c.h.b16 %v2797
    %v3486 = vunpack.c.l.b16 %v2798
    %v3487 = vunpack.c.h.b16 %v2798
    %v3488 = vunpack.c.l.b16 %v2799
    %v3489 = vunpack.c.h.b16 %v2799
    %v3490 = vunpack.c.l.b16 %v2800
    %v3491 = vunpack.c.h.b16 %v2800
    %v3492 = vunpack.c.l.b16 %v2801
    %v3493 = vunpack.c.h.b16 %v2801
    %v3494 = vunpack.c.l.b16 %v2802
    %v3495 = vunpack.c.h.b16 %v2802
    %v3496 = vunpack.c.l.b16 %v2803
    %v3497 = vunpack.c.h.b16 %v2803
    %v3498 = vunpack.c.l.b16 %v2804
    %v3499 = vunpack.c.h.b16 %v2804
    %v3500 = vunpack.c.l.b16 %v2805
    %v3501 = vunpack.c.h.b16 %v2805
    %v3502 = vunpack.c.l.b16 %v2806
    %v3503 = vunpack.c.h.b16 %v2806
    %v3504 = vunpack.c.l.b16 %v2807
    %v3505 = vunpack.c.h.b16 %v2807
    %v3506 = vunpack.c.l.b16 %v2808
    %v3507 = vunpack.c.h.b16 %v2808
    %v3508 = vunpack.c.l.b16 %v2809
    %v3509 = vunpack.c.h.b16 %v2809
    %v3510 = vunpack.c.l.b16 %v2810
    %v3511 = vunpack.c.h.b16 %v2810
    %v3512 = vunpack.c.l.b16 %v2811
    %v3513 = vunpack.c.h.b16 %v2811
    %v3514 = vunpack.c.l.b16 %v2812
    %v3515 = vunpack.c.h.b16 %v2812
    %v3516 = vunpack.c.l.b16 %v2813
    %v3517 = vunpack.c.h.b16 %v2813
    %v3518 = vunpack.c.l.b16 %v2814
    %v3519 = vunpack.c.h.b16 %v2814
    %v3520 = vunpack.c.l.b16 %v2815
    %v3521 = vunpack.c.h.b16 %v2815
    %v3522 = vunpack.c.l.b16 %v2816
    %v3523 = vunpack.c.h.b16 %v2816
    %v3524 = vunpack.c.l.b16 %v2817
    %v3525 = vunpack.c.h.b16 %v2817
    %v3526 = vunpack.c.l.b16 %v2818
    %v3527 = vunpack.c.h.b16 %v2818
    %v3528 = vunpack.c.l.b16 %v2819
    %v3529 = vunpack.c.h.b16 %v2819
    %v3530 = vunpack.c.l.b16 %v2820
    %v3531 = vunpack.c.h.b16 %v2820
    %v3532 = vunpack.c.l.b16 %v2821
    %v3533 = vunpack.c.h.b16 %v2821
    %v3534 = vunpack.c.l.b16 %v2822
    %v3535 = vunpack.c.h.b16 %v2822
    %v3536 = vunpack.c.l.b16 %v2823
    %v3537 = vunpack.c.h.b16 %v2823
    %v3538 = vunpack.c.l.b16 %v2824
    %v3539 = vunpack.c.h.b16 %v2824
    %v3540 = vunpack.c.l.b16 %v2825
    %v3541 = vunpack.c.h.b16 %v2825
    %v3542 = vunpack.c.l.b16 %v2826
    %v3543 = vunpack.c.h.b16 %v2826
    %v3544 = vunpack.c.l.b16 %v2827
    %v3545 = vunpack.c.h.b16 %v2827
    %v3546 = vunpack.c.l.b16 %v2828
    %v3547 = vunpack.c.h.b16 %v2828
    %v3548 = vunpack.c.l.b16 %v2829
    %v3549 = vunpack.c.h.b16 %v2829
    %v3550 = vunpack.c.l.b16 %v2830
    %v3551 = vunpack.c.h.b16 %v2830
    %v3552 = vunpack.c.l.b16 %v2831
    %v3553 = vunpack.c.h.b16 %v2831
    %v3554 = vunpack.c.l.b16 %v2832
    %v3555 = vunpack.c.h.b16 %v2832
    %v3556 = vunpack.c.l.b16 %v2833
    %v3557 = vunpack.c.h.b16 %v2833
    %v3558 = vunpack.c.l.b16 %v2834
    %v3559 = vunpack.c.h.b16 %v2834
    %v3560 = vunpack.c.l.b16 %v2835
    %v3561 = vunpack.c.h.b16 %v2835
    %v3562 = vunpack.c.l.b16 %v2836
    %v3563 = vunpack.c.h.b16 %v2836
    %v3564 = vunpack.c.l.b16 %v2837
    %v3565 = vunpack.c.h.b16 %v2837
    %v3566 = vunpack.c.l.b16 %v2838
    %v3567 = vunpack.c.h.b16 %v2838
    %v3568 = vunpack.c.l.b16 %v2839
    %v3569 = vunpack.c.h.b16 %v2839
    %v3570 = vunpack.c.l.b16 %v2840
    %v3571 = vunpack.c.h.b16 %v2840
    %v3572 = vunpack.c.l.b16 %v2841
    %v3573 = vunpack.c.h.b16 %v2841
    %v3574 = vunpack.c.l.b16 %v2842
    %v3575 = vunpack.c.h.b16 %v2842
    %v3576 = vunpack.c.l.b16 %v2843
    %v3577 = vunpack.c.h.b16 %v2843
    %v3578 = vunpack.c.l.b16 %v2844
    %v3579 = vunpack.c.h.b16 %v2844
    %v3580 = vunpack.c.l.b16 %v2845
    %v3581 = vunpack.c.h.b16 %v2845
    %v3582 = vunpack.c.l.b16 %v2846
    %v3583 = vunpack.c.h.b16 %v2846
    %v3584 = vunpack.c.l.b16 %v2847
    %v3585 = vunpack.c.h.b16 %v2847
    %v3586 = vunpack.c.l.b16 %v2848
    %v3587 = vunpack.c.h.b16 %v2848
    %v3588 = vunpack.c.l.b16 %v2849
    %v3589 = vunpack.c.h.b16 %v2849
    %v3590 = vunpack.c.l.b16 %v2850
    %v3591 = vunpack.c.h.b16 %v2850
    %v3592 = vunpack.c.l.b16 %v2851
    %v3593 = vunpack.c.h.b16 %v2851
    %v3594 = vunpack.c.l.b16 %v2852
    %v3595 = vunpack.c.h.b16 %v2852
    %v3596 = vunpack.c.l.b16 %v2853
    %v3597 = vunpack.c.h.b16 %v2853
    %v3598 = vunpack.c.l.b16 %v2854
    %v3599 = vunpack.c.h.b16 %v2854
    %v3600 = vunpack.c.l.b16 %v2855
    %v3601 = vunpack.c.h.b16 %v2855
    %v3602 = vunpack.c.l.b16 %v2856
    %v3603 = vunpack.c.h.b16 %v2856
    %v3604 = vunpack.c.l.b16 %v2857
    %v3605 = vunpack.c.h.b16 %v2857
    %v3606 = vunpack.c.l.b16 %v2858
    %v3607 = vunpack.c.h.b16 %v2858
    %v3608 = vunpack.c.l.b16 %v2859
    %v3609 = vunpack.c.h.b16 %v2859
    %v3610 = vunpack.c.l.b16 %v2860
    %v3611 = vunpack.c.h.b16 %v2860
    %v3612 = vunpack.c.l.b16 %v2861
    %v3613 = vunpack.c.h.b16 %v2861
    %v3614 = vunpack.c.l.b16 %v2862
    %v3615 = vunpack.c.h.b16 %v2862
    %v3616 = vunpack.c.l.b16 %v2863
    %v3617 = vunpack.c.h.b16 %v2863
    %v3618 = vunpack.c.l.b16 %v2864
    %v3619 = vunpack.c.h.b16 %v2864
    %v3620 = vunpack.c.l.b16 %v2865
    %v3621 = vunpack.c.h.b16 %v2865
    %v3622 = vunpack.c.l.b16 %v2866
    %v3623 = vunpack.c.h.b16 %v2866
    %v3624 = vunpack.c.l.b16 %v2867
    %v3625 = vunpack.c.h.b16 %v2867
    %v3626 = vunpack.c.l.b16 %v2868
    %v3627 = vunpack.c.h.b16 %v2868
    %v3628 = vunpack.c.l.b16 %v2869
    %v3629 = vunpack.c.h.b16 %v2869
    %v3630 = vunpack.c.l.b16 %v2870
    %v3631 = vunpack.c.h.b16 %v2870
    %v3632 = vunpack.c.l.b16 %v2871
    %v3633 = vunpack.c.h.b16 %v2871
    %v3634 = vunpack.c.l.b16 %v2872
    %v3635 = vunpack.c.h.b16 %v2872
    %v3636 = vunpack.c.l.b16 %v2873
    %v3637 = vunpack.c.h.b16 %v2873
    %v3638 = vunpack.c.l.b16 %v2874
    %v3639 = vunpack.c.h.b16 %v2874
    %v3640 = vunpack.c.l.b16 %v2875
    %v3641 = vunpack.c.h.b16 %v2875
    %v3642 = vunpack.c.l.b16 %v2876
    %v3643 = vunpack.c.h.b16 %v2876
    %v3644 = vunpack.c.l.b16 %v2877
    %v3645 = vunpack.c.h.b16 %v2877
    %v3646 = vunpack.c.l.b16 %v2878
    %v3647 = vunpack.c.h.b16 %v2878
    %v3648 = vunpack.c.l.b16 %v2879
    %v3649 = vunpack.c.h.b16 %v2879
    %v3650 = vunpack.c.l.b16 %v2880
    %v3651 = vunpack.c.h.b16 %v2880
    %v3652 = vunpack.c.l.b16 %v2881
    %v3653 = vunpack.c.h.b16 %v2881
    %v3654 = vunpack.c.l.b16 %v2882
    %v3655 = vunpack.c.h.b16 %v2882
    %v3656 = vunpack.c.l.b16 %v2883
    %v3657 = vunpack.c.h.b16 %v2883
    %v3658 = vunpack.c.l.b16 %v2884
    %v3659 = vunpack.c.h.b16 %v2884
    %v3660 = vunpack.c.l.b16 %v2885
    %v3661 = vunpack.c.h.b16 %v2885
    %v3662 = vunpack.c.l.b16 %v2886
    %v3663 = vunpack.c.h.b16 %v2886
    %v3664 = vunpack.c.l.b16 %v2887
    %v3665 = vunpack.c.h.b16 %v2887
    %v3666 = vunpack.c.l.b16 %v2888
    %v3667 = vunpack.c.h.b16 %v2888
    %v3668 = vunpack.c.l.b16 %v2889
    %v3669 = vunpack.c.h.b16 %v2889
    %v3670 = vunpack.c.l.b16 %v2890
    %v3671 = vunpack.c.h.b16 %v2890
    %v3672 = vunpack.c.l.b16 %v2891
    %v3673 = vunpack.c.h.b16 %v2891
    %v3674 = vunpack.c.l.b16 %v2892
    %v3675 = vunpack.c.h.b16 %v2892
    %v3676 = vunpack.c.l.b16 %v2893
    %v3677 = vunpack.c.h.b16 %v2893
    %v3678 = vunpack.c.l.b16 %v2894
    %v3679 = vunpack.c.h.b16 %v2894
    %v3680 = vunpack.c.l.b16 %v2895
    %v3681 = vunpack.c.h.b16 %v2895
    %v3682 = vunpack.c.l.b16 %v2896
    %v3683 = vunpack.c.h.b16 %v2896
    %v3684 = vunpack.c.l.b16 %v2897
    %v3685 = vunpack.c.h.b16 %v2897
    %v3686 = vunpack.c.l.b16 %v2898
    %v3687 = vunpack.c.h.b16 %v2898
    %v3688 = vunpack.c.l.b16 %v2899
    %v3689 = vunpack.c.h.b16 %v2899
    %v3690 = vunpack.c.l.b16 %v2900
    %v3691 = vunpack.c.h.b16 %v2900
    %v3692 = vpack.c.b16 %v3184, %v3180
    %v3693 = vpack.c.b16 %v3185, %v3181
    %v3694 = vpack.c.b16 %v3186, %v3182
    %v3695 = vpack.c.b16 %v3187, %v3183
    %v3696 = vpack.c.b16 %v3192, %v3188
    %v3697 = vpack.c.b16 %v3193, %v3189
    %v3698 = vpack.c.b16 %v3194, %v3190
    %v3699 = vpack.c.b16 %v3195, %v3191
    %v3700 = vpack.c.b16 %v3200, %v3196
    %v3701 = vpack.c.b16 %v3201, %v3197
    %v3702 = vpack.c.b16 %v3202, %v3198
    %v3703 = vpack.c.b16 %v3203, %v3199
    %v3704 = vpack.c.b16 %v3208, %v3204
    %v3705 = vpack.c.b16 %v3209, %v3205
    %v3706 = vpack.c.b16 %v3210, %v3206
    %v3707 = vpack.c.b16 %v3211, %v3207
    %v3708 = vpack.c.b16 %v3216, %v3212
    %v3709 = vpack.c.b16 %v3217, %v3213
    %v3710 = vpack.c.b16 %v3218, %v3214
    %v3711 = vpack.c.b16 %v3219, %v3215
    %v3712 = vpack.c.b16 %v3224, %v3220
    %v3713 = vpack.c.b16 %v3225, %v3221
    %v3714 = vpack.c.b16 %v3226, %v3222
    %v3715 = vpack.c.b16 %v3227, %v3223
    %v3716 = vpack.c.b16 %v3232, %v3228
    %v3717 = vpack.c.b16 %v3233, %v3229
    %v3718 = vpack.c.b16 %v3234, %v3230
    %v3719 = vpack.c.b16 %v3235, %v3231
    %v3720 = vpack.c.b16 %v3240, %v3236
    %v3721 = vpack.c.b16 %v3241, %v3237
    %v3722 = vpack.c.b16 %v3242, %v3238
    %v3723 = vpack.c.b16 %v3243, %v3239
    %v3724 = vpack.c.b16 %v3248, %v3244
    %v3725 = vpack.c.b16 %v3249, %v3245
    %v3726 = vpack.c.b16 %v3250, %v3246
    %v3727 = vpack.c.b16 %v3251, %v3247
    %v3728 = vpack.c.b16 %v3256, %v3252
    %v3729 = vpack.c.b16 %v3257, %v3253
    %v3730 = vpack.c.b16 %v3258, %v3254
    %v3731 = vpack.c.b16 %v3259, %v3255
    %v3732 = vpack.c.b16 %v3264, %v3260
    %v3733 = vpack.c.b16 %v3265, %v3261
    %v3734 = vpack.c.b16 %v3266, %v3262
    %v3735 = vpack.c.b16 %v3267, %v3263
    %v3736 = vpack.c.b16 %v3272, %v3268
    %v3737 = vpack.c.b16 %v3273, %v3269
    %v3738 = vpack.c.b16 %v3274, %v3270
    %v3739 = vpack.c.b16 %v3275, %v3271
    %v3740 = vpack.c.b16 %v3280, %v3276
    %v3741 = vpack.c.b16 %v3281, %v3277
    %v3742 = vpack.c.b16 %v3282, %v3278
    %v3743 = vpack.c.b16 %v3283, %v3279
    %v3744 = vpack.c.b16 %v3288, %v3284
    %v3745 = vpack.c.b16 %v3289, %v3285
    %v3746 = vpack.c.b16 %v3290, %v3286
    %v3747 = vpack.c.b16 %v3291, %v3287
    %v3748 = vpack.c.b16 %v3296, %v3292
    %v3749 = vpack.c.b16 %v3297, %v3293
    %v3750 = vpack.c.b16 %v3298, %v3294
    %v3751 = vpack.c.b16 %v3299, %v3295
    %v3752 = vpack.c.b16 %v3304, %v3300
    %v3753 = vpack.c.b16 %v3305, %v3301
    %v3754 = vpack.c.b16 %v3306, %v3302
    %v3755 = vpack.c.b16 %v3307, %v3303
    %v3756 = vpack.c.b16 %v3312, %v3308
    %v3757 = vpack.c.b16 %v3313, %v3309
    %v3758 = vpack.c.b16 %v3314, %v3310
    %v3759 = vpack.c.b16 %v3315, %v3311
    %v3760 = vpack.c.b16 %v3320, %v3316
    %v3761 = vpack.c.b16 %v3321, %v3317
    %v3762 = vpack.c.b16 %v3322, %v3318
    %v3763 = vpack.c.b16 %v3323, %v3319
    %v3764 = vpack.c.b16 %v3328, %v3324
    %v3765 = vpack.c.b16 %v3329, %v3325
    %v3766 = vpack.c.b16 %v3330, %v3326
    %v3767 = vpack.c.b16 %v3331, %v3327
    %v3768 = vpack.c.b16 %v3336, %v3332
    %v3769 = vpack.c.b16 %v3337, %v3333
    %v3770 = vpack.c.b16 %v3338, %v3334
    %v3771 = vpack.c.b16 %v3339, %v3335
    %v3772 = vpack.c.b16 %v3344, %v3340
    %v3773 = vpack.c.b16 %v3345, %v3341
    %v3774 = vpack.c.b16 %v3346, %v3342
    %v3775 = vpack.c.b16 %v3347, %v3343
    %v3776 = vpack.c.b16 %v3352, %v3348
    %v3777 = vpack.c.b16 %v3353, %v3349
    %v3778 = vpack.c.b16 %v3354, %v3350
    %v3779 = vpack.c.b16 %v3355, %v3351
    %v3780 = vpack.c.b16 %v3360, %v3356
    %v3781 = vpack.c.b16 %v3361, %v3357
    %v3782 = vpack.c.b16 %v3362, %v3358
    %v3783 = vpack.c.b16 %v3363, %v3359
    %v3784 = vpack.c.b16 %v3368, %v3364
    %v3785 = vpack.c.b16 %v3369, %v3365
    %v3786 = vpack.c.b16 %v3370, %v3366
    %v3787 = vpack.c.b16 %v3371, %v3367
    %v3788 = vpack.c.b16 %v3376, %v3372
    %v3789 = vpack.c.b16 %v3377, %v3373
    %v3790 = vpack.c.b16 %v3378, %v3374
    %v3791 = vpack.c.b16 %v3379, %v3375
    %v3792 = vpack.c.b16 %v3384, %v3380
    %v3793 = vpack.c.b16 %v3385, %v3381
    %v3794 = vpack.c.b16 %v3386, %v3382
    %v3795 = vpack.c.b16 %v3387, %v3383
    %v3796 = vpack.c.b16 %v3392, %v3388
    %v3797 = vpack.c.b16 %v3393, %v3389
    %v3798 = vpack.c.b16 %v3394, %v3390
    %v3799 = vpack.c.b16 %v3395, %v3391
    %v3800 = vpack.c.b16 %v3400, %v3396
    %v3801 = vpack.c.b16 %v3401, %v3397
    %v3802 = vpack.c.b16 %v3402, %v3398
    %v3803 = vpack.c.b16 %v3403, %v3399
    %v3804 = vpack.c.b16 %v3408, %v3404
    %v3805 = vpack.c.b16 %v3409, %v3405
    %v3806 = vpack.c.b16 %v3410, %v3406
    %v3807 = vpack.c.b16 %v3411, %v3407
    %v3808 = vpack.c.b16 %v3416, %v3412
    %v3809 = vpack.c.b16 %v3417, %v3413
    %v3810 = vpack.c.b16 %v3418, %v3414
    %v3811 = vpack.c.b16 %v3419, %v3415
    %v3812 = vpack.c.b16 %v3424, %v3420
    %v3813 = vpack.c.b16 %v3425, %v3421
    %v3814 = vpack.c.b16 %v3426, %v3422
    %v3815 = vpack.c.b16 %v3427, %v3423
    %v3816 = vpack.c.b16 %v3432, %v3428
    %v3817 = vpack.c.b16 %v3433, %v3429
    %v3818 = vpack.c.b16 %v3434, %v3430
    %v3819 = vpack.c.b16 %v3435, %v3431
    %v3820 = vpack.c.b16 %v3440, %v3436
    %v3821 = vpack.c.b16 %v3441, %v3437
    %v3822 = vpack.c.b16 %v3442, %v3438
    %v3823 = vpack.c.b16 %v3443, %v3439
    %v3824 = vpack.c.b16 %v3448, %v3444
    %v3825 = vpack.c.b16 %v3449, %v3445
    %v3826 = vpack.c.b16 %v3450, %v3446
    %v3827 = vpack.c.b16 %v3451, %v3447
    %v3828 = vpack.c.b16 %v3456, %v3452
    %v3829 = vpack.c.b16 %v3457, %v3453
    %v3830 = vpack.c.b16 %v3458, %v3454
    %v3831 = vpack.c.b16 %v3459, %v3455
    %v3832 = vpack.c.b16 %v3464, %v3460
    %v3833 = vpack.c.b16 %v3465, %v3461
    %v3834 = vpack.c.b16 %v3466, %v3462
    %v3835 = vpack.c.b16 %v3467, %v3463
    %v3836 = vpack.c.b16 %v3472, %v3468
    %v3837 = vpack.c.b16 %v3473, %v3469
    %v3838 = vpack.c.b16 %v3474, %v3470
    %v3839 = vpack.c.b16 %v3475, %v3471
    %v3840 = vpack.c.b16 %v3480, %v3476
    %v3841 = vpack.c.b16 %v3481, %v3477
    %v3842 = vpack.c.b16 %v3482, %v3478
    %v3843 = vpack.c.b16 %v3483, %v3479
    %v3844 = vpack.c.b16 %v3488, %v3484
    %v3845 = vpack.c.b16 %v3489, %v3485
    %v3846 = vpack.c.b16 %v3490, %v3486
    %v3847 = vpack.c.b16 %v3491, %v3487
    %v3848 = vpack.c.b16 %v3496, %v3492
    %v3849 = vpack.c.b16 %v3497, %v3493
    %v3850 = vpack.c.b16 %v3498, %v3494
    %v3851 = vpack.c.b16 %v3499, %v3495
    %v3852 = vpack.c.b16 %v3504, %v3500
    %v3853 = vpack.c.b16 %v3505, %v3501
    %v3854 = vpack.c.b16 %v3506, %v3502
    %v3855 = vpack.c.b16 %v3507, %v3503
    %v3856 = vpack.c.b16 %v3512, %v3508
    %v3857 = vpack.c.b16 %v3513, %v3509
    %v3858 = vpack.c.b16 %v3514, %v3510
    %v3859 = vpack.c.b16 %v3515, %v3511
    %v3860 = vpack.c.b16 %v3520, %v3516
    %v3861 = vpack.c.b16 %v3521, %v3517
    %v3862 = vpack.c.b16 %v3522, %v3518
    %v3863 = vpack.c.b16 %v3523, %v3519
    %v3864 = vpack.c.b16 %v3528, %v3524
    %v3865 = vpack.c.b16 %v3529, %v3525
    %v3866 = vpack.c.b16 %v3530, %v3526
    %v3867 = vpack.c.b16 %v3531, %v3527
    %v3868 = vpack.c.b16 %v3536, %v3532
    %v3869 = vpack.c.b16 %v3537, %v3533
    %v3870 = vpack.c.b16 %v3538, %v3534
    %v3871 = vpack.c.b16 %v3539, %v3535
    %v3872 = vpack.c.b16 %v3544, %v3540
    %v3873 = vpack.c.b16 %v3545, %v3541
    %v3874 = vpack.c.b16 %v3546, %v3542
    %v3875 = vpack.c.b16 %v3547, %v3543
    %v3876 = vpack.c.b16 %v3552, %v3548
    %v3877 = vpack.c.b16 %v3553, %v3549
    %v3878 = vpack.c.b16 %v3554, %v3550
    %v3879 = vpack.c.b16 %v3555, %v3551
    %v3880 = vpack.c.b16 %v3560, %v3556
    %v3881 = vpack.c.b16 %v3561, %v3557
    %v3882 = vpack.c.b16 %v3562, %v3558
    %v3883 = vpack.c.b16 %v3563, %v3559
    %v3884 = vpack.c.b16 %v3568, %v3564
    %v3885 = vpack.c.b16 %v3569, %v3565
    %v3886 = vpack.c.b16 %v3570, %v3566
    %v3887 = vpack.c.b16 %v3571, %v3567
    %v3888 = vpack.c.b16 %v3576, %v3572
    %v3889 = vpack.c.b16 %v3577, %v3573
    %v3890 = vpack.c.b16 %v3578, %v3574
    %v3891 = vpack.c.b16 %v3579, %v3575
    %v3892 = vpack.c.b16 %v3584, %v3580
    %v3893 = vpack.c.b16 %v3585, %v3581
    %v3894 = vpack.c.b16 %v3586, %v3582
    %v3895 = vpack.c.b16 %v3587, %v3583
    %v3896 = vpack.c.b16 %v3592, %v3588
    %v3897 = vpack.c.b16 %v3593, %v3589
    %v3898 = vpack.c.b16 %v3594, %v3590
    %v3899 = vpack.c.b16 %v3595, %v3591
    %v3900 = vpack.c.b16 %v3600, %v3596
    %v3901 = vpack.c.b16 %v3601, %v3597
    %v3902 = vpack.c.b16 %v3602, %v3598
    %v3903 = vpack.c.b16 %v3603, %v3599
    %v3904 = vpack.c.b16 %v3608, %v3604
    %v3905 = vpack.c.b16 %v3609, %v3605
    %v3906 = vpack.c.b16 %v3610, %v3606
    %v3907 = vpack.c.b16 %v3611, %v3607
    %v3908 = vpack.c.b16 %v3616, %v3612
    %v3909 = vpack.c.b16 %v3617, %v3613
    %v3910 = vpack.c.b16 %v3618, %v3614
    %v3911 = vpack.c.b16 %v3619, %v3615
    %v3912 = vpack.c.b16 %v3624, %v3620
    %v3913 = vpack.c.b16 %v3625, %v3621
    %v3914 = vpack.c.b16 %v3626, %v3622
    %v3915 = vpack.c.b16 %v3627, %v3623
    %v3916 = vpack.c.b16 %v3632, %v3628
    %v3917 = vpack.c.b16 %v3633, %v3629
    %v3918 = vpack.c.b16 %v3634, %v3630
    %v3919 = vpack.c.b16 %v3635, %v3631
    %v3920 = vpack.c.b16 %v3640, %v3636
    %v3921 = vpack.c.b16 %v3641, %v3637
    %v3922 = vpack.c.b16 %v3642, %v3638
    %v3923 = vpack.c.b16 %v3643, %v3639
    %v3924 = vpack.c.b16 %v3648, %v3644
    %v3925 = vpack.c.b16 %v3649, %v3645
    %v3926 = vpack.c.b16 %v3650, %v3646
    %v3927 = vpack.c.b16 %v3651, %v3647
    %v3928 = vpack.c.b16 %v3656, %v3652
    %v3929 = vpack.c.b16 %v3657, %v3653
    %v3930 = vpack.c.b16 %v3658, %v3654
    %v3931 = vpack.c.b16 %v3659, %v3655
    %v3932 = vpack.c.b16 %v3664, %v3660
    %v3933 = vpack.c.b16 %v3665, %v3661
    %v3934 = vpack.c.b16 %v3666, %v3662
    %v3935 = vpack.c.b16 %v3667, %v3663
    %v3936 = vpack.c.b16 %v3672, %v3668
    %v3937 = vpack.c.b16 %v3673, %v3669
    %v3938 = vpack.c.b16 %v3674, %v3670
    %v3939 = vpack.c.b16 %v3675, %v3671
    %v3940 = vpack.c.b16 %v3680, %v3676
    %v3941 = vpack.c.b16 %v3681, %v3677
    %v3942 = vpack.c.b16 %v3682, %v3678
    %v3943 = vpack.c.b16 %v3683, %v3679
    %v3944 = vpack.c.b16 %v3688, %v3684
    %v3945 = vpack.c.b16 %v3689, %v3685
    %v3946 = vpack.c.b16 %v3690, %v3686
    %v3947 = vpack.c.b16 %v3691, %v3687
    %4204 = vmatprep.subr.bf16.mxu0 %v3693
    %4205 = vmatpush1.bf16.msra.mxu0 %v3692
    %4206 = vmatprep.subr.bf16.mxu0 %v3697
    %4207 = vmatpush1.bf16.msra.mxu0 %v3696
    %4208 = vmatprep.subr.bf16.mxu0 %v3701
    %4209 = vmatpush1.bf16.msra.mxu0 %v3700
    %4210 = vmatprep.subr.bf16.mxu0 %v3705
    %4211 = vmatpush1.bf16.msra.mxu0 %v3704
    %4212 = vmatprep.subr.bf16.mxu0 %v3709
    %4213 = vmatpush1.bf16.msra.mxu0 %v3708
    %4214 = vmatprep.subr.bf16.mxu0 %v3713
    %4215 = vmatpush1.bf16.msra.mxu0 %v3712
    %4216 = vmatprep.subr.bf16.mxu0 %v3717
    %4217 = vmatpush1.bf16.msra.mxu0 %v3716
    %4218 = vmatprep.subr.bf16.mxu0 %v3721
    %4219 = vmatpush1.bf16.msra.mxu0 %v3720
    %4220 = vmatprep.subr.bf16.mxu0 %v3725
    %4221 = vmatpush1.bf16.msra.mxu0 %v3724
    %4222 = vmatprep.subr.bf16.mxu0 %v3729
    %4223 = vmatpush1.bf16.msra.mxu0 %v3728
    %4224 = vmatprep.subr.bf16.mxu0 %v3733
    %4225 = vmatpush1.bf16.msra.mxu0 %v3732
    %4226 = vmatprep.subr.bf16.mxu0 %v3737
    %4227 = vmatpush1.bf16.msra.mxu0 %v3736
    %4228 = vmatprep.subr.bf16.mxu0 %v3741
    %4229 = vmatpush1.bf16.msra.mxu0 %v3740
    %4230 = vmatprep.subr.bf16.mxu0 %v3745
    %4231 = vmatpush1.bf16.msra.mxu0 %v3744
    %4232 = vmatprep.subr.bf16.mxu0 %v3749
    %4233 = vmatpush1.bf16.msra.mxu0 %v3748
    %4234 = vmatprep.subr.bf16.mxu0 %v3753
    %4235 = vmatpush1.bf16.msra.mxu0 %v3752
    %4236 = vmatprep.mubr.bf16.mxu0 %v2638
    %4237 = vmatmul.mubr.bf16.gmra.mrb[0].mxu0 %v2637
    %v4238 = vpop.f32.mrb[0].mxu0
    %v4239 = vadd.f32 %v2907, %v4238
    %v4240 = vpop.f32.mrb[0].mxu0
    %v4241 = vadd.f32 %v2911, %v4240
    %v4242 = vpop.f32.mrb[0].mxu0
    %v4243 = vadd.f32 %v2907, %v4242
    %v4244 = vpop.f32.mrb[0].mxu0
    %v4245 = vadd.f32 %v2911, %v4244
    %4246 = vdwg.mxu0
    %4247 = vmatprep.subr.bf16.mxu0 %v3757
    %4248 = vmatpush1.bf16.msra.mxu0 %v3756
    %4249 = vmatprep.subr.bf16.mxu0 %v3761
    %4250 = vmatpush1.bf16.msra.mxu0 %v3760
    %4251 = vmatprep.subr.bf16.mxu0 %v3765
    %4252 = vmatpush1.bf16.msra.mxu0 %v3764
    %4253 = vmatprep.subr.bf16.mxu0 %v3769
    %4254 = vmatpush1.bf16.msra.mxu0 %v3768
    %4255 = vmatprep.subr.bf16.mxu0 %v3773
    %4256 = vmatpush1.bf16.msra.mxu0 %v3772
    %4257 = vmatprep.subr.bf16.mxu0 %v3777
    %4258 = vmatpush1.bf16.msra.mxu0 %v3776
    %4259 = vmatprep.subr.bf16.mxu0 %v3781
    %4260 = vmatpush1.bf16.msra.mxu0 %v3780
    %4261 = vmatprep.subr.bf16.mxu0 %v3785
    %4262 = vmatpush1.bf16.msra.mxu0 %v3784
    %4263 = vmatprep.subr.bf16.mxu0 %v3789
    %4264 = vmatpush1.bf16.msra.mxu0 %v3788
    %4265 = vmatprep.subr.bf16.mxu0 %v3793
    %4266 = vmatpush1.bf16.msra.mxu0 %v3792
    %4267 = vmatprep.subr.bf16.mxu0 %v3797
    %4268 = vmatpush1.bf16.msra.mxu0 %v3796
    %4269 = vmatprep.subr.bf16.mxu0 %v3801
    %4270 = vmatpush1.bf16.msra.mxu0 %v3800
    %4271 = vmatprep.subr.bf16.mxu0 %v3805
    %4272 = vmatpush1.bf16.msra.mxu0 %v3804
    %4273 = vmatprep.subr.bf16.mxu0 %v3809
    %4274 = vmatpush1.bf16.msra.mxu0 %v3808
    %4275 = vmatprep.subr.bf16.mxu0 %v3813
    %4276 = vmatpush1.bf16.msra.mxu0 %v3812
    %4277 = vmatprep.subr.bf16.mxu0 %v3817
    %4278 = vmatpush1.bf16.msra.mxu0 %v3816
    %4279 = vmatprep.mubr.bf16.mxu0 %v2640
    %4280 = vmatmul.mubr.bf16.gmra.mrb[0].mxu0 %v2639
    %v4281 = vpop.f32.mrb[0].mxu0
    %v4282 = vadd.f32 %v4239, %v4281
    %v4283 = vpop.f32.mrb[0].mxu0
    %v4284 = vadd.f32 %v4241, %v4283
    %v4285 = vpop.f32.mrb[0].mxu0
    %v4286 = vadd.f32 %v4243, %v4285
    %v4287 = vpop.f32.mrb[0].mxu0
    %v4288 = vadd.f32 %v4245, %v4287
    %4289 = vdwg.mxu0
    %4290 = vmatprep.subr.bf16.mxu0 %v3821
    %4291 = vmatpush1.bf16.msra.mxu0 %v3820
    %4292 = vmatprep.subr.bf16.mxu0 %v3825
    %4293 = vmatpush1.bf16.msra.mxu0 %v3824
    %4294 = vmatprep.subr.bf16.mxu0 %v3829
    %4295 = vmatpush1.bf16.msra.mxu0 %v3828
    %4296 = vmatprep.subr.bf16.mxu0 %v3833
    %4297 = vmatpush1.bf16.msra.mxu0 %v3832
    %4298 = vmatprep.subr.bf16.mxu0 %v3837
    %4299 = vmatpush1.bf16.msra.mxu0 %v3836
    %4300 = vmatprep.subr.bf16.mxu0 %v3841
    %4301 = vmatpush1.bf16.msra.mxu0 %v3840
    %4302 = vmatprep.subr.bf16.mxu0 %v3845
    %4303 = vmatpush1.bf16.msra.mxu0 %v3844
    %4304 = vmatprep.subr.bf16.mxu0 %v3849
    %4305 = vmatpush1.bf16.msra.mxu0 %v3848
    %4306 = vmatprep.subr.bf16.mxu0 %v3853
    %4307 = vmatpush1.bf16.msra.mxu0 %v3852
    %4308 = vmatprep.subr.bf16.mxu0 %v3857
    %4309 = vmatpush1.bf16.msra.mxu0 %v3856
    %4310 = vmatprep.subr.bf16.mxu0 %v3861
    %4311 = vmatpush1.bf16.msra.mxu0 %v3860
    %4312 = vmatprep.subr.bf16.mxu0 %v3865
    %4313 = vmatpush1.bf16.msra.mxu0 %v3864
    %4314 = vmatprep.subr.bf16.mxu0 %v3869
    %4315 = vmatpush1.bf16.msra.mxu0 %v3868
    %4316 = vmatprep.subr.bf16.mxu0 %v3873
    %4317 = vmatpush1.bf16.msra.mxu0 %v3872
    %4318 = vmatprep.subr.bf16.mxu0 %v3877
    %4319 = vmatpush1.bf16.msra.mxu0 %v3876
    %4320 = vmatprep.subr.bf16.mxu0 %v3881
    %4321 = vmatpush1.bf16.msra.mxu0 %v3880
    %4322 = vmatprep.mubr.bf16.mxu0 %v2642
    %4323 = vmatmul.mubr.bf16.gmra.mrb[0].mxu0 %v2641
    %v4324 = vpop.f32.mrb[0].mxu0
    %v4325 = vadd.f32 %v4282, %v4324
    %v4326 = vpop.f32.mrb[0].mxu0
    %v4327 = vadd.f32 %v4284, %v4326
    %v4328 = vpop.f32.mrb[0].mxu0
    %v4329 = vadd.f32 %v4286, %v4328
    %v4330 = vpop.f32.mrb[0].mxu0
    %v4331 = vadd.f32 %v4288, %v4330
    %4332 = vdwg.mxu0
    %4333 = vmatprep.subr.bf16.mxu0 %v3885
    %4334 = vmatpush1.bf16.msra.mxu0 %v3884
    %4335 = vmatprep.subr.bf16.mxu0 %v3889
    %4336 = vmatpush1.bf16.msra.mxu0 %v3888
    %4337 = vmatprep.subr.bf16.mxu0 %v3893
    %4338 = vmatpush1.bf16.msra.mxu0 %v3892
    %4339 = vmatprep.subr.bf16.mxu0 %v3897
    %4340 = vmatpush1.bf16.msra.mxu0 %v3896
    %4341 = vmatprep.subr.bf16.mxu0 %v3901
    %4342 = vmatpush1.bf16.msra.mxu0 %v3900
    %4343 = vmatprep.subr.bf16.mxu0 %v3905
    %4344 = vmatpush1.bf16.msra.mxu0 %v3904
    %4345 = vmatprep.subr.bf16.mxu0 %v3909
    %4346 = vmatpush1.bf16.msra.mxu0 %v3908
    %4347 = vmatprep.subr.bf16.mxu0 %v3913
    %4348 = vmatpush1.bf16.msra.mxu0 %v3912
    %4349 = vmatprep.subr.bf16.mxu0 %v3917
    %4350 = vmatpush1.bf16.msra.mxu0 %v3916
    %4351 = vmatprep.subr.bf16.mxu0 %v3921
    %4352 = vmatpush1.bf16.msra.mxu0 %v3920
    %4353 = vmatprep.subr.bf16.mxu0 %v3925
    %4354 = vmatpush1.bf16.msra.mxu0 %v3924
    %4355 = vmatprep.subr.bf16.mxu0 %v3929
    %4356 = vmatpush1.bf16.msra.mxu0 %v3928
    %4357 = vmatprep.subr.bf16.mxu0 %v3933
    %4358 = vmatpush1.bf16.msra.mxu0 %v3932
    %4359 = vmatprep.subr.bf16.mxu0 %v3937
    %4360 = vmatpush1.bf16.msra.mxu0 %v3936
    %4361 = vmatprep.subr.bf16.mxu0 %v3941
    %4362 = vmatpush1.bf16.msra.mxu0 %v3940
    %4363 = vmatprep.subr.bf16.mxu0 %v3945
    %4364 = vmatpush1.bf16.msra.mxu0 %v3944
    %4365 = vmatprep.mubr.bf16.mxu0 %v2644
    %4366 = vmatmul.mubr.bf16.gmra.mrb[0].mxu0 %v2643
    %v4367 = vpop.f32.mrb[0].mxu0
    %v4368 = vadd.f32 %v4325, %v4367
    %v4369 = vpop.f32.mrb[0].mxu0
    %v4370 = vadd.f32 %v4327, %v4369
    %v4371 = vpop.f32.mrb[0].mxu0
    %v4372 = vadd.f32 %v4329, %v4371
    %v4373 = vpop.f32.mrb[0].mxu0
    %v4374 = vadd.f32 %v4331, %v4373
    %4375 = vdwg.mxu0
    %4376 = vmatprep.subr.bf16.mxu0 %v3695
    %4377 = vmatpush1.bf16.msra.mxu0 %v3694
    %4378 = vmatprep.subr.bf16.mxu0 %v3699
    %4379 = vmatpush1.bf16.msra.mxu0 %v3698
    %4380 = vmatprep.subr.bf16.mxu0 %v3703
    %4381 = vmatpush1.bf16.msra.mxu0 %v3702
    %4382 = vmatprep.subr.bf16.mxu0 %v3707
    %4383 = vmatpush1.bf16.msra.mxu0 %v3706
    %4384 = vmatprep.subr.bf16.mxu0 %v3711
    %4385 = vmatpush1.bf16.msra.mxu0 %v3710
    %4386 = vmatprep.subr.bf16.mxu0 %v3715
    %4387 = vmatpush1.bf16.msra.mxu0 %v3714
    %4388 = vmatprep.subr.bf16.mxu0 %v3719
    %4389 = vmatpush1.bf16.msra.mxu0 %v3718
    %4390 = vmatprep.subr.bf16.mxu0 %v3723
    %4391 = vmatpush1.bf16.msra.mxu0 %v3722
    %4392 = vmatprep.subr.bf16.mxu0 %v3727
    %4393 = vmatpush1.bf16.msra.mxu0 %v3726
    %4394 = vmatprep.subr.bf16.mxu0 %v3731
    %4395 = vmatpush1.bf16.msra.mxu0 %v3730
    %4396 = vmatprep.subr.bf16.mxu0 %v3735
    %4397 = vmatpush1.bf16.msra.mxu0 %v3734
    %4398 = vmatprep.subr.bf16.mxu0 %v3739
    %4399 = vmatpush1.bf16.msra.mxu0 %v3738
    %4400 = vmatprep.subr.bf16.mxu0 %v3743
    %4401 = vmatpush1.bf16.msra.mxu0 %v3742
    %4402 = vmatprep.subr.bf16.mxu0 %v3747
    %4403 = vmatpush1.bf16.msra.mxu0 %v3746
    %4404 = vmatprep.subr.bf16.mxu0 %v3751
    %4405 = vmatpush1.bf16.msra.mxu0 %v3750
    %4406 = vmatprep.subr.bf16.mxu0 %v3755
    %4407 = vmatpush1.bf16.msra.mxu0 %v3754
    %4408 = vmatprep.mubr.bf16.mxu0 %v2638
    %4409 = vmatmul.mubr.bf16.gmra.mrb[0].mxu0 %v2637
    %v4410 = vpop.f32.mrb[0].mxu0
    %v4411 = vadd.f32 %v2915, %v4410
    %v4412 = vpop.f32.mrb[0].mxu0
    %v4413 = vadd.f32 %v2919, %v4412
    %v4414 = vpop.f32.mrb[0].mxu0
    %v4415 = vadd.f32 %v2915, %v4414
    %v4416 = vpop.f32.mrb[0].mxu0
    %v4417 = vadd.f32 %v2919, %v4416
    %4418 = vdwg.mxu0
    %4419 = vmatprep.subr.bf16.mxu0 %v3759
    %4420 = vmatpush1.bf16.msra.mxu0 %v3758
    %4421 = vmatprep.subr.bf16.mxu0 %v3763
    %4422 = vmatpush1.bf16.msra.mxu0 %v3762
    %4423 = vmatprep.subr.bf16.mxu0 %v3767
    %4424 = vmatpush1.bf16.msra.mxu0 %v3766
    %4425 = vmatprep.subr.bf16.mxu0 %v3771
    %4426 = vmatpush1.bf16.msra.mxu0 %v3770
    %4427 = vmatprep.subr.bf16.mxu0 %v3775
    %4428 = vmatpush1.bf16.msra.mxu0 %v3774
    %4429 = vmatprep.subr.bf16.mxu0 %v3779
    %4430 = vmatpush1.bf16.msra.mxu0 %v3778
    %4431 = vmatprep.subr.bf16.mxu0 %v3783
    %4432 = vmatpush1.bf16.msra.mxu0 %v3782
    %4433 = vmatprep.subr.bf16.mxu0 %v3787
    %4434 = vmatpush1.bf16.msra.mxu0 %v3786
    %4435 = vmatprep.subr.bf16.mxu0 %v3791
    %4436 = vmatpush1.bf16.msra.mxu0 %v3790
    %4437 = vmatprep.subr.bf16.mxu0 %v3795
    %4438 = vmatpush1.bf16.msra.mxu0 %v3794
    %4439 = vmatprep.subr.bf16.mxu0 %v3799
    %4440 = vmatpush1.bf16.msra.mxu0 %v3798
    %4441 = vmatprep.subr.bf16.mxu0 %v3803
    %4442 = vmatpush1.bf16.msra.mxu0 %v3802
    %4443 = vmatprep.subr.bf16.mxu0 %v3807
    %4444 = vmatpush1.bf16.msra.mxu0 %v3806
    %4445 = vmatprep.subr.bf16.mxu0 %v3811
    %4446 = vmatpush1.bf16.msra.mxu0 %v3810
    %4447 = vmatprep.subr.bf16.mxu0 %v3815
    %4448 = vmatpush1.bf16.msra.mxu0 %v3814
    %4449 = vmatprep.subr.bf16.mxu0 %v3819
    %4450 = vmatpush1.bf16.msra.mxu0 %v3818
    %4451 = vmatprep.mubr.bf16.mxu0 %v2640
    %4452 = vmatmul.mubr.bf16.gmra.mrb[0].mxu0 %v2639
    %v4453 = vpop.f32.mrb[0].mxu0
    %v4454 = vadd.f32 %v4411, %v4453
    %v4455 = vpop.f32.mrb[0].mxu0
    %v4456 = vadd.f32 %v4413, %v4455
    %v4457 = vpop.f32.mrb[0].mxu0
    %v4458 = vadd.f32 %v4415, %v4457
    %v4459 = vpop.f32.mrb[0].mxu0
    %v4460 = vadd.f32 %v4417, %v4459
    %4461 = vdwg.mxu0
    %4462 = vmatprep.subr.bf16.mxu0 %v3823
    %4463 = vmatpush1.bf16.msra.mxu0 %v3822
    %4464 = vmatprep.subr.bf16.mxu0 %v3827
    %4465 = vmatpush1.bf16.msra.mxu0 %v3826
    %4466 = vmatprep.subr.bf16.mxu0 %v3831
    %4467 = vmatpush1.bf16.msra.mxu0 %v3830
    %4468 = vmatprep.subr.bf16.mxu0 %v3835
    %4469 = vmatpush1.bf16.msra.mxu0 %v3834
    %4470 = vmatprep.subr.bf16.mxu0 %v3839
    %4471 = vmatpush1.bf16.msra.mxu0 %v3838
    %4472 = vmatprep.subr.bf16.mxu0 %v3843
    %4473 = vmatpush1.bf16.msra.mxu0 %v3842
    %4474 = vmatprep.subr.bf16.mxu0 %v3847
    %4475 = vmatpush1.bf16.msra.mxu0 %v3846
    %4476 = vmatprep.subr.bf16.mxu0 %v3851
    %4477 = vmatpush1.bf16.msra.mxu0 %v3850
    %4478 = vmatprep.subr.bf16.mxu0 %v3855
    %4479 = vmatpush1.bf16.msra.mxu0 %v3854
    %4480 = vmatprep.subr.bf16.mxu0 %v3859
    %4481 = vmatpush1.bf16.msra.mxu0 %v3858
    %4482 = vmatprep.subr.bf16.mxu0 %v3863
    %4483 = vmatpush1.bf16.msra.mxu0 %v3862
    %4484 = vmatprep.subr.bf16.mxu0 %v3867
    %4485 = vmatpush1.bf16.msra.mxu0 %v3866
    %4486 = vmatprep.subr.bf16.mxu0 %v3871
    %4487 = vmatpush1.bf16.msra.mxu0 %v3870
    %4488 = vmatprep.subr.bf16.mxu0 %v3875
    %4489 = vmatpush1.bf16.msra.mxu0 %v3874
    %4490 = vmatprep.subr.bf16.mxu0 %v3879
    %4491 = vmatpush1.bf16.msra.mxu0 %v3878
    %4492 = vmatprep.subr.bf16.mxu0 %v3883
    %4493 = vmatpush1.bf16.msra.mxu0 %v3882
    %4494 = vmatprep.mubr.bf16.mxu0 %v2642
    %4495 = vmatmul.mubr.bf16.gmra.mrb[0].mxu0 %v2641
    %v4496 = vpop.f32.mrb[0].mxu0
    %v4497 = vadd.f32 %v4454, %v4496
    %v4498 = vpop.f32.mrb[0].mxu0
    %v4499 = vadd.f32 %v4456, %v4498
    %v4500 = vpop.f32.mrb[0].mxu0
    %v4501 = vadd.f32 %v4458, %v4500
    %v4502 = vpop.f32.mrb[0].mxu0
    %v4503 = vadd.f32 %v4460, %v4502
    %4504 = vdwg.mxu0
    %4505 = vmatprep.subr.bf16.mxu0 %v3887
    %4506 = vmatpush1.bf16.msra.mxu0 %v3886
    %4507 = vmatprep.subr.bf16.mxu0 %v3891
    %4508 = vmatpush1.bf16.msra.mxu0 %v3890
    %4509 = vmatprep.subr.bf16.mxu0 %v3895
    %4510 = vmatpush1.bf16.msra.mxu0 %v3894
    %4511 = vmatprep.subr.bf16.mxu0 %v3899
    %4512 = vmatpush1.bf16.msra.mxu0 %v3898
    %4513 = vmatprep.subr.bf16.mxu0 %v3903
    %4514 = vmatpush1.bf16.msra.mxu0 %v3902
    %4515 = vmatprep.subr.bf16.mxu0 %v3907
    %4516 = vmatpush1.bf16.msra.mxu0 %v3906
    %4517 = vmatprep.subr.bf16.mxu0 %v3911
    %4518 = vmatpush1.bf16.msra.mxu0 %v3910
    %4519 = vmatprep.subr.bf16.mxu0 %v3915
    %4520 = vmatpush1.bf16.msra.mxu0 %v3914
    %4521 = vmatprep.subr.bf16.mxu0 %v3919
    %4522 = vmatpush1.bf16.msra.mxu0 %v3918
    %4523 = vmatprep.subr.bf16.mxu0 %v3923
    %4524 = vmatpush1.bf16.msra.mxu0 %v3922
    %4525 = vmatprep.subr.bf16.mxu0 %v3927
    %4526 = vmatpush1.bf16.msra.mxu0 %v3926
    %4527 = vmatprep.subr.bf16.mxu0 %v3931
    %4528 = vmatpush1.bf16.msra.mxu0 %v3930
    %4529 = vmatprep.subr.bf16.mxu0 %v3935
    %4530 = vmatpush1.bf16.msra.mxu0 %v3934
    %4531 = vmatprep.subr.bf16.mxu0 %v3939
    %4532 = vmatpush1.bf16.msra.mxu0 %v3938
    %4533 = vmatprep.subr.bf16.mxu0 %v3943
    %4534 = vmatpush1.bf16.msra.mxu0 %v3942
    %4535 = vmatprep.subr.bf16.mxu0 %v3947
    %4536 = vmatpush1.bf16.msra.mxu0 %v3946
    %4537 = vmatprep.mubr.bf16.mxu0 %v2644
    %4538 = vmatmul.mubr.bf16.gmra.mrb[0].mxu0 %v2643
    %v4539 = vpop.f32.mrb[0].mxu0
    %v4540 = vadd.f32 %v4497, %v4539
    %v4541 = vpop.f32.mrb[0].mxu0
    %v4542 = vadd.f32 %v4499, %v4541
    %v4543 = vpop.f32.mrb[0].mxu0
    %v4544 = vadd.f32 %v4501, %v4543
    %v4545 = vpop.f32.mrb[0].mxu0
    %v4546 = vadd.f32 %v4503, %v4545
    %4547 = vdwg.mxu0
    %v4548 = vmax.f32 %v4368, 0.0
    %v4549 = vmax.f32 %v4370, 0.0
    %v4550 = vmax.f32 %v4540, 0.0
    %v4551 = vmax.f32 %v4542, 0.0
    %v4552 = vmax.f32 %v4372, 0.0
    %v4553 = vmax.f32 %v4374, 0.0
    %v4554 = vmax.f32 %v4544, 0.0
    %v4555 = vmax.f32 %v4546, 0.0
    %v4556 = vpack.c.bf16 %v4552, %v4548
    %v4557 = vpack.c.bf16 %v4553, %v4549
    %v4558 = vpack.c.bf16 %v4554, %v4550
    %v4559 = vpack.c.bf16 %v4555, %v4551
    %v4560 = vld [vmem:[#allocation6] sm:$0xff]
    %v4561 = vld [vmem:[#allocation6 + $0x8] sm:$0xff]
    %v4562 = vld [vmem:[#allocation6 + $0x10] sm:$0xff]
    %v4563 = vld [vmem:[#allocation6 + $0x18] sm:$0xff]
    %v4564 = vld [vmem:[#allocation6 + $0x20] sm:$0xff]
    %v4565 = vld [vmem:[#allocation6 + $0x28] sm:$0xff]
    %v4566 = vld [vmem:[#allocation6 + $0x30] sm:$0xff]
    %v4567 = vld [vmem:[#allocation6 + $0x38] sm:$0xff]
    %v4568 = vld [vmem:[#allocation6 + $0x40] sm:$0xff]
    %v4569 = vld [vmem:[#allocation6 + $0x48] sm:$0xff]
    %v4570 = vld [vmem:[#allocation6 + $0x50] sm:$0xff]
    %v4571 = vld [vmem:[#allocation6 + $0x58] sm:$0xff]
    %v4572 = vld [vmem:[#allocation6 + $0x60] sm:$0xff]
    %v4573 = vld [vmem:[#allocation6 + $0x68] sm:$0xff]
    %v4574 = vld [vmem:[#allocation6 + $0x70] sm:$0xff]
    %v4575 = vld [vmem:[#allocation6 + $0x78] sm:$0xff]
    %v4576 = vld [vmem:[#allocation6 + $0x80] sm:$0xff]
    %v4577 = vld [vmem:[#allocation6 + $0x88] sm:$0xff]
    %v4578 = vld [vmem:[#allocation6 + $0x90] sm:$0xff]
    %v4579 = vld [vmem:[#allocation6 + $0x98] sm:$0xff]
    %v4580 = vld [vmem:[#allocation6 + $0xa0] sm:$0xff]
    %v4581 = vld [vmem:[#allocation6 + $0xa8] sm:$0xff]
    %v4582 = vld [vmem:[#allocation6 + $0xb0] sm:$0xff]
    %v4583 = vld [vmem:[#allocation6 + $0xb8] sm:$0xff]
    %v4584 = vld [vmem:[#allocation6 + $0xc0] sm:$0xff]
    %v4585 = vld [vmem:[#allocation6 + $0xc8] sm:$0xff]
    %v4586 = vld [vmem:[#allocation6 + $0xd0] sm:$0xff]
    %v4587 = vld [vmem:[#allocation6 + $0xd8] sm:$0xff]
    %v4588 = vld [vmem:[#allocation6 + $0xe0] sm:$0xff]
    %v4589 = vld [vmem:[#allocation6 + $0xe8] sm:$0xff]
    %v4590 = vld [vmem:[#allocation6 + $0xf0] sm:$0xff]
    %v4591 = vld [vmem:[#allocation6 + $0xf8] sm:$0xff]
    %v4592 = vld [vmem:[#allocation6 + $0x100] sm:$0xff]
    %v4593 = vld [vmem:[#allocation6 + $0x108] sm:$0xff]
    %v4594 = vld [vmem:[#allocation6 + $0x110] sm:$0xff]
    %v4595 = vld [vmem:[#allocation6 + $0x118] sm:$0xff]
    %v4596 = vld [vmem:[#allocation6 + $0x120] sm:$0xff]
    %v4597 = vld [vmem:[#allocation6 + $0x128] sm:$0xff]
    %v4598 = vld [vmem:[#allocation6 + $0x130] sm:$0xff]
    %v4599 = vld [vmem:[#allocation6 + $0x138] sm:$0xff]
    %v4600 = vld [vmem:[#allocation6 + $0x140] sm:$0xff]
    %v4601 = vld [vmem:[#allocation6 + $0x148] sm:$0xff]
    %v4602 = vld [vmem:[#allocation6 + $0x150] sm:$0xff]
    %v4603 = vld [vmem:[#allocation6 + $0x158] sm:$0xff]
    %v4604 = vld [vmem:[#allocation6 + $0x160] sm:$0xff]
    %v4605 = vld [vmem:[#allocation6 + $0x168] sm:$0xff]
    %v4606 = vld [vmem:[#allocation6 + $0x170] sm:$0xff]
    %v4607 = vld [vmem:[#allocation6 + $0x178] sm:$0xff]
    %v4608 = vld [vmem:[#allocation6 + $0x180] sm:$0xff]
    %v4609 = vld [vmem:[#allocation6 + $0x188] sm:$0xff]
    %v4610 = vld [vmem:[#allocation6 + $0x190] sm:$0xff]
    %v4611 = vld [vmem:[#allocation6 + $0x198] sm:$0xff]
    %v4612 = vld [vmem:[#allocation6 + $0x1a0] sm:$0xff]
    %v4613 = vld [vmem:[#allocation6 + $0x1a8] sm:$0xff]
    %v4614 = vld [vmem:[#allocation6 + $0x1b0] sm:$0xff]
    %v4615 = vld [vmem:[#allocation6 + $0x1b8] sm:$0xff]
    %v4616 = vld [vmem:[#allocation6 + $0x1c0] sm:$0xff]
    %v4617 = vld [vmem:[#allocation6 + $0x1c8] sm:$0xff]
    %v4618 = vld [vmem:[#allocation6 + $0x1d0] sm:$0xff]
    %v4619 = vld [vmem:[#allocation6 + $0x1d8] sm:$0xff]
    %v4620 = vld [vmem:[#allocation6 + $0x1e0] sm:$0xff]
    %v4621 = vld [vmem:[#allocation6 + $0x1e8] sm:$0xff]
    %v4622 = vld [vmem:[#allocation6 + $0x1f0] sm:$0xff]
    %v4623 = vld [vmem:[#allocation6 + $0x1f8] sm:$0xff]
    %s4624 = scalar_lea.vmem [#allocation10], 2
    %v4625 = vld [vmem:[%s4624] ss:$8 sm:$0x3]
    %v4627 = vlaneseq
    %v4628 = vshrl.u32 %v4627, 7
    %v4629 = vsub.s32 0, %v4628
    %v4630 = vrot.slane %v4625, %v4629
    %v4631 = vlaneseq
    %v4632 = vshrl.u32 %v4631, 7
    %v4633 = vsub.s32 1, %v4632
    %v4634 = vrot.slane %v4625, %v4633
    %v4701 = vunpack.c.l.b16 %v4560
    %v4702 = vunpack.c.h.b16 %v4560
    %v4703 = vunpack.c.l.b16 %v4561
    %v4704 = vunpack.c.h.b16 %v4561
    %v4705 = vunpack.c.l.b16 %v4562
    %v4706 = vunpack.c.h.b16 %v4562
    %v4707 = vunpack.c.l.b16 %v4563
    %v4708 = vunpack.c.h.b16 %v4563
    %v4709 = vunpack.c.l.b16 %v4564
    %v4710 = vunpack.c.h.b16 %v4564
    %v4711 = vunpack.c.l.b16 %v4565
    %v4712 = vunpack.c.h.b16 %v4565
    %v4713 = vunpack.c.l.b16 %v4566
    %v4714 = vunpack.c.h.b16 %v4566
    %v4715 = vunpack.c.l.b16 %v4567
    %v4716 = vunpack.c.h.b16 %v4567
    %v4717 = vunpack.c.l.b16 %v4568
    %v4718 = vunpack.c.h.b16 %v4568
    %v4719 = vunpack.c.l.b16 %v4569
    %v4720 = vunpack.c.h.b16 %v4569
    %v4721 = vunpack.c.l.b16 %v4570
    %v4722 = vunpack.c.h.b16 %v4570
    %v4723 = vunpack.c.l.b16 %v4571
    %v4724 = vunpack.c.h.b16 %v4571
    %v4725 = vunpack.c.l.b16 %v4572
    %v4726 = vunpack.c.h.b16 %v4572
    %v4727 = vunpack.c.l.b16 %v4573
    %v4728 = vunpack.c.h.b16 %v4573
    %v4729 = vunpack.c.l.b16 %v4574
    %v4730 = vunpack.c.h.b16 %v4574
    %v4731 = vunpack.c.l.b16 %v4575
    %v4732 = vunpack.c.h.b16 %v4575
    %v4733 = vunpack.c.l.b16 %v4576
    %v4734 = vunpack.c.h.b16 %v4576
    %v4735 = vunpack.c.l.b16 %v4577
    %v4736 = vunpack.c.h.b16 %v4577
    %v4737 = vunpack.c.l.b16 %v4578
    %v4738 = vunpack.c.h.b16 %v4578
    %v4739 = vunpack.c.l.b16 %v4579
    %v4740 = vunpack.c.h.b16 %v4579
    %v4741 = vunpack.c.l.b16 %v4580
    %v4742 = vunpack.c.h.b16 %v4580
    %v4743 = vunpack.c.l.b16 %v4581
    %v4744 = vunpack.c.h.b16 %v4581
    %v4745 = vunpack.c.l.b16 %v4582
    %v4746 = vunpack.c.h.b16 %v4582
    %v4747 = vunpack.c.l.b16 %v4583
    %v4748 = vunpack.c.h.b16 %v4583
    %v4749 = vunpack.c.l.b16 %v4584
    %v4750 = vunpack.c.h.b16 %v4584
    %v4751 = vunpack.c.l.b16 %v4585
    %v4752 = vunpack.c.h.b16 %v4585
    %v4753 = vunpack.c.l.b16 %v4586
    %v4754 = vunpack.c.h.b16 %v4586
    %v4755 = vunpack.c.l.b16 %v4587
    %v4756 = vunpack.c.h.b16 %v4587
    %v4757 = vunpack.c.l.b16 %v4588
    %v4758 = vunpack.c.h.b16 %v4588
    %v4759 = vunpack.c.l.b16 %v4589
    %v4760 = vunpack.c.h.b16 %v4589
    %v4761 = vunpack.c.l.b16 %v4590
    %v4762 = vunpack.c.h.b16 %v4590
    %v4763 = vunpack.c.l.b16 %v4591
    %v4764 = vunpack.c.h.b16 %v4591
    %v4765 = vunpack.c.l.b16 %v4592
    %v4766 = vunpack.c.h.b16 %v4592
    %v4767 = vunpack.c.l.b16 %v4593
    %v4768 = vunpack.c.h.b16 %v4593
    %v4769 = vunpack.c.l.b16 %v4594
    %v4770 = vunpack.c.h.b16 %v4594
    %v4771 = vunpack.c.l.b16 %v4595
    %v4772 = vunpack.c.h.b16 %v4595
    %v4773 = vunpack.c.l.b16 %v4596
    %v4774 = vunpack.c.h.b16 %v4596
    %v4775 = vunpack.c.l.b16 %v4597
    %v4776 = vunpack.c.h.b16 %v4597
    %v4777 = vunpack.c.l.b16 %v4598
    %v4778 = vunpack.c.h.b16 %v4598
    %v4779 = vunpack.c.l.b16 %v4599
    %v4780 = vunpack.c.h.b16 %v4599
    %v4781 = vunpack.c.l.b16 %v4600
    %v4782 = vunpack.c.h.b16 %v4600
    %v4783 = vunpack.c.l.b16 %v4601
    %v4784 = vunpack.c.h.b16 %v4601
    %v4785 = vunpack.c.l.b16 %v4602
    %v4786 = vunpack.c.h.b16 %v4602
    %v4787 = vunpack.c.l.b16 %v4603
    %v4788 = vunpack.c.h.b16 %v4603
    %v4789 = vunpack.c.l.b16 %v4604
    %v4790 = vunpack.c.h.b16 %v4604
    %v4791 = vunpack.c.l.b16 %v4605
    %v4792 = vunpack.c.h.b16 %v4605
    %v4793 = vunpack.c.l.b16 %v4606
    %v4794 = vunpack.c.h.b16 %v4606
    %v4795 = vunpack.c.l.b16 %v4607
    %v4796 = vunpack.c.h.b16 %v4607
    %v4797 = vunpack.c.l.b16 %v4608
    %v4798 = vunpack.c.h.b16 %v4608
    %v4799 = vunpack.c.l.b16 %v4609
    %v4800 = vunpack.c.h.b16 %v4609
    %v4801 = vunpack.c.l.b16 %v4610
    %v4802 = vunpack.c.h.b16 %v4610
    %v4803 = vunpack.c.l.b16 %v4611
    %v4804 = vunpack.c.h.b16 %v4611
    %v4805 = vunpack.c.l.b16 %v4612
    %v4806 = vunpack.c.h.b16 %v4612
    %v4807 = vunpack.c.l.b16 %v4613
    %v4808 = vunpack.c.h.b16 %v4613
    %v4809 = vunpack.c.l.b16 %v4614
    %v4810 = vunpack.c.h.b16 %v4614
    %v4811 = vunpack.c.l.b16 %v4615
    %v4812 = vunpack.c.h.b16 %v4615
    %v4813 = vunpack.c.l.b16 %v4616
    %v4814 = vunpack.c.h.b16 %v4616
    %v4815 = vunpack.c.l.b16 %v4617
    %v4816 = vunpack.c.h.b16 %v4617
    %v4817 = vunpack.c.l.b16 %v4618
    %v4818 = vunpack.c.h.b16 %v4618
    %v4819 = vunpack.c.l.b16 %v4619
    %v4820 = vunpack.c.h.b16 %v4619
    %v4821 = vunpack.c.l.b16 %v4620
    %v4822 = vunpack.c.h.b16 %v4620
    %v4823 = vunpack.c.l.b16 %v4621
    %v4824 = vunpack.c.h.b16 %v4621
    %v4825 = vunpack.c.l.b16 %v4622
    %v4826 = vunpack.c.h.b16 %v4622
    %v4827 = vunpack.c.l.b16 %v4623
    %v4828 = vunpack.c.h.b16 %v4623
    %v4829 = vpack.c.b16 %v4703, %v4701
    %v4830 = vpack.c.b16 %v4704, %v4702
    %v4831 = vpack.c.b16 %v4707, %v4705
    %v4832 = vpack.c.b16 %v4708, %v4706
    %v4833 = vpack.c.b16 %v4711, %v4709
    %v4834 = vpack.c.b16 %v4712, %v4710
    %v4835 = vpack.c.b16 %v4715, %v4713
    %v4836 = vpack.c.b16 %v4716, %v4714
    %v4837 = vpack.c.b16 %v4719, %v4717
    %v4838 = vpack.c.b16 %v4720, %v4718
    %v4839 = vpack.c.b16 %v4723, %v4721
    %v4840 = vpack.c.b16 %v4724, %v4722
    %v4841 = vpack.c.b16 %v4727, %v4725
    %v4842 = vpack.c.b16 %v4728, %v4726
    %v4843 = vpack.c.b16 %v4731, %v4729
    %v4844 = vpack.c.b16 %v4732, %v4730
    %v4845 = vpack.c.b16 %v4735, %v4733
    %v4846 = vpack.c.b16 %v4736, %v4734
    %v4847 = vpack.c.b16 %v4739, %v4737
    %v4848 = vpack.c.b16 %v4740, %v4738
    %v4849 = vpack.c.b16 %v4743, %v4741
    %v4850 = vpack.c.b16 %v4744, %v4742
    %v4851 = vpack.c.b16 %v4747, %v4745
    %v4852 = vpack.c.b16 %v4748, %v4746
    %v4853 = vpack.c.b16 %v4751, %v4749
    %v4854 = vpack.c.b16 %v4752, %v4750
    %v4855 = vpack.c.b16 %v4755, %v4753
    %v4856 = vpack.c.b16 %v4756, %v4754
    %v4857 = vpack.c.b16 %v4759, %v4757
    %v4858 = vpack.c.b16 %v4760, %v4758
    %v4859 = vpack.c.b16 %v4763, %v4761
    %v4860 = vpack.c.b16 %v4764, %v4762
    %v4861 = vpack.c.b16 %v4767, %v4765
    %v4862 = vpack.c.b16 %v4768, %v4766
    %v4863 = vpack.c.b16 %v4771, %v4769
    %v4864 = vpack.c.b16 %v4772, %v4770
    %v4865 = vpack.c.b16 %v4775, %v4773
    %v4866 = vpack.c.b16 %v4776, %v4774
    %v4867 = vpack.c.b16 %v4779, %v4777
    %v4868 = vpack.c.b16 %v4780, %v4778
    %v4869 = vpack.c.b16 %v4783, %v4781
    %v4870 = vpack.c.b16 %v4784, %v4782
    %v4871 = vpack.c.b16 %v4787, %v4785
    %v4872 = vpack.c.b16 %v4788, %v4786
    %v4873 = vpack.c.b16 %v4791, %v4789
    %v4874 = vpack.c.b16 %v4792, %v4790
    %v4875 = vpack.c.b16 %v4795, %v4793
    %v4876 = vpack.c.b16 %v4796, %v4794
    %v4877 = vpack.c.b16 %v4799, %v4797
    %v4878 = vpack.c.b16 %v4800, %v4798
    %v4879 = vpack.c.b16 %v4803, %v4801
    %v4880 = vpack.c.b16 %v4804, %v4802
    %v4881 = vpack.c.b16 %v4807, %v4805
    %v4882 = vpack.c.b16 %v4808, %v4806
    %v4883 = vpack.c.b16 %v4811, %v4809
    %v4884 = vpack.c.b16 %v4812, %v4810
    %v4885 = vpack.c.b16 %v4815, %v4813
    %v4886 = vpack.c.b16 %v4816, %v4814
    %v4887 = vpack.c.b16 %v4819, %v4817
    %v4888 = vpack.c.b16 %v4820, %v4818
    %v4889 = vpack.c.b16 %v4823, %v4821
    %v4890 = vpack.c.b16 %v4824, %v4822
    %v4891 = vpack.c.b16 %v4827, %v4825
    %v4892 = vpack.c.b16 %v4828, %v4826
    %4957 = vmatprep.subr.bf16.mxu0 %v4830
    %4958 = vmatpush1.bf16.msra.mxu0 %v4829
    %4959 = vmatprep.subr.bf16.mxu0 %v4832
    %4960 = vmatpush1.bf16.msra.mxu0 %v4831
    %4961 = vmatprep.subr.bf16.mxu0 %v4834
    %4962 = vmatpush1.bf16.msra.mxu0 %v4833
    %4963 = vmatprep.subr.bf16.mxu0 %v4836
    %4964 = vmatpush1.bf16.msra.mxu0 %v4835
    %4965 = vmatprep.subr.bf16.mxu0 %v4838
    %4966 = vmatpush1.bf16.msra.mxu0 %v4837
    %4967 = vmatprep.subr.bf16.mxu0 %v4840
    %4968 = vmatpush1.bf16.msra.mxu0 %v4839
    %4969 = vmatprep.subr.bf16.mxu0 %v4842
    %4970 = vmatpush1.bf16.msra.mxu0 %v4841
    %4971 = vmatprep.subr.bf16.mxu0 %v4844
    %4972 = vmatpush1.bf16.msra.mxu0 %v4843
    %4973 = vmatprep.subr.bf16.mxu0 %v4846
    %4974 = vmatpush1.bf16.msra.mxu0 %v4845
    %4975 = vmatprep.subr.bf16.mxu0 %v4848
    %4976 = vmatpush1.bf16.msra.mxu0 %v4847
    %4977 = vmatprep.subr.bf16.mxu0 %v4850
    %4978 = vmatpush1.bf16.msra.mxu0 %v4849
    %4979 = vmatprep.subr.bf16.mxu0 %v4852
    %4980 = vmatpush1.bf16.msra.mxu0 %v4851
    %4981 = vmatprep.subr.bf16.mxu0 %v4854
    %4982 = vmatpush1.bf16.msra.mxu0 %v4853
    %4983 = vmatprep.subr.bf16.mxu0 %v4856
    %4984 = vmatpush1.bf16.msra.mxu0 %v4855
    %4985 = vmatprep.subr.bf16.mxu0 %v4858
    %4986 = vmatpush1.bf16.msra.mxu0 %v4857
    %4987 = vmatprep.subr.bf16.mxu0 %v4860
    %4988 = vmatpush1.bf16.msra.mxu0 %v4859
    %4989 = vmatprep.mubr.bf16.mxu0 %v4557
    %4990 = vmatmul.mubr.bf16.gmra.mrb[0].mxu0 %v4556
    %v4991 = vpop.f32.mrb[0].mxu0
    %v4992 = vadd.f32 %v4630, %v4991
    %v4993 = vpop.f32.mrb[0].mxu0
    %v4994 = vadd.f32 %v4634, %v4993
    %v4995 = vpop.f32.mrb[0].mxu0
    %v4996 = vadd.f32 %v4630, %v4995
    %v4997 = vpop.f32.mrb[0].mxu0
    %v4998 = vadd.f32 %v4634, %v4997
    %4999 = vdwg.mxu0
    %5000 = vmatprep.subr.bf16.mxu0 %v4862
    %5001 = vmatpush1.bf16.msra.mxu0 %v4861
    %5002 = vmatprep.subr.bf16.mxu0 %v4864
    %5003 = vmatpush1.bf16.msra.mxu0 %v4863
    %5004 = vmatprep.subr.bf16.mxu0 %v4866
    %5005 = vmatpush1.bf16.msra.mxu0 %v4865
    %5006 = vmatprep.subr.bf16.mxu0 %v4868
    %5007 = vmatpush1.bf16.msra.mxu0 %v4867
    %5008 = vmatprep.subr.bf16.mxu0 %v4870
    %5009 = vmatpush1.bf16.msra.mxu0 %v4869
    %5010 = vmatprep.subr.bf16.mxu0 %v4872
    %5011 = vmatpush1.bf16.msra.mxu0 %v4871
    %5012 = vmatprep.subr.bf16.mxu0 %v4874
    %5013 = vmatpush1.bf16.msra.mxu0 %v4873
    %5014 = vmatprep.subr.bf16.mxu0 %v4876
    %5015 = vmatpush1.bf16.msra.mxu0 %v4875
    %5016 = vmatprep.subr.bf16.mxu0 %v4878
    %5017 = vmatpush1.bf16.msra.mxu0 %v4877
    %5018 = vmatprep.subr.bf16.mxu0 %v4880
    %5019 = vmatpush1.bf16.msra.mxu0 %v4879
    %5020 = vmatprep.subr.bf16.mxu0 %v4882
    %5021 = vmatpush1.bf16.msra.mxu0 %v4881
    %5022 = vmatprep.subr.bf16.mxu0 %v4884
    %5023 = vmatpush1.bf16.msra.mxu0 %v4883
    %5024 = vmatprep.subr.bf16.mxu0 %v4886
    %5025 = vmatpush1.bf16.msra.mxu0 %v4885
    %5026 = vmatprep.subr.bf16.mxu0 %v4888
    %5027 = vmatpush1.bf16.msra.mxu0 %v4887
    %5028 = vmatprep.subr.bf16.mxu0 %v4890
    %5029 = vmatpush1.bf16.msra.mxu0 %v4889
    %5030 = vmatprep.subr.bf16.mxu0 %v4892
    %5031 = vmatpush1.bf16.msra.mxu0 %v4891
    %5032 = vmatprep.mubr.bf16.mxu0 %v4559
    %5033 = vmatmul.mubr.bf16.gmra.mrb[0].mxu0 %v4558
    %v5034 = vpop.f32.mrb[0].mxu0
    %v5035 = vadd.f32 %v4992, %v5034
    %v5036 = vpop.f32.mrb[0].mxu0
    %v5037 = vadd.f32 %v4994, %v5036
    %v5038 = vpop.f32.mrb[0].mxu0
    %v5039 = vadd.f32 %v4996, %v5038
    %v5040 = vpop.f32.mrb[0].mxu0
    %v5041 = vadd.f32 %v4998, %v5040
    %5042 = vdwg.mxu0
    %v5043 = vmax.f32 %v5035, 0.0
    %v5044 = vmax.f32 %v5037, 0.0
    %v5045 = vmax.f32 %v5039, 0.0
    %v5046 = vmax.f32 %v5041, 0.0
    %v5047 = vpack.c.bf16 %v5045, %v5043
    %v5048 = vpack.c.bf16 %v5046, %v5044
    %v5049 = vld [vmem:[#allocation7] sm:$0xf]
    %v5050 = vld [vmem:[#allocation7 + $0x14] sm:$0xf]
    %v5051 = vld [vmem:[#allocation7 + $0x28] sm:$0xf]
    %v5052 = vld [vmem:[#allocation7 + $0x3c] sm:$0xf]
    %v5053 = vld [vmem:[#allocation7 + $0x50] sm:$0xf]
    %v5054 = vld [vmem:[#allocation7 + $0x64] sm:$0xf]
    %v5055 = vld [vmem:[#allocation7 + $0x78] sm:$0xf]
    %v5056 = vld [vmem:[#allocation7 + $0x8c] sm:$0xf]
    %v5057 = vld [vmem:[#allocation7 + $0xa0] sm:$0xf]
    %v5058 = vld [vmem:[#allocation7 + $0xb4] sm:$0xf]
    %v5059 = vld [vmem:[#allocation7 + $0xc8] sm:$0xf]
    %v5060 = vld [vmem:[#allocation7 + $0xdc] sm:$0xf]
    %v5061 = vld [vmem:[#allocation7 + $0xf0] sm:$0xf]
    %v5062 = vld [vmem:[#allocation7 + $0x104] sm:$0xf]
    %v5063 = vld [vmem:[#allocation7 + $0x118] sm:$0xf]
    %v5064 = vld [vmem:[#allocation7 + $0x12c] sm:$0xf]
    %v5065 = vld [vmem:[#allocation7 + $0x140] sm:$0xf]
    %v5066 = vld [vmem:[#allocation7 + $0x154] sm:$0xf]
    %v5067 = vld [vmem:[#allocation7 + $0x168] sm:$0xf]
    %v5068 = vld [vmem:[#allocation7 + $0x17c] sm:$0xf]
    %v5069 = vld [vmem:[#allocation7 + $0x190] sm:$0xf]
    %v5070 = vld [vmem:[#allocation7 + $0x1a4] sm:$0xf]
    %v5071 = vld [vmem:[#allocation7 + $0x1b8] sm:$0xf]
    %v5072 = vld [vmem:[#allocation7 + $0x1cc] sm:$0xf]
    %v5073 = vld [vmem:[#allocation7 + $0x1e0] sm:$0xf]
    %v5074 = vld [vmem:[#allocation7 + $0x1f4] sm:$0xf]
    %v5075 = vld [vmem:[#allocation7 + $0x208] sm:$0xf]
    %v5076 = vld [vmem:[#allocation7 + $0x21c] sm:$0xf]
    %v5077 = vld [vmem:[#allocation7 + $0x230] sm:$0xf]
    %v5078 = vld [vmem:[#allocation7 + $0x244] sm:$0xf]
    %v5079 = vld [vmem:[#allocation7 + $0x258] sm:$0xf]
    %v5080 = vld [vmem:[#allocation7 + $0x26c] sm:$0xf]
    %v5081 = vld [vmem:[#allocation10 + $0x3] ss:$0 sm:$0xff]
    %v5114 = vunpack.c.l.b16 %v5049
    %v5115 = vunpack.c.l.b16 %v5050
    %v5116 = vunpack.c.l.b16 %v5051
    %v5117 = vunpack.c.l.b16 %v5052
    %v5118 = vunpack.c.l.b16 %v5053
    %v5119 = vunpack.c.l.b16 %v5054
    %v5120 = vunpack.c.l.b16 %v5055
    %v5121 = vunpack.c.l.b16 %v5056
    %v5122 = vunpack.c.l.b16 %v5057
    %v5123 = vunpack.c.l.b16 %v5058
    %v5124 = vunpack.c.l.b16 %v5059
    %v5125 = vunpack.c.l.b16 %v5060
    %v5126 = vunpack.c.l.b16 %v5061
    %v5127 = vunpack.c.l.b16 %v5062
    %v5128 = vunpack.c.l.b16 %v5063
    %v5129 = vunpack.c.l.b16 %v5064
    %v5130 = vunpack.c.l.b16 %v5065
    %v5131 = vunpack.c.l.b16 %v5066
    %v5132 = vunpack.c.l.b16 %v5067
    %v5133 = vunpack.c.l.b16 %v5068
    %v5134 = vunpack.c.l.b16 %v5069
    %v5135 = vunpack.c.l.b16 %v5070
    %v5136 = vunpack.c.l.b16 %v5071
    %v5137 = vunpack.c.l.b16 %v5072
    %v5138 = vunpack.c.l.b16 %v5073
    %v5139 = vunpack.c.l.b16 %v5074
    %v5140 = vunpack.c.l.b16 %v5075
    %v5141 = vunpack.c.l.b16 %v5076
    %v5142 = vunpack.c.l.b16 %v5077
    %v5143 = vunpack.c.l.b16 %v5078
    %v5144 = vunpack.c.l.b16 %v5079
    %v5145 = vunpack.c.l.b16 %v5080
    %v5146 = vpack.c.b16 %v5115, %v5114
    %v5147 = vpack.c.b16 %v5117, %v5116
    %v5148 = vpack.c.b16 %v5119, %v5118
    %v5149 = vpack.c.b16 %v5121, %v5120
    %v5150 = vpack.c.b16 %v5123, %v5122
    %v5151 = vpack.c.b16 %v5125, %v5124
    %v5152 = vpack.c.b16 %v5127, %v5126
    %v5153 = vpack.c.b16 %v5129, %v5128
    %v5154 = vpack.c.b16 %v5131, %v5130
    %v5155 = vpack.c.b16 %v5133, %v5132
    %v5156 = vpack.c.b16 %v5135, %v5134
    %v5157 = vpack.c.b16 %v5137, %v5136
    %v5158 = vpack.c.b16 %v5139, %v5138
    %v5159 = vpack.c.b16 %v5141, %v5140
    %v5160 = vpack.c.b16 %v5143, %v5142
    %v5161 = vpack.c.b16 %v5145, %v5144
    %5178 = vmatprep.subr.bf16.mxu0 0
    %5179 = vmatpush1.bf16.msra.mxu0 %v5146
    %5180 = vmatprep.subr.bf16.mxu0 0
    %5181 = vmatpush1.bf16.msra.mxu0 %v5147
    %5182 = vmatprep.subr.bf16.mxu0 0
    %5183 = vmatpush1.bf16.msra.mxu0 %v5148
    %5184 = vmatprep.subr.bf16.mxu0 0
    %5185 = vmatpush1.bf16.msra.mxu0 %v5149
    %5186 = vmatprep.subr.bf16.mxu0 0
    %5187 = vmatpush1.bf16.msra.mxu0 %v5150
    %5188 = vmatprep.subr.bf16.mxu0 0
    %5189 = vmatpush1.bf16.msra.mxu0 %v5151
    %5190 = vmatprep.subr.bf16.mxu0 0
    %5191 = vmatpush1.bf16.msra.mxu0 %v5152
    %5192 = vmatprep.subr.bf16.mxu0 0
    %5193 = vmatpush1.bf16.msra.mxu0 %v5153
    %5194 = vmatprep.subr.bf16.mxu0 0
    %5195 = vmatpush1.bf16.msra.mxu0 %v5154
    %5196 = vmatprep.subr.bf16.mxu0 0
    %5197 = vmatpush1.bf16.msra.mxu0 %v5155
    %5198 = vmatprep.subr.bf16.mxu0 0
    %5199 = vmatpush1.bf16.msra.mxu0 %v5156
    %5200 = vmatprep.subr.bf16.mxu0 0
    %5201 = vmatpush1.bf16.msra.mxu0 %v5157
    %5202 = vmatprep.subr.bf16.mxu0 0
    %5203 = vmatpush1.bf16.msra.mxu0 %v5158
    %5204 = vmatprep.subr.bf16.mxu0 0
    %5205 = vmatpush1.bf16.msra.mxu0 %v5159
    %5206 = vmatprep.subr.bf16.mxu0 0
    %5207 = vmatpush1.bf16.msra.mxu0 %v5160
    %5208 = vmatprep.subr.bf16.mxu0 0
    %5209 = vmatpush1.bf16.msra.mxu0 %v5161
    %5210 = vmatprep.mubr.bf16.mxu0 %v5048
    %5211 = vmatmul.mubr.bf16.gmra.mrb[0].mxu0 %v5047
    %v5212 = vpop.f32.mrb[0].mxu0
    %v5213 = vadd.f32 %v5081, %v5212
    %v5214 = vpop.f32.mrb[0].mxu0
    %v5215 = vpop.f32.mrb[0].mxu0
    %v5216 = vadd.f32 %v5081, %v5215
    %v5217 = vpop.f32.mrb[0].mxu0
    %5218 = vdwg.mxu0
    %v5219 = vmax.f32 %v5213, 0.0
    %v5220 = vmax.f32 %v5216, 0.0
    %v5221 = vpack.c.bf16 %v5220, %v5219
    %v5222 = vld [vmem:[#allocation9] sm:$0xff]
    %v5223 = vld [vmem:[#allocation9 + $0x8] sm:$0xf]
    %v5224 = vld [vmem:[#allocation9 + $0x20] sm:$0xff]
    %v5225 = vld [vmem:[#allocation9 + $0x28] sm:$0xf]
    %v5226 = vld [vmem:[#allocation9 + $0x40] sm:$0xff]
    %v5227 = vld [vmem:[#allocation9 + $0x48] sm:$0xf]
    %v5228 = vld [vmem:[#allocation9 + $0x60] sm:$0xff]
    %v5229 = vld [vmem:[#allocation9 + $0x68] sm:$0xf]
    %v5230 = vld [vmem:[#allocation9 + $0x80] sm:$0xff]
    %v5231 = vld [vmem:[#allocation9 + $0x88] sm:$0xf]
    %v5232 = vld [vmem:[#allocation9 + $0xa0] sm:$0xff]
    %v5233 = vld [vmem:[#allocation9 + $0xa8] sm:$0xf]
    %v5234 = vld [vmem:[#allocation9 + $0xc0] sm:$0xff]
    %v5235 = vld [vmem:[#allocation9 + $0xc8] sm:$0xf]
    %v5236 = vld [vmem:[#allocation9 + $0xe0] sm:$0xff]
    %v5237 = vld [vmem:[#allocation9 + $0xe8] sm:$0xf]
    %v5238 = vld [vmem:[#allocation9 + $0x100] sm:$0xff]
    %v5239 = vld [vmem:[#allocation9 + $0x108] sm:$0xf]
    %v5240 = vld [vmem:[#allocation9 + $0x120] sm:$0xff]
    %v5241 = vld [vmem:[#allocation9 + $0x128] sm:$0xf]
    %v5242 = vld [vmem:[#allocation9 + $0x140] sm:$0xff]
    %v5243 = vld [vmem:[#allocation9 + $0x148] sm:$0xf]
    %v5244 = vld [vmem:[#allocation9 + $0x160] sm:$0xff]
    %v5245 = vld [vmem:[#allocation9 + $0x168] sm:$0xf]
    %v5246 = vld [vmem:[#allocation9 + $0x180] sm:$0xff]
    %v5247 = vld [vmem:[#allocation9 + $0x188] sm:$0xf]
    %v5248 = vld [vmem:[#allocation9 + $0x1a0] sm:$0xff]
    %v5249 = vld [vmem:[#allocation9 + $0x1a8] sm:$0xf]
    %v5250 = vld [vmem:[#allocation9 + $0x1c0] sm:$0xff]
    %v5251 = vld [vmem:[#allocation9 + $0x1c8] sm:$0xf]
    %v5252 = vld [vmem:[#allocation9 + $0x1e0] sm:$0xff]
    %v5253 = vld [vmem:[#allocation9 + $0x1e8] sm:$0xf]
    %s5254 = scalar_lea.vmem [#allocation10], 4
    %v5255 = vld [vmem:[%s5254] ss:$8 sm:$0x7]
    %v5257 = vlaneseq
    %v5258 = vshrl.u32 %v5257, 7
    %v5259 = vsub.s32 0, %v5258
    %v5260 = vrot.slane %v5255, %v5259
    %v5261 = vlaneseq
    %v5262 = vshrl.u32 %v5261, 7
    %v5263 = vsub.s32 1, %v5262
    %v5264 = vrot.slane %v5255, %v5263
    %v5265 = vlaneseq
    %v5266 = vshrl.u32 %v5265, 7
    %v5267 = vsub.s32 2, %v5266
    %v5268 = vrot.slane %v5255, %v5267
    %v5304 = vunpack.c.l.b16 %v5222
    %v5305 = vunpack.c.h.b16 %v5222
    %v5306 = vunpack.c.l.b16 %v5223
    %v5307 = vunpack.c.l.b16 %v5224
    %v5308 = vunpack.c.h.b16 %v5224
    %v5309 = vunpack.c.l.b16 %v5225
    %v5310 = vunpack.c.l.b16 %v5226
    %v5311 = vunpack.c.h.b16 %v5226
    %v5312 = vunpack.c.l.b16 %v5227
    %v5313 = vunpack.c.l.b16 %v5228
    %v5314 = vunpack.c.h.b16 %v5228
    %v5315 = vunpack.c.l.b16 %v5229
    %v5316 = vunpack.c.l.b16 %v5230
    %v5317 = vunpack.c.h.b16 %v5230
    %v5318 = vunpack.c.l.b16 %v5231
    %v5319 = vunpack.c.l.b16 %v5232
    %v5320 = vunpack.c.h.b16 %v5232
    %v5321 = vunpack.c.l.b16 %v5233
    %v5322 = vunpack.c.l.b16 %v5234
    %v5323 = vunpack.c.h.b16 %v5234
    %v5324 = vunpack.c.l.b16 %v5235
    %v5325 = vunpack.c.l.b16 %v5236
    %v5326 = vunpack.c.h.b16 %v5236
    %v5327 = vunpack.c.l.b16 %v5237
    %v5328 = vunpack.c.l.b16 %v5238
    %v5329 = vunpack.c.h.b16 %v5238
    %v5330 = vunpack.c.l.b16 %v5239
    %v5331 = vunpack.c.l.b16 %v5240
    %v5332 = vunpack.c.h.b16 %v5240
    %v5333 = vunpack.c.l.b16 %v5241
    %v5334 = vunpack.c.l.b16 %v5242
    %v5335 = vunpack.c.h.b16 %v5242
    %v5336 = vunpack.c.l.b16 %v5243
    %v5337 = vunpack.c.l.b16 %v5244
    %v5338 = vunpack.c.h.b16 %v5244
    %v5339 = vunpack.c.l.b16 %v5245
    %v5340 = vunpack.c.l.b16 %v5246
    %v5341 = vunpack.c.h.b16 %v5246
    %v5342 = vunpack.c.l.b16 %v5247
    %v5343 = vunpack.c.l.b16 %v5248
    %v5344 = vunpack.c.h.b16 %v5248
    %v5345 = vunpack.c.l.b16 %v5249
    %v5346 = vunpack.c.l.b16 %v5250
    %v5347 = vunpack.c.h.b16 %v5250
    %v5348 = vunpack.c.l.b16 %v5251
    %v5349 = vunpack.c.l.b16 %v5252
    %v5350 = vunpack.c.h.b16 %v5252
    %v5351 = vunpack.c.l.b16 %v5253
    %v5352 = vpack.c.b16 %v5307, %v5304
    %v5353 = vpack.c.b16 %v5308, %v5305
    %v5354 = vpack.c.b16 %v5309, %v5306
    %v5355 = vpack.c.b16 %v5313, %v5310
    %v5356 = vpack.c.b16 %v5314, %v5311
    %v5357 = vpack.c.b16 %v5315, %v5312
    %v5358 = vpack.c.b16 %v5319, %v5316
    %v5359 = vpack.c.b16 %v5320, %v5317
    %v5360 = vpack.c.b16 %v5321, %v5318
    %v5361 = vpack.c.b16 %v5325, %v5322
    %v5362 = vpack.c.b16 %v5326, %v5323
    %v5363 = vpack.c.b16 %v5327, %v5324
    %v5364 = vpack.c.b16 %v5331, %v5328
    %v5365 = vpack.c.b16 %v5332, %v5329
    %v5366 = vpack.c.b16 %v5333, %v5330
    %v5367 = vpack.c.b16 %v5337, %v5334
    %v5368 = vpack.c.b16 %v5338, %v5335
    %v5369 = vpack.c.b16 %v5339, %v5336
    %v5370 = vpack.c.b16 %v5343, %v5340
    %v5371 = vpack.c.b16 %v5344, %v5341
    %v5372 = vpack.c.b16 %v5345, %v5342
    %v5373 = vpack.c.b16 %v5349, %v5346
    %v5374 = vpack.c.b16 %v5350, %v5347
    %v5375 = vpack.c.b16 %v5351, %v5348
    %5400 = vmatprep.subr.bf16.mxu0 %v5353
    %5401 = vmatpush1.bf16.msra.mxu0 %v5352
    %5402 = vmatprep.subr.bf16.mxu0 %v5356
    %5403 = vmatpush1.bf16.msra.mxu0 %v5355
    %5404 = vmatprep.subr.bf16.mxu0 %v5359
    %5405 = vmatpush1.bf16.msra.mxu0 %v5358
    %5406 = vmatprep.subr.bf16.mxu0 %v5362
    %5407 = vmatpush1.bf16.msra.mxu0 %v5361
    %5408 = vmatprep.subr.bf16.mxu0 %v5365
    %5409 = vmatpush1.bf16.msra.mxu0 %v5364
    %5410 = vmatprep.subr.bf16.mxu0 %v5368
    %5411 = vmatpush1.bf16.msra.mxu0 %v5367
    %5412 = vmatprep.subr.bf16.mxu0 %v5371
    %5413 = vmatpush1.bf16.msra.mxu0 %v5370
    %5414 = vmatprep.subr.bf16.mxu0 %v5374
    %5415 = vmatpush1.bf16.msra.mxu0 %v5373
    %5416 = vmatprep.subr.bf16.mxu0 0
    %5417 = vmatpush1.bf16.msra.mxu0 0
    %5418 = vmatprep.subr.bf16.mxu0 0
    %5419 = vmatpush1.bf16.msra.mxu0 0
    %5420 = vmatprep.subr.bf16.mxu0 0
    %5421 = vmatpush1.bf16.msra.mxu0 0
    %5422 = vmatprep.subr.bf16.mxu0 0
    %5423 = vmatpush1.bf16.msra.mxu0 0
    %5424 = vmatprep.subr.bf16.mxu0 0
    %5425 = vmatpush1.bf16.msra.mxu0 0
    %5426 = vmatprep.subr.bf16.mxu0 0
    %5427 = vmatpush1.bf16.msra.mxu0 0
    %5428 = vmatprep.subr.bf16.mxu0 0
    %5429 = vmatpush1.bf16.msra.mxu0 0
    %5430 = vmatprep.subr.bf16.mxu0 0
    %5431 = vmatpush1.bf16.msra.mxu0 0
    %5432 = vmatprep.mubr.bf16.mxu0 0
    %5433 = vmatmul.mubr.bf16.gmra.mrb[0].mxu0 %v5221
    %v5434 = vpop.f32.mrb[0].mxu0
    %v5435 = vadd.f32 %v5260, %v5434
    %v5436 = vpop.f32.mrb[0].mxu0
    %v5437 = vadd.f32 %v5264, %v5436
    %v5438 = vpop.f32.mrb[0].mxu0
    %v5439 = vadd.f32 %v5260, %v5438
    %v5440 = vpop.f32.mrb[0].mxu0
    %v5441 = vadd.f32 %v5264, %v5440
    %5442 = vdwg.mxu0
    %5443 = vmatprep.subr.bf16.mxu0 0
    %5444 = vmatpush1.bf16.msra.mxu0 %v5354
    %5445 = vmatprep.subr.bf16.mxu0 0
    %5446 = vmatpush1.bf16.msra.mxu0 %v5357
    %5447 = vmatprep.subr.bf16.mxu0 0
    %5448 = vmatpush1.bf16.msra.mxu0 %v5360
    %5449 = vmatprep.subr.bf16.mxu0 0
    %5450 = vmatpush1.bf16.msra.mxu0 %v5363
    %5451 = vmatprep.subr.bf16.mxu0 0
    %5452 = vmatpush1.bf16.msra.mxu0 %v5366
    %5453 = vmatprep.subr.bf16.mxu0 0
    %5454 = vmatpush1.bf16.msra.mxu0 %v5369
    %5455 = vmatprep.subr.bf16.mxu0 0
    %5456 = vmatpush1.bf16.msra.mxu0 %v5372
    %5457 = vmatprep.subr.bf16.mxu0 0
    %5458 = vmatpush1.bf16.msra.mxu0 %v5375
    %5459 = vmatprep.subr.bf16.mxu0 0
    %5460 = vmatpush1.bf16.msra.mxu0 0
    %5461 = vmatprep.subr.bf16.mxu0 0
    %5462 = vmatpush1.bf16.msra.mxu0 0
    %5463 = vmatprep.subr.bf16.mxu0 0
    %5464 = vmatpush1.bf16.msra.mxu0 0
    %5465 = vmatprep.subr.bf16.mxu0 0
    %5466 = vmatpush1.bf16.msra.mxu0 0
    %5467 = vmatprep.subr.bf16.mxu0 0
    %5468 = vmatpush1.bf16.msra.mxu0 0
    %5469 = vmatprep.subr.bf16.mxu0 0
    %5470 = vmatpush1.bf16.msra.mxu0 0
    %5471 = vmatprep.subr.bf16.mxu0 0
    %5472 = vmatpush1.bf16.msra.mxu0 0
    %5473 = vmatprep.subr.bf16.mxu0 0
    %5474 = vmatpush1.bf16.msra.mxu0 0
    %5475 = vmatprep.mubr.bf16.mxu0 0
    %5476 = vmatmul.mubr.bf16.gmra.mrb[0].mxu0 %v5221
    %v5477 = vpop.f32.mrb[0].mxu0
    %v5478 = vadd.f32 %v5268, %v5477
    %v5479 = vpop.f32.mrb[0].mxu0
    %v5480 = vpop.f32.mrb[0].mxu0
    %v5481 = vadd.f32 %v5268, %v5480
    %v5482 = vpop.f32.mrb[0].mxu0
    %5483 = vdwg.mxu0
    %v5484 = vmax.f32 %v5435, 0.0
    %v5485 = vmax.f32 %v5437, 0.0
    %v5486 = vmax.f32 %v5478, 0.0
    %v5487 = vmax.f32 %v5439, 0.0
    %v5488 = vmax.f32 %v5441, 0.0
    %v5489 = vmax.f32 %v5481, 0.0
    %v5490 = vpack.c.bf16 %v5487, %v5484
    %v5491 = vpack.c.bf16 %v5488, %v5485
    %v5492 = vpack.c.bf16 %v5489, %v5486
    %v5493 = vld [vmem:[#allocation7 + $0x4] sm:$0xff]
    %v5494 = vld [vmem:[#allocation7 + $0x18] sm:$0xff]
    %v5495 = vld [vmem:[#allocation7 + $0x2c] sm:$0xff]
    %v5496 = vld [vmem:[#allocation7 + $0x40] sm:$0xff]
    %v5497 = vld [vmem:[#allocation7 + $0x54] sm:$0xff]
    %v5498 = vld [vmem:[#allocation7 + $0x68] sm:$0xff]
    %v5499 = vld [vmem:[#allocation7 + $0x7c] sm:$0xff]
    %v5500 = vld [vmem:[#allocation7 + $0x90] sm:$0xff]
    %v5501 = vld [vmem:[#allocation7 + $0xa4] sm:$0xff]
    %v5502 = vld [vmem:[#allocation7 + $0xb8] sm:$0xff]
    %v5503 = vld [vmem:[#allocation7 + $0xcc] sm:$0xff]
    %v5504 = vld [vmem:[#allocation7 + $0xe0] sm:$0xff]
    %v5505 = vld [vmem:[#allocation7 + $0xf4] sm:$0xff]
    %v5506 = vld [vmem:[#allocation7 + $0x108] sm:$0xff]
    %v5507 = vld [vmem:[#allocation7 + $0x11c] sm:$0xff]
    %v5508 = vld [vmem:[#allocation7 + $0x130] sm:$0xff]
    %v5509 = vld [vmem:[#allocation7 + $0x144] sm:$0xff]
    %v5510 = vld [vmem:[#allocation7 + $0x158] sm:$0xff]
    %v5511 = vld [vmem:[#allocation7 + $0x16c] sm:$0xff]
    %v5512 = vld [vmem:[#allocation7 + $0x180] sm:$0xff]
    %v5513 = vld [vmem:[#allocation7 + $0x194] sm:$0xff]
    %v5514 = vld [vmem:[#allocation7 + $0x1a8] sm:$0xff]
    %v5515 = vld [vmem:[#allocation7 + $0x1bc] sm:$0xff]
    %v5516 = vld [vmem:[#allocation7 + $0x1d0] sm:$0xff]
    %v5517 = vld [vmem:[#allocation7 + $0x1e4] sm:$0xff]
    %v5518 = vld [vmem:[#allocation7 + $0x1f8] sm:$0xff]
    %v5519 = vld [vmem:[#allocation7 + $0x20c] sm:$0xff]
    %v5520 = vld [vmem:[#allocation7 + $0x220] sm:$0xff]
    %v5521 = vld [vmem:[#allocation7 + $0x234] sm:$0xff]
    %v5522 = vld [vmem:[#allocation7 + $0x248] sm:$0xff]
    %v5523 = vld [vmem:[#allocation7 + $0x25c] sm:$0xff]
    %v5524 = vld [vmem:[#allocation7 + $0x270] sm:$0xff]
    %s5525 = scalar_lea.vmem [#allocation10], 7
    %v5526 = vld [vmem:[%s5525] ss:$8 sm:$0x3]
    %v5528 = vlaneseq
    %v5529 = vshrl.u32 %v5528, 7
    %v5530 = vsub.s32 0, %v5529
    %v5531 = vrot.slane %v5526, %v5530
    %v5532 = vlaneseq
    %v5533 = vshrl.u32 %v5532, 7
    %v5534 = vsub.s32 1, %v5533
    %v5535 = vrot.slane %v5526, %v5534
    %v5570 = vunpack.c.l.b16 %v5493
    %v5571 = vunpack.c.h.b16 %v5493
    %v5572 = vunpack.c.l.b16 %v5494
    %v5573 = vunpack.c.h.b16 %v5494
    %v5574 = vunpack.c.l.b16 %v5495
    %v5575 = vunpack.c.h.b16 %v5495
    %v5576 = vunpack.c.l.b16 %v5496
    %v5577 = vunpack.c.h.b16 %v5496
    %v5578 = vunpack.c.l.b16 %v5497
    %v5579 = vunpack.c.h.b16 %v5497
    %v5580 = vunpack.c.l.b16 %v5498
    %v5581 = vunpack.c.h.b16 %v5498
    %v5582 = vunpack.c.l.b16 %v5499
    %v5583 = vunpack.c.h.b16 %v5499
    %v5584 = vunpack.c.l.b16 %v5500
    %v5585 = vunpack.c.h.b16 %v5500
    %v5586 = vunpack.c.l.b16 %v5501
    %v5587 = vunpack.c.h.b16 %v5501
    %v5588 = vunpack.c.l.b16 %v5502
    %v5589 = vunpack.c.h.b16 %v5502
    %v5590 = vunpack.c.l.b16 %v5503
    %v5591 = vunpack.c.h.b16 %v5503
    %v5592 = vunpack.c.l.b16 %v5504
    %v5593 = vunpack.c.h.b16 %v5504
    %v5594 = vunpack.c.l.b16 %v5505
    %v5595 = vunpack.c.h.b16 %v5505
    %v5596 = vunpack.c.l.b16 %v5506
    %v5597 = vunpack.c.h.b16 %v5506
    %v5598 = vunpack.c.l.b16 %v5507
    %v5599 = vunpack.c.h.b16 %v5507
    %v5600 = vunpack.c.l.b16 %v5508
    %v5601 = vunpack.c.h.b16 %v5508
    %v5602 = vunpack.c.l.b16 %v5509
    %v5603 = vunpack.c.h.b16 %v5509
    %v5604 = vunpack.c.l.b16 %v5510
    %v5605 = vunpack.c.h.b16 %v5510
    %v5606 = vunpack.c.l.b16 %v5511
    %v5607 = vunpack.c.h.b16 %v5511
    %v5608 = vunpack.c.l.b16 %v5512
    %v5609 = vunpack.c.h.b16 %v5512
    %v5610 = vunpack.c.l.b16 %v5513
    %v5611 = vunpack.c.h.b16 %v5513
    %v5612 = vunpack.c.l.b16 %v5514
    %v5613 = vunpack.c.h.b16 %v5514
    %v5614 = vunpack.c.l.b16 %v5515
    %v5615 = vunpack.c.h.b16 %v5515
    %v5616 = vunpack.c.l.b16 %v5516
    %v5617 = vunpack.c.h.b16 %v5516
    %v5618 = vunpack.c.l.b16 %v5517
    %v5619 = vunpack.c.h.b16 %v5517
    %v5620 = vunpack.c.l.b16 %v5518
    %v5621 = vunpack.c.h.b16 %v5518
    %v5622 = vunpack.c.l.b16 %v5519
    %v5623 = vunpack.c.h.b16 %v5519
    %v5624 = vunpack.c.l.b16 %v5520
    %v5625 = vunpack.c.h.b16 %v5520
    %v5626 = vunpack.c.l.b16 %v5521
    %v5627 = vunpack.c.h.b16 %v5521
    %v5628 = vunpack.c.l.b16 %v5522
    %v5629 = vunpack.c.h.b16 %v5522
    %v5630 = vunpack.c.l.b16 %v5523
    %v5631 = vunpack.c.h.b16 %v5523
    %v5632 = vunpack.c.l.b16 %v5524
    %v5633 = vunpack.c.h.b16 %v5524
    %v5634 = vpack.c.b16 %v5572, %v5570
    %v5635 = vpack.c.b16 %v5573, %v5571
    %v5636 = vpack.c.b16 %v5576, %v5574
    %v5637 = vpack.c.b16 %v5577, %v5575
    %v5638 = vpack.c.b16 %v5580, %v5578
    %v5639 = vpack.c.b16 %v5581, %v5579
    %v5640 = vpack.c.b16 %v5584, %v5582
    %v5641 = vpack.c.b16 %v5585, %v5583
    %v5642 = vpack.c.b16 %v5588, %v5586
    %v5643 = vpack.c.b16 %v5589, %v5587
    %v5644 = vpack.c.b16 %v5592, %v5590
    %v5645 = vpack.c.b16 %v5593, %v5591
    %v5646 = vpack.c.b16 %v5596, %v5594
    %v5647 = vpack.c.b16 %v5597, %v5595
    %v5648 = vpack.c.b16 %v5600, %v5598
    %v5649 = vpack.c.b16 %v5601, %v5599
    %v5650 = vpack.c.b16 %v5604, %v5602
    %v5651 = vpack.c.b16 %v5605, %v5603
    %v5652 = vpack.c.b16 %v5608, %v5606
    %v5653 = vpack.c.b16 %v5609, %v5607
    %v5654 = vpack.c.b16 %v5612, %v5610
    %v5655 = vpack.c.b16 %v5613, %v5611
    %v5656 = vpack.c.b16 %v5616, %v5614
    %v5657 = vpack.c.b16 %v5617, %v5615
    %v5658 = vpack.c.b16 %v5620, %v5618
    %v5659 = vpack.c.b16 %v5621, %v5619
    %v5660 = vpack.c.b16 %v5624, %v5622
    %v5661 = vpack.c.b16 %v5625, %v5623
    %v5662 = vpack.c.b16 %v5628, %v5626
    %v5663 = vpack.c.b16 %v5629, %v5627
    %v5664 = vpack.c.b16 %v5632, %v5630
    %v5665 = vpack.c.b16 %v5633, %v5631
    %5698 = vmatprep.subr.bf16.mxu0 %v5635
    %5699 = vmatpush1.bf16.msra.mxu0 %v5634
    %5700 = vmatprep.subr.bf16.mxu0 %v5637
    %5701 = vmatpush1.bf16.msra.mxu0 %v5636
    %5702 = vmatprep.subr.bf16.mxu0 %v5639
    %5703 = vmatpush1.bf16.msra.mxu0 %v5638
    %5704 = vmatprep.subr.bf16.mxu0 %v5641
    %5705 = vmatpush1.bf16.msra.mxu0 %v5640
    %5706 = vmatprep.subr.bf16.mxu0 %v5643
    %5707 = vmatpush1.bf16.msra.mxu0 %v5642
    %5708 = vmatprep.subr.bf16.mxu0 %v5645
    %5709 = vmatpush1.bf16.msra.mxu0 %v5644
    %5710 = vmatprep.subr.bf16.mxu0 %v5647
    %5711 = vmatpush1.bf16.msra.mxu0 %v5646
    %5712 = vmatprep.subr.bf16.mxu0 %v5649
    %5713 = vmatpush1.bf16.msra.mxu0 %v5648
    %5714 = vmatprep.subr.bf16.mxu0 %v5651
    %5715 = vmatpush1.bf16.msra.mxu0 %v5650
    %5716 = vmatprep.subr.bf16.mxu0 %v5653
    %5717 = vmatpush1.bf16.msra.mxu0 %v5652
    %5718 = vmatprep.subr.bf16.mxu0 %v5655
    %5719 = vmatpush1.bf16.msra.mxu0 %v5654
    %5720 = vmatprep.subr.bf16.mxu0 %v5657
    %5721 = vmatpush1.bf16.msra.mxu0 %v5656
    %5722 = vmatprep.subr.bf16.mxu0 %v5659
    %5723 = vmatpush1.bf16.msra.mxu0 %v5658
    %5724 = vmatprep.subr.bf16.mxu0 %v5661
    %5725 = vmatpush1.bf16.msra.mxu0 %v5660
    %5726 = vmatprep.subr.bf16.mxu0 %v5663
    %5727 = vmatpush1.bf16.msra.mxu0 %v5662
    %5728 = vmatprep.subr.bf16.mxu0 %v5665
    %5729 = vmatpush1.bf16.msra.mxu0 %v5664
    %5730 = vmatprep.mubr.bf16.mxu0 %v5492
    %5731 = vmatmul.mubr.bf16.gmra.mrb[0].mxu0 %v5491
    %v5732 = vpop.f32.mrb[0].mxu0
    %v5733 = vadd.f32 %v5531, %v5732
    %v5734 = vpop.f32.mrb[0].mxu0
    %v5735 = vadd.f32 %v5535, %v5734
    %v5736 = vpop.f32.mrb[0].mxu0
    %v5737 = vadd.f32 %v5531, %v5736
    %v5738 = vpop.f32.mrb[0].mxu0
    %v5739 = vadd.f32 %v5535, %v5738
    %5740 = vdwg.mxu0
    %v5741 = vmax.f32 %v5733, 0.0
    %v5742 = vmax.f32 %v5735, 0.0
    %v5743 = vmax.f32 %v5737, 0.0
    %v5744 = vmax.f32 %v5739, 0.0
    %v5745 = vpack.c.bf16 %v5743, %v5741
    %v5746 = vpack.c.bf16 %v5744, %v5742
    %v5747 = vld [vmem:[#allocation7 + $0xc] sm:$0xf]
    %v5748 = vld [vmem:[#allocation7 + $0x20] sm:$0xf]
    %v5749 = vld [vmem:[#allocation7 + $0x34] sm:$0xf]
    %v5750 = vld [vmem:[#allocation7 + $0x48] sm:$0xf]
    %v5751 = vld [vmem:[#allocation7 + $0x5c] sm:$0xf]
    %v5752 = vld [vmem:[#allocation7 + $0x70] sm:$0xf]
    %v5753 = vld [vmem:[#allocation7 + $0x84] sm:$0xf]
    %v5754 = vld [vmem:[#allocation7 + $0x98] sm:$0xf]
    %v5755 = vld [vmem:[#allocation7 + $0xac] sm:$0xf]
    %v5756 = vld [vmem:[#allocation7 + $0xc0] sm:$0xf]
    %v5757 = vld [vmem:[#allocation7 + $0xd4] sm:$0xf]
    %v5758 = vld [vmem:[#allocation7 + $0xe8] sm:$0xf]
    %v5759 = vld [vmem:[#allocation7 + $0xfc] sm:$0xf]
    %v5760 = vld [vmem:[#allocation7 + $0x110] sm:$0xf]
    %v5761 = vld [vmem:[#allocation7 + $0x124] sm:$0xf]
    %v5762 = vld [vmem:[#allocation7 + $0x138] sm:$0xf]
    %v5763 = vld [vmem:[#allocation7 + $0x14c] sm:$0xf]
    %v5764 = vld [vmem:[#allocation7 + $0x160] sm:$0xf]
    %v5765 = vld [vmem:[#allocation7 + $0x174] sm:$0xf]
    %v5766 = vld [vmem:[#allocation7 + $0x188] sm:$0xf]
    %v5767 = vld [vmem:[#allocation7 + $0x19c] sm:$0xf]
    %v5768 = vld [vmem:[#allocation7 + $0x1b0] sm:$0xf]
    %v5769 = vld [vmem:[#allocation7 + $0x1c4] sm:$0xf]
    %v5770 = vld [vmem:[#allocation7 + $0x1d8] sm:$0xf]
    %v5771 = vld [vmem:[#allocation7 + $0x1ec] sm:$0xf]
    %v5772 = vld [vmem:[#allocation7 + $0x200] sm:$0xf]
    %v5773 = vld [vmem:[#allocation7 + $0x214] sm:$0xf]
    %v5774 = vld [vmem:[#allocation7 + $0x228] sm:$0xf]
    %v5775 = vld [vmem:[#allocation7 + $0x23c] sm:$0xf]
    %v5776 = vld [vmem:[#allocation7 + $0x250] sm:$0xf]
    %v5777 = vld [vmem:[#allocation7 + $0x264] sm:$0xf]
    %v5778 = vld [vmem:[#allocation7 + $0x278] sm:$0xf]
    %v5779 = vld [vmem:[#allocation10 + $0x40] ss:$0 sm:$0xff]
    %v5812 = vunpack.c.l.b16 %v5747
    %v5813 = vunpack.c.l.b16 %v5748
    %v5814 = vunpack.c.l.b16 %v5749
    %v5815 = vunpack.c.l.b16 %v5750
    %v5816 = vunpack.c.l.b16 %v5751
    %v5817 = vunpack.c.l.b16 %v5752
    %v5818 = vunpack.c.l.b16 %v5753
    %v5819 = vunpack.c.l.b16 %v5754
    %v5820 = vunpack.c.l.b16 %v5755
    %v5821 = vunpack.c.l.b16 %v5756
    %v5822 = vunpack.c.l.b16 %v5757
    %v5823 = vunpack.c.l.b16 %v5758
    %v5824 = vunpack.c.l.b16 %v5759
    %v5825 = vunpack.c.l.b16 %v5760
    %v5826 = vunpack.c.l.b16 %v5761
    %v5827 = vunpack.c.l.b16 %v5762
    %v5828 = vunpack.c.l.b16 %v5763
    %v5829 = vunpack.c.l.b16 %v5764
    %v5830 = vunpack.c.l.b16 %v5765
    %v5831 = vunpack.c.l.b16 %v5766
    %v5832 = vunpack.c.l.b16 %v5767
    %v5833 = vunpack.c.l.b16 %v5768
    %v5834 = vunpack.c.l.b16 %v5769
    %v5835 = vunpack.c.l.b16 %v5770
    %v5836 = vunpack.c.l.b16 %v5771
    %v5837 = vunpack.c.l.b16 %v5772
    %v5838 = vunpack.c.l.b16 %v5773
    %v5839 = vunpack.c.l.b16 %v5774
    %v5840 = vunpack.c.l.b16 %v5775
    %v5841 = vunpack.c.l.b16 %v5776
    %v5842 = vunpack.c.l.b16 %v5777
    %v5843 = vunpack.c.l.b16 %v5778
    %v5844 = vpack.c.b16 %v5813, %v5812
    %v5845 = vpack.c.b16 %v5815, %v5814
    %v5846 = vpack.c.b16 %v5817, %v5816
    %v5847 = vpack.c.b16 %v5819, %v5818
    %v5848 = vpack.c.b16 %v5821, %v5820
    %v5849 = vpack.c.b16 %v5823, %v5822
    %v5850 = vpack.c.b16 %v5825, %v5824
    %v5851 = vpack.c.b16 %v5827, %v5826
    %v5852 = vpack.c.b16 %v5829, %v5828
    %v5853 = vpack.c.b16 %v5831, %v5830
    %v5854 = vpack.c.b16 %v5833, %v5832
    %v5855 = vpack.c.b16 %v5835, %v5834
    %v5856 = vpack.c.b16 %v5837, %v5836
    %v5857 = vpack.c.b16 %v5839, %v5838
    %v5858 = vpack.c.b16 %v5841, %v5840
    %v5859 = vpack.c.b16 %v5843, %v5842
    %5876 = vmatprep.subr.bf16.mxu0 0
    %5877 = vmatpush1.bf16.msra.mxu0 %v5844
    %5878 = vmatprep.subr.bf16.mxu0 0
    %5879 = vmatpush1.bf16.msra.mxu0 %v5845
    %5880 = vmatprep.subr.bf16.mxu0 0
    %5881 = vmatpush1.bf16.msra.mxu0 %v5846
    %5882 = vmatprep.subr.bf16.mxu0 0
    %5883 = vmatpush1.bf16.msra.mxu0 %v5847
    %5884 = vmatprep.subr.bf16.mxu0 0
    %5885 = vmatpush1.bf16.msra.mxu0 %v5848
    %5886 = vmatprep.subr.bf16.mxu0 0
    %5887 = vmatpush1.bf16.msra.mxu0 %v5849
    %5888 = vmatprep.subr.bf16.mxu0 0
    %5889 = vmatpush1.bf16.msra.mxu0 %v5850
    %5890 = vmatprep.subr.bf16.mxu0 0
    %5891 = vmatpush1.bf16.msra.mxu0 %v5851
    %5892 = vmatprep.subr.bf16.mxu0 0
    %5893 = vmatpush1.bf16.msra.mxu0 %v5852
    %5894 = vmatprep.subr.bf16.mxu0 0
    %5895 = vmatpush1.bf16.msra.mxu0 %v5853
    %5896 = vmatprep.subr.bf16.mxu0 0
    %5897 = vmatpush1.bf16.msra.mxu0 %v5854
    %5898 = vmatprep.subr.bf16.mxu0 0
    %5899 = vmatpush1.bf16.msra.mxu0 %v5855
    %5900 = vmatprep.subr.bf16.mxu0 0
    %5901 = vmatpush1.bf16.msra.mxu0 %v5856
    %5902 = vmatprep.subr.bf16.mxu0 0
    %5903 = vmatpush1.bf16.msra.mxu0 %v5857
    %5904 = vmatprep.subr.bf16.mxu0 0
    %5905 = vmatpush1.bf16.msra.mxu0 %v5858
    %5906 = vmatprep.subr.bf16.mxu0 0
    %5907 = vmatpush1.bf16.msra.mxu0 %v5859
    %5908 = vmatprep.mubr.bf16.mxu0 %v5746
    %5909 = vmatmul.mubr.bf16.gmra.mrb[0].mxu0 %v5745
    %v5910 = vpop.f32.mrb[0].mxu0
    %v5911 = vadd.f32 %v5779, %v5910
    %v5912 = vpop.f32.mrb[0].mxu0
    %v5913 = vpop.f32.mrb[0].mxu0
    %v5914 = vadd.f32 %v5779, %v5913
    %v5915 = vpop.f32.mrb[0].mxu0
    %5916 = vdwg.mxu0
    %v5917 = vmax.f32 %v5911, 0.0
    %v5918 = vmax.f32 %v5914, 0.0
    %v5919 = vpack.c.bf16 %v5918, %v5917
    %v5920 = vld [vmem:[#allocation9 + $0xc] sm:$0xf]
    %v5921 = vld [vmem:[#allocation9 + $0x2c] sm:$0xf]
    %v5922 = vld [vmem:[#allocation9 + $0x4c] sm:$0xf]
    %v5923 = vld [vmem:[#allocation9 + $0x6c] sm:$0xf]
    %v5924 = vld [vmem:[#allocation9 + $0x8c] sm:$0xf]
    %v5925 = vld [vmem:[#allocation9 + $0xac] sm:$0xf]
    %v5926 = vld [vmem:[#allocation9 + $0xcc] sm:$0xf]
    %v5927 = vld [vmem:[#allocation9 + $0xec] sm:$0xf]
    %v5928 = vld [vmem:[#allocation9 + $0x10c] sm:$0xf]
    %v5929 = vld [vmem:[#allocation9 + $0x12c] sm:$0xf]
    %v5930 = vld [vmem:[#allocation9 + $0x14c] sm:$0xf]
    %v5931 = vld [vmem:[#allocation9 + $0x16c] sm:$0xf]
    %v5932 = vld [vmem:[#allocation9 + $0x18c] sm:$0xf]
    %v5933 = vld [vmem:[#allocation9 + $0x1ac] sm:$0xf]
    %v5934 = vld [vmem:[#allocation9 + $0x1cc] sm:$0xf]
    %v5935 = vld [vmem:[#allocation9 + $0x1ec] sm:$0xf]
    %v5936 = vld [vmem:[#allocation10 + $0x5] ss:$0 sm:$0xff]
    %v5953 = vunpack.c.l.b16 %v5920
    %v5954 = vunpack.c.l.b16 %v5921
    %v5955 = vunpack.c.l.b16 %v5922
    %v5956 = vunpack.c.l.b16 %v5923
    %v5957 = vunpack.c.l.b16 %v5924
    %v5958 = vunpack.c.l.b16 %v5925
    %v5959 = vunpack.c.l.b16 %v5926
    %v5960 = vunpack.c.l.b16 %v5927
    %v5961 = vunpack.c.l.b16 %v5928
    %v5962 = vunpack.c.l.b16 %v5929
    %v5963 = vunpack.c.l.b16 %v5930
    %v5964 = vunpack.c.l.b16 %v5931
    %v5965 = vunpack.c.l.b16 %v5932
    %v5966 = vunpack.c.l.b16 %v5933
    %v5967 = vunpack.c.l.b16 %v5934
    %v5968 = vunpack.c.l.b16 %v5935
    %v5969 = vpack.c.b16 %v5954, %v5953
    %v5970 = vpack.c.b16 %v5956, %v5955
    %v5971 = vpack.c.b16 %v5958, %v5957
    %v5972 = vpack.c.b16 %v5960, %v5959
    %v5973 = vpack.c.b16 %v5962, %v5961
    %v5974 = vpack.c.b16 %v5964, %v5963
    %v5975 = vpack.c.b16 %v5966, %v5965
    %v5976 = vpack.c.b16 %v5968, %v5967
    %5985 = vmatprep.subr.bf16.mxu0 0
    %5986 = vmatpush1.bf16.msra.mxu0 %v5969
    %5987 = vmatprep.subr.bf16.mxu0 0
    %5988 = vmatpush1.bf16.msra.mxu0 %v5970
    %5989 = vmatprep.subr.bf16.mxu0 0
    %5990 = vmatpush1.bf16.msra.mxu0 %v5971
    %5991 = vmatprep.subr.bf16.mxu0 0
    %5992 = vmatpush1.bf16.msra.mxu0 %v5972
    %5993 = vmatprep.subr.bf16.mxu0 0
    %5994 = vmatpush1.bf16.msra.mxu0 %v5973
    %5995 = vmatprep.subr.bf16.mxu0 0
    %5996 = vmatpush1.bf16.msra.mxu0 %v5974
    %5997 = vmatprep.subr.bf16.mxu0 0
    %5998 = vmatpush1.bf16.msra.mxu0 %v5975
    %5999 = vmatprep.subr.bf16.mxu0 0
    %6000 = vmatpush1.bf16.msra.mxu0 %v5976
    %6001 = vmatprep.subr.bf16.mxu0 0
    %6002 = vmatpush1.bf16.msra.mxu0 0
    %6003 = vmatprep.subr.bf16.mxu0 0
    %6004 = vmatpush1.bf16.msra.mxu0 0
    %6005 = vmatprep.subr.bf16.mxu0 0
    %6006 = vmatpush1.bf16.msra.mxu0 0
    %6007 = vmatprep.subr.bf16.mxu0 0
    %6008 = vmatpush1.bf16.msra.mxu0 0
    %6009 = vmatprep.subr.bf16.mxu0 0
    %6010 = vmatpush1.bf16.msra.mxu0 0
    %6011 = vmatprep.subr.bf16.mxu0 0
    %6012 = vmatpush1.bf16.msra.mxu0 0
    %6013 = vmatprep.subr.bf16.mxu0 0
    %6014 = vmatpush1.bf16.msra.mxu0 0
    %6015 = vmatprep.subr.bf16.mxu0 0
    %6016 = vmatpush1.bf16.msra.mxu0 0
    %6017 = vmatprep.mubr.bf16.mxu0 0
    %6018 = vmatmul.mubr.bf16.gmra.mrb[0].mxu0 %v5919
    %v6019 = vpop.f32.mrb[0].mxu0
    %v6020 = vadd.f32 %v5936, %v6019
    %v6021 = vpop.f32.mrb[0].mxu0
    %v6022 = vpop.f32.mrb[0].mxu0
    %v6023 = vadd.f32 %v5936, %v6022
    %v6024 = vpop.f32.mrb[0].mxu0
    %6025 = vdwg.mxu0
    %v6026 = vlaneseq
    %v6027 = vand.u32 %v6026, 127
    %vm6028 = vcmp.lt.s32.totalorder %v6027, 64
    %v6029 = vtanh.pop %v6020
    %v6030 = vtanh.pop %v6023
    %v6031 = vmax.f32 %v6020, 0.0
    %v6032 = vmax.f32 %v6023, 0.0
    %v6033 = vsel %vm6028, %v6029, %v6031
    %v6034 = vsel %vm6028, %v6030, %v6032
    %v6035 = vpack.c.bf16 %v6034, %v6033
    %v6036 = vld [vmem:[#allocation9 + $0x10] sm:$0xff]
    %v6037 = vld [vmem:[#allocation9 + $0x30] sm:$0xff]
    %v6038 = vld [vmem:[#allocation9 + $0x50] sm:$0xff]
    %v6039 = vld [vmem:[#allocation9 + $0x70] sm:$0xff]
    %v6040 = vld [vmem:[#allocation9 + $0x90] sm:$0xff]
    %v6041 = vld [vmem:[#allocation9 + $0xb0] sm:$0xff]
    %v6042 = vld [vmem:[#allocation9 + $0xd0] sm:$0xff]
    %v6043 = vld [vmem:[#allocation9 + $0xf0] sm:$0xff]
    %v6044 = vld [vmem:[#allocation9 + $0x110] sm:$0xff]
    %v6045 = vld [vmem:[#allocation9 + $0x130] sm:$0xff]
    %v6046 = vld [vmem:[#allocation9 + $0x150] sm:$0xff]
    %v6047 = vld [vmem:[#allocation9 + $0x170] sm:$0xff]
    %v6048 = vld [vmem:[#allocation9 + $0x190] sm:$0xff]
    %v6049 = vld [vmem:[#allocation9 + $0x1b0] sm:$0xff]
    %v6050 = vld [vmem:[#allocation9 + $0x1d0] sm:$0xff]
    %v6051 = vld [vmem:[#allocation9 + $0x1f0] sm:$0xff]
    %s6052 = scalar_lea.vmem [#allocation10], 6
    %v6053 = vld [vmem:[%s6052] ss:$8 sm:$0x3]
    %v6055 = vlaneseq
    %v6056 = vshrl.u32 %v6055, 7
    %v6057 = vsub.s32 0, %v6056
    %v6058 = vrot.slane %v6053, %v6057
    %v6059 = vlaneseq
    %v6060 = vshrl.u32 %v6059, 7
    %v6061 = vsub.s32 1, %v6060
    %v6062 = vrot.slane %v6053, %v6061
    %v6081 = vunpack.c.l.b16 %v6036
    %v6082 = vunpack.c.h.b16 %v6036
    %v6083 = vunpack.c.l.b16 %v6037
    %v6084 = vunpack.c.h.b16 %v6037
    %v6085 = vunpack.c.l.b16 %v6038
    %v6086 = vunpack.c.h.b16 %v6038
    %v6087 = vunpack.c.l.b16 %v6039
    %v6088 = vunpack.c.h.b16 %v6039
    %v6089 = vunpack.c.l.b16 %v6040
    %v6090 = vunpack.c.h.b16 %v6040
    %v6091 = vunpack.c.l.b16 %v6041
    %v6092 = vunpack.c.h.b16 %v6041
    %v6093 = vunpack.c.l.b16 %v6042
    %v6094 = vunpack.c.h.b16 %v6042
    %v6095 = vunpack.c.l.b16 %v6043
    %v6096 = vunpack.c.h.b16 %v6043
    %v6097 = vunpack.c.l.b16 %v6044
    %v6098 = vunpack.c.h.b16 %v6044
    %v6099 = vunpack.c.l.b16 %v6045
    %v6100 = vunpack.c.h.b16 %v6045
    %v6101 = vunpack.c.l.b16 %v6046
    %v6102 = vunpack.c.h.b16 %v6046
    %v6103 = vunpack.c.l.b16 %v6047
    %v6104 = vunpack.c.h.b16 %v6047
    %v6105 = vunpack.c.l.b16 %v6048
    %v6106 = vunpack.c.h.b16 %v6048
    %v6107 = vunpack.c.l.b16 %v6049
    %v6108 = vunpack.c.h.b16 %v6049
    %v6109 = vunpack.c.l.b16 %v6050
    %v6110 = vunpack.c.h.b16 %v6050
    %v6111 = vunpack.c.l.b16 %v6051
    %v6112 = vunpack.c.h.b16 %v6051
    %v6113 = vpack.c.b16 %v6083, %v6081
    %v6114 = vpack.c.b16 %v6084, %v6082
    %v6115 = vpack.c.b16 %v6087, %v6085
    %v6116 = vpack.c.b16 %v6088, %v6086
    %v6117 = vpack.c.b16 %v6091, %v6089
    %v6118 = vpack.c.b16 %v6092, %v6090
    %v6119 = vpack.c.b16 %v6095, %v6093
    %v6120 = vpack.c.b16 %v6096, %v6094
    %v6121 = vpack.c.b16 %v6099, %v6097
    %v6122 = vpack.c.b16 %v6100, %v6098
    %v6123 = vpack.c.b16 %v6103, %v6101
    %v6124 = vpack.c.b16 %v6104, %v6102
    %v6125 = vpack.c.b16 %v6107, %v6105
    %v6126 = vpack.c.b16 %v6108, %v6106
    %v6127 = vpack.c.b16 %v6111, %v6109
    %v6128 = vpack.c.b16 %v6112, %v6110
    %6145 = vmatprep.subr.bf16.mxu0 %v6114
    %6146 = vmatpush1.bf16.msra.mxu0 %v6113
    %6147 = vmatprep.subr.bf16.mxu0 %v6116
    %6148 = vmatpush1.bf16.msra.mxu0 %v6115
    %6149 = vmatprep.subr.bf16.mxu0 %v6118
    %6150 = vmatpush1.bf16.msra.mxu0 %v6117
    %6151 = vmatprep.subr.bf16.mxu0 %v6120
    %6152 = vmatpush1.bf16.msra.mxu0 %v6119
    %6153 = vmatprep.subr.bf16.mxu0 %v6122
    %6154 = vmatpush1.bf16.msra.mxu0 %v6121
    %6155 = vmatprep.subr.bf16.mxu0 %v6124
    %6156 = vmatpush1.bf16.msra.mxu0 %v6123
    %6157 = vmatprep.subr.bf16.mxu0 %v6126
    %6158 = vmatpush1.bf16.msra.mxu0 %v6125
    %6159 = vmatprep.subr.bf16.mxu0 %v6128
    %6160 = vmatpush1.bf16.msra.mxu0 %v6127
    %6161 = vmatprep.subr.bf16.mxu0 0
    %6162 = vmatpush1.bf16.msra.mxu0 0
    %6163 = vmatprep.subr.bf16.mxu0 0
    %6164 = vmatpush1.bf16.msra.mxu0 0
    %6165 = vmatprep.subr.bf16.mxu0 0
    %6166 = vmatpush1.bf16.msra.mxu0 0
    %6167 = vmatprep.subr.bf16.mxu0 0
    %6168 = vmatpush1.bf16.msra.mxu0 0
    %6169 = vmatprep.subr.bf16.mxu0 0
    %6170 = vmatpush1.bf16.msra.mxu0 0
    %6171 = vmatprep.subr.bf16.mxu0 0
    %6172 = vmatpush1.bf16.msra.mxu0 0
    %6173 = vmatprep.subr.bf16.mxu0 0
    %6174 = vmatpush1.bf16.msra.mxu0 0
    %6175 = vmatprep.subr.bf16.mxu0 0
    %6176 = vmatpush1.bf16.msra.mxu0 0
    %6177 = vmatprep.mubr.bf16.mxu0 0
    %6178 = vmatmul.mubr.bf16.gmra.mrb[0].mxu0 %v6035
    %v6179 = vpop.f32.mrb[0].mxu0
    %v6180 = vadd.f32 %v6058, %v6179
    %v6181 = vpop.f32.mrb[0].mxu0
    %v6182 = vadd.f32 %v6062, %v6181
    %v6183 = vpop.f32.mrb[0].mxu0
    %v6184 = vadd.f32 %v6058, %v6183
    %v6185 = vpop.f32.mrb[0].mxu0
    %v6186 = vadd.f32 %v6062, %v6185
    %6187 = vdwg.mxu0
    %v6188 = vxor.u32 %v6180, 2147483648
    %v6189 = vxor.u32 %v6182, 2147483648
    %v6190 = vxor.u32 %v6184, 2147483648
    %v6191 = vxor.u32 %v6186, 2147483648
    %v6192 = vmul.f32 %v6188, 1.442695
    %v6193 = vpow.pop %v6192
    %v6194 = vmul.f32 %v6189, 1.442695
    %v6195 = vpow.pop %v6194
    %v6196 = vmul.f32 %v6190, 1.442695
    %v6197 = vpow.pop %v6196
    %v6198 = vmul.f32 %v6191, 1.442695
    %v6199 = vpow.pop %v6198
    %v6200 = vadd.f32 %v6193, 1.0
    %v6201 = vadd.f32 %v6195, 1.0
    %v6202 = vadd.f32 %v6197, 1.0
    %v6203 = vadd.f32 %v6199, 1.0
    %v6204 = vrcp.pop %v6200
    %v6205 = vmul.f32 1.0, %v6204
    %v6206 = vrcp.pop %v6201
    %v6207 = vmul.f32 1.0, %v6206
    %v6208 = vrcp.pop %v6202
    %v6209 = vmul.f32 1.0, %v6208
    %v6210 = vrcp.pop %v6203
    %v6211 = vmul.f32 1.0, %v6210
    %v6212 = vadd.f32 %v6205, %v6207
    %v6213 = vadd.f32 %v6209, %v6211
    %v6214 = vmul.f32 %v6212, 0.5
    %v6215 = vmul.f32 %v6213, 0.5
    %v6216 = vmul.f32 %v5917, %v6214
    %v6217 = vmul.f32 %v5918, %v6215
    %v6218 = vpack.c.bf16 %v6217, %v6216
    %v6219 = vld [vmem:[#allocation9 + $0x18] sm:$0xf]
    %v6220 = vld [vmem:[#allocation9 + $0x38] sm:$0xf]
    %v6221 = vld [vmem:[#allocation9 + $0x58] sm:$0xf]
    %v6222 = vld [vmem:[#allocation9 + $0x78] sm:$0xf]
    %v6223 = vld [vmem:[#allocation9 + $0x98] sm:$0xf]
    %v6224 = vld [vmem:[#allocation9 + $0xb8] sm:$0xf]
    %v6225 = vld [vmem:[#allocation9 + $0xd8] sm:$0xf]
    %v6226 = vld [vmem:[#allocation9 + $0xf8] sm:$0xf]
    %v6227 = vld [vmem:[#allocation9 + $0x118] sm:$0xf]
    %v6228 = vld [vmem:[#allocation9 + $0x138] sm:$0xf]
    %v6229 = vld [vmem:[#allocation9 + $0x158] sm:$0xf]
    %v6230 = vld [vmem:[#allocation9 + $0x178] sm:$0xf]
    %v6231 = vld [vmem:[#allocation9 + $0x198] sm:$0xf]
    %v6232 = vld [vmem:[#allocation9 + $0x1b8] sm:$0xf]
    %v6233 = vld [vmem:[#allocation9 + $0x1d8] sm:$0xf]
    %v6234 = vld [vmem:[#allocation9 + $0x1f8] sm:$0xf]
    %v6235 = vld [vmem:[#allocation10 + $0x41] ss:$0 sm:$0xff]
    %v6252 = vunpack.c.l.b16 %v6219
    %v6253 = vunpack.c.l.b16 %v6220
    %v6254 = vunpack.c.l.b16 %v6221
    %v6255 = vunpack.c.l.b16 %v6222
    %v6256 = vunpack.c.l.b16 %v6223
    %v6257 = vunpack.c.l.b16 %v6224
    %v6258 = vunpack.c.l.b16 %v6225
    %v6259 = vunpack.c.l.b16 %v6226
    %v6260 = vunpack.c.l.b16 %v6227
    %v6261 = vunpack.c.l.b16 %v6228
    %v6262 = vunpack.c.l.b16 %v6229
    %v6263 = vunpack.c.l.b16 %v6230
    %v6264 = vunpack.c.l.b16 %v6231
    %v6265 = vunpack.c.l.b16 %v6232
    %v6266 = vunpack.c.l.b16 %v6233
    %v6267 = vunpack.c.l.b16 %v6234
    %v6268 = vpack.c.b16 %v6253, %v6252
    %v6269 = vpack.c.b16 %v6255, %v6254
    %v6270 = vpack.c.b16 %v6257, %v6256
    %v6271 = vpack.c.b16 %v6259, %v6258
    %v6272 = vpack.c.b16 %v6261, %v6260
    %v6273 = vpack.c.b16 %v6263, %v6262
    %v6274 = vpack.c.b16 %v6265, %v6264
    %v6275 = vpack.c.b16 %v6267, %v6266
    %6284 = vmatprep.subr.bf16.mxu0 0
    %6285 = vmatpush1.bf16.msra.mxu0 %v6268
    %6286 = vmatprep.subr.bf16.mxu0 0
    %6287 = vmatpush1.bf16.msra.mxu0 %v6269
    %6288 = vmatprep.subr.bf16.mxu0 0
    %6289 = vmatpush1.bf16.msra.mxu0 %v6270
    %6290 = vmatprep.subr.bf16.mxu0 0
    %6291 = vmatpush1.bf16.msra.mxu0 %v6271
    %6292 = vmatprep.subr.bf16.mxu0 0
    %6293 = vmatpush1.bf16.msra.mxu0 %v6272
    %6294 = vmatprep.subr.bf16.mxu0 0
    %6295 = vmatpush1.bf16.msra.mxu0 %v6273
    %6296 = vmatprep.subr.bf16.mxu0 0
    %6297 = vmatpush1.bf16.msra.mxu0 %v6274
    %6298 = vmatprep.subr.bf16.mxu0 0
    %6299 = vmatpush1.bf16.msra.mxu0 %v6275
    %6300 = vmatprep.subr.bf16.mxu0 0
    %6301 = vmatpush1.bf16.msra.mxu0 0
    %6302 = vmatprep.subr.bf16.mxu0 0
    %6303 = vmatpush1.bf16.msra.mxu0 0
    %6304 = vmatprep.subr.bf16.mxu0 0
    %6305 = vmatpush1.bf16.msra.mxu0 0
    %6306 = vmatprep.subr.bf16.mxu0 0
    %6307 = vmatpush1.bf16.msra.mxu0 0
    %6308 = vmatprep.subr.bf16.mxu0 0
    %6309 = vmatpush1.bf16.msra.mxu0 0
    %6310 = vmatprep.subr.bf16.mxu0 0
    %6311 = vmatpush1.bf16.msra.mxu0 0
    %6312 = vmatprep.subr.bf16.mxu0 0
    %6313 = vmatpush1.bf16.msra.mxu0 0
    %6314 = vmatprep.subr.bf16.mxu0 0
    %6315 = vmatpush1.bf16.msra.mxu0 0
    %6316 = vmatprep.mubr.bf16.mxu0 0
    %6317 = vmatmul.mubr.bf16.gmra.mrb[0].mxu0 %v6218
    %v6318 = vpop.f32.mrb[0].mxu0
    %v6319 = vadd.f32 %v6235, %v6318
    %v6320 = vpop.f32.mrb[0].mxu0
    %v6321 = vpop.f32.mrb[0].mxu0
    %v6322 = vadd.f32 %v6235, %v6321
    %v6323 = vpop.f32.mrb[0].mxu0
    %6324 = vdwg.mxu0
    %v6325 = vmax.f32 %v6319, 0.0
    %v6326 = vmax.f32 %v6322, 0.0
    %v6327 = vpack.c.bf16 %v6326, %v6325
    %v6328 = vld [vmem:[#allocation9 + $0x1c] sm:$0xf]
    %v6329 = vld [vmem:[#allocation9 + $0x3c] sm:$0xf]
    %v6330 = vld [vmem:[#allocation9 + $0x5c] sm:$0xf]
    %v6331 = vld [vmem:[#allocation9 + $0x7c] sm:$0xf]
    %v6332 = vld [vmem:[#allocation9 + $0x9c] sm:$0xf]
    %v6333 = vld [vmem:[#allocation9 + $0xbc] sm:$0xf]
    %v6334 = vld [vmem:[#allocation9 + $0xdc] sm:$0xf]
    %v6335 = vld [vmem:[#allocation9 + $0xfc] sm:$0xf]
    %v6336 = vld [vmem:[#allocation9 + $0x11c] sm:$0xf]
    %v6337 = vld [vmem:[#allocation9 + $0x13c] sm:$0xf]
    %v6338 = vld [vmem:[#allocation9 + $0x15c] sm:$0xf]
    %v6339 = vld [vmem:[#allocation9 + $0x17c] sm:$0xf]
    %v6340 = vld [vmem:[#allocation9 + $0x19c] sm:$0xf]
    %v6341 = vld [vmem:[#allocation9 + $0x1bc] sm:$0xf]
    %v6342 = vld [vmem:[#allocation9 + $0x1dc] sm:$0xf]
    %v6343 = vld [vmem:[#allocation9 + $0x1fc] sm:$0xf]
    %v6344 = vld [vmem:[#allocation10 + $0x42] ss:$0 sm:$0xff]
    %v6361 = vunpack.c.l.b16 %v6328
    %v6362 = vunpack.c.l.b16 %v6329
    %v6363 = vunpack.c.l.b16 %v6330
    %v6364 = vunpack.c.l.b16 %v6331
    %v6365 = vunpack.c.l.b16 %v6332
    %v6366 = vunpack.c.l.b16 %v6333
    %v6367 = vunpack.c.l.b16 %v6334
    %v6368 = vunpack.c.l.b16 %v6335
    %v6369 = vunpack.c.l.b16 %v6336
    %v6370 = vunpack.c.l.b16 %v6337
    %v6371 = vunpack.c.l.b16 %v6338
    %v6372 = vunpack.c.l.b16 %v6339
    %v6373 = vunpack.c.l.b16 %v6340
    %v6374 = vunpack.c.l.b16 %v6341
    %v6375 = vunpack.c.l.b16 %v6342
    %v6376 = vunpack.c.l.b16 %v6343
    %v6377 = vpack.c.b16 %v6362, %v6361
    %v6378 = vpack.c.b16 %v6364, %v6363
    %v6379 = vpack.c.b16 %v6366, %v6365
    %v6380 = vpack.c.b16 %v6368, %v6367
    %v6381 = vpack.c.b16 %v6370, %v6369
    %v6382 = vpack.c.b16 %v6372, %v6371
    %v6383 = vpack.c.b16 %v6374, %v6373
    %v6384 = vpack.c.b16 %v6376, %v6375
    %6393 = vmatprep.subr.bf16.mxu0 0
    %6394 = vmatpush1.bf16.msra.mxu0 %v6377
    %6395 = vmatprep.subr.bf16.mxu0 0
    %6396 = vmatpush1.bf16.msra.mxu0 %v6378
    %6397 = vmatprep.subr.bf16.mxu0 0
    %6398 = vmatpush1.bf16.msra.mxu0 %v6379
    %6399 = vmatprep.subr.bf16.mxu0 0
    %6400 = vmatpush1.bf16.msra.mxu0 %v6380
    %6401 = vmatprep.subr.bf16.mxu0 0
    %6402 = vmatpush1.bf16.msra.mxu0 %v6381
    %6403 = vmatprep.subr.bf16.mxu0 0
    %6404 = vmatpush1.bf16.msra.mxu0 %v6382
    %6405 = vmatprep.subr.bf16.mxu0 0
    %6406 = vmatpush1.bf16.msra.mxu0 %v6383
    %6407 = vmatprep.subr.bf16.mxu0 0
    %6408 = vmatpush1.bf16.msra.mxu0 %v6384
    %6409 = vmatprep.subr.bf16.mxu0 0
    %6410 = vmatpush1.bf16.msra.mxu0 0
    %6411 = vmatprep.subr.bf16.mxu0 0
    %6412 = vmatpush1.bf16.msra.mxu0 0
    %6413 = vmatprep.subr.bf16.mxu0 0
    %6414 = vmatpush1.bf16.msra.mxu0 0
    %6415 = vmatprep.subr.bf16.mxu0 0
    %6416 = vmatpush1.bf16.msra.mxu0 0
    %6417 = vmatprep.subr.bf16.mxu0 0
    %6418 = vmatpush1.bf16.msra.mxu0 0
    %6419 = vmatprep.subr.bf16.mxu0 0
    %6420 = vmatpush1.bf16.msra.mxu0 0
    %6421 = vmatprep.subr.bf16.mxu0 0
    %6422 = vmatpush1.bf16.msra.mxu0 0
    %6423 = vmatprep.subr.bf16.mxu0 0
    %6424 = vmatpush1.bf16.msra.mxu0 0
    %6425 = vmatprep.mubr.bf16.mxu0 0
    %6426 = vmatmul.mubr.bf16.gmra.mrb[0].mxu0 %v6327
    %v6427 = vpop.f32.mrb[0].mxu0
    %v6428 = vadd.f32 %v6344, %v6427
    %v6429 = vpop.f32.mrb[0].mxu0
    %v6430 = vpop.f32.mrb[0].mxu0
    %v6431 = vadd.f32 %v6344, %v6430
    %v6432 = vpop.f32.mrb[0].mxu0
    %6433 = vdwg.mxu0
    %v6434 = vmax.f32 %v6428, 0.0
    %v6435 = vmax.f32 %v6431, 0.0
    %v6436 = vpack.c.bf16 %v6435, %v6434
    %v6437 = vld [vmem:[#allocation7 + $0x10] sm:$0xf]
    %v6438 = vld [vmem:[#allocation7 + $0x24] sm:$0xf]
    %v6439 = vld [vmem:[#allocation7 + $0x38] sm:$0xf]
    %v6440 = vld [vmem:[#allocation7 + $0x4c] sm:$0xf]
    %v6441 = vld [vmem:[#allocation7 + $0x60] sm:$0xf]
    %v6442 = vld [vmem:[#allocation7 + $0x74] sm:$0xf]
    %v6443 = vld [vmem:[#allocation7 + $0x88] sm:$0xf]
    %v6444 = vld [vmem:[#allocation7 + $0x9c] sm:$0xf]
    %v6445 = vld [vmem:[#allocation7 + $0xb0] sm:$0xf]
    %v6446 = vld [vmem:[#allocation7 + $0xc4] sm:$0xf]
    %v6447 = vld [vmem:[#allocation7 + $0xd8] sm:$0xf]
    %v6448 = vld [vmem:[#allocation7 + $0xec] sm:$0xf]
    %v6449 = vld [vmem:[#allocation7 + $0x100] sm:$0xf]
    %v6450 = vld [vmem:[#allocation7 + $0x114] sm:$0xf]
    %v6451 = vld [vmem:[#allocation7 + $0x128] sm:$0xf]
    %v6452 = vld [vmem:[#allocation7 + $0x13c] sm:$0xf]
    %v6453 = vld [vmem:[#allocation7 + $0x150] sm:$0xf]
    %v6454 = vld [vmem:[#allocation7 + $0x164] sm:$0xf]
    %v6455 = vld [vmem:[#allocation7 + $0x178] sm:$0xf]
    %v6456 = vld [vmem:[#allocation7 + $0x18c] sm:$0xf]
    %v6457 = vld [vmem:[#allocation7 + $0x1a0] sm:$0xf]
    %v6458 = vld [vmem:[#allocation7 + $0x1b4] sm:$0xf]
    %v6459 = vld [vmem:[#allocation7 + $0x1c8] sm:$0xf]
    %v6460 = vld [vmem:[#allocation7 + $0x1dc] sm:$0xf]
    %v6461 = vld [vmem:[#allocation7 + $0x1f0] sm:$0xf]
    %v6462 = vld [vmem:[#allocation7 + $0x204] sm:$0xf]
    %v6463 = vld [vmem:[#allocation7 + $0x218] sm:$0xf]
    %v6464 = vld [vmem:[#allocation7 + $0x22c] sm:$0xf]
    %v6465 = vld [vmem:[#allocation7 + $0x240] sm:$0xf]
    %v6466 = vld [vmem:[#allocation7 + $0x254] sm:$0xf]
    %v6467 = vld [vmem:[#allocation7 + $0x268] sm:$0xf]
    %v6468 = vld [vmem:[#allocation7 + $0x27c] sm:$0xf]
    %v6469 = vld [vmem:[#allocation10 + $0x43] ss:$0 sm:$0xff]
    %v6502 = vunpack.c.l.b16 %v6437
    %v6503 = vunpack.c.l.b16 %v6438
    %v6504 = vunpack.c.l.b16 %v6439
    %v6505 = vunpack.c.l.b16 %v6440
    %v6506 = vunpack.c.l.b16 %v6441
    %v6507 = vunpack.c.l.b16 %v6442
    %v6508 = vunpack.c.l.b16 %v6443
    %v6509 = vunpack.c.l.b16 %v6444
    %v6510 = vunpack.c.l.b16 %v6445
    %v6511 = vunpack.c.l.b16 %v6446
    %v6512 = vunpack.c.l.b16 %v6447
    %v6513 = vunpack.c.l.b16 %v6448
    %v6514 = vunpack.c.l.b16 %v6449
    %v6515 = vunpack.c.l.b16 %v6450
    %v6516 = vunpack.c.l.b16 %v6451
    %v6517 = vunpack.c.l.b16 %v6452
    %v6518 = vunpack.c.l.b16 %v6453
    %v6519 = vunpack.c.l.b16 %v6454
    %v6520 = vunpack.c.l.b16 %v6455
    %v6521 = vunpack.c.l.b16 %v6456
    %v6522 = vunpack.c.l.b16 %v6457
    %v6523 = vunpack.c.l.b16 %v6458
    %v6524 = vunpack.c.l.b16 %v6459
    %v6525 = vunpack.c.l.b16 %v6460
    %v6526 = vunpack.c.l.b16 %v6461
    %v6527 = vunpack.c.l.b16 %v6462
    %v6528 = vunpack.c.l.b16 %v6463
    %v6529 = vunpack.c.l.b16 %v6464
    %v6530 = vunpack.c.l.b16 %v6465
    %v6531 = vunpack.c.l.b16 %v6466
    %v6532 = vunpack.c.l.b16 %v6467
    %v6533 = vunpack.c.l.b16 %v6468
    %v6534 = vpack.c.b16 %v6503, %v6502
    %v6535 = vpack.c.b16 %v6505, %v6504
    %v6536 = vpack.c.b16 %v6507, %v6506
    %v6537 = vpack.c.b16 %v6509, %v6508
    %v6538 = vpack.c.b16 %v6511, %v6510
    %v6539 = vpack.c.b16 %v6513, %v6512
    %v6540 = vpack.c.b16 %v6515, %v6514
    %v6541 = vpack.c.b16 %v6517, %v6516
    %v6542 = vpack.c.b16 %v6519, %v6518
    %v6543 = vpack.c.b16 %v6521, %v6520
    %v6544 = vpack.c.b16 %v6523, %v6522
    %v6545 = vpack.c.b16 %v6525, %v6524
    %v6546 = vpack.c.b16 %v6527, %v6526
    %v6547 = vpack.c.b16 %v6529, %v6528
    %v6548 = vpack.c.b16 %v6531, %v6530
    %v6549 = vpack.c.b16 %v6533, %v6532
    %6566 = vmatprep.subr.bf16.mxu0 0
    %6567 = vmatpush1.bf16.msra.mxu0 %v6534
    %6568 = vmatprep.subr.bf16.mxu0 0
    %6569 = vmatpush1.bf16.msra.mxu0 %v6535
    %6570 = vmatprep.subr.bf16.mxu0 0
    %6571 = vmatpush1.bf16.msra.mxu0 %v6536
    %6572 = vmatprep.subr.bf16.mxu0 0
    %6573 = vmatpush1.bf16.msra.mxu0 %v6537
    %6574 = vmatprep.subr.bf16.mxu0 0
    %6575 = vmatpush1.bf16.msra.mxu0 %v6538
    %6576 = vmatprep.subr.bf16.mxu0 0
    %6577 = vmatpush1.bf16.msra.mxu0 %v6539
    %6578 = vmatprep.subr.bf16.mxu0 0
    %6579 = vmatpush1.bf16.msra.mxu0 %v6540
    %6580 = vmatprep.subr.bf16.mxu0 0
    %6581 = vmatpush1.bf16.msra.mxu0 %v6541
    %6582 = vmatprep.subr.bf16.mxu0 0
    %6583 = vmatpush1.bf16.msra.mxu0 %v6542
    %6584 = vmatprep.subr.bf16.mxu0 0
    %6585 = vmatpush1.bf16.msra.mxu0 %v6543
    %6586 = vmatprep.subr.bf16.mxu0 0
    %6587 = vmatpush1.bf16.msra.mxu0 %v6544
    %6588 = vmatprep.subr.bf16.mxu0 0
    %6589 = vmatpush1.bf16.msra.mxu0 %v6545
    %6590 = vmatprep.subr.bf16.mxu0 0
    %6591 = vmatpush1.bf16.msra.mxu0 %v6546
    %6592 = vmatprep.subr.bf16.mxu0 0
    %6593 = vmatpush1.bf16.msra.mxu0 %v6547
    %6594 = vmatprep.subr.bf16.mxu0 0
    %6595 = vmatpush1.bf16.msra.mxu0 %v6548
    %6596 = vmatprep.subr.bf16.mxu0 0
    %6597 = vmatpush1.bf16.msra.mxu0 %v6549
    %6598 = vmatprep.mubr.bf16.mxu0 %v6436
    %6599 = vmatmul.mubr.bf16.gmra.mrb[0].mxu0 %v5490
    %v6600 = vpop.f32.mrb[0].mxu0
    %v6601 = vadd.f32 %v6469, %v6600
    %v6602 = vpop.f32.mrb[0].mxu0
    %v6603 = vpop.f32.mrb[0].mxu0
    %v6604 = vadd.f32 %v6469, %v6603
    %v6605 = vpop.f32.mrb[0].mxu0
    %6606 = vdwg.mxu0
    %6607 = vst [vmem:[%s7] sm:$0xff] %v6601
    %6608 = vst [vmem:[%s7 + $0x8] sm:$0xff] %v6604
    // Predicated region
    $region54: #{ultra_forward.1} parent=1 // pred_check
      _
    $region55: #{ultra_forward.1} parent=1 // pred_check_branch
      %6610 = sbr.rel (0) target = $region57
    $region56: #{ultra_forward.1} parent=1 // pred_region
      _
    $region57: #{ultra_forward.1} parent=1 // pred_fallthru
      _
    // Predicated region
    $region58: #{ultra_forward.1} parent=1 // pred_check
      _
    $region59: #{ultra_forward.1} parent=1 // pred_check_branch
      %6612 = sbr.rel (0) target = $region61
    $region60: #{ultra_forward.1} parent=1 // pred_region
      _
    $region61: #{ultra_forward.1} parent=1 // pred_fallthru
      _
    %6613 = vsyncpa [#allocation3], 1
    %6614 = vsyncpa [#allocation5], 1
    %6615 = vsyncpa [#allocation8], 1
    %6616 = vsyncpa [#allocation11], 1

</llo_original>
